<compile_context>
chip_gen: v7x
topology: tpu7x:2x2x1
jax: 0.10.0
libtpu: 0.0.40
codegen_flags: <defaults>
</compile_context>

<pallas_src>
import functools

import jax
import jax.numpy as jnp
from jax import lax
from jax.experimental import pallas as pl
from jax.experimental.pallas import tpu as pltpu

_HIGHEST = lax.Precision.HIGHEST


# ------------------------------ fused kernel -------------------------------

def _fused_forward_kernel(xm_cf_ref, xm_pm_ref, xq_ref, tgt_ref,
                          wqk_ref, wqd_ref, wk_t_ref, wvd_ref,
                          preds_ref, sse_ref, *, t):
    """Per-batch fused forward: encode memory+query, softmax read, decode, SSE."""
    xm_cf = xm_cf_ref[0]          # (t*c+1, HW)  channels-first memory (+ ones row)
    xm_pm = xm_pm_ref[0]          # (HW, t*c+1)  pixel-major memory    (+ ones col)
    xq = xq_ref[0]                # (c+1,  HW)   channels-first query  (+ ones row)

    # Query key encode (1/sqrt(ck) and bias folded into the weight): (ck, HW).
    qk = jnp.dot(wqk_ref[...], xq, preferred_element_type=jnp.float32)

    # Query-value path folded through the decoder + output bias: (co, HW).
    preds_base = jnp.dot(wqd_ref[...], xq, preferred_element_type=jnp.float32)

    # Per-frame memory encodes (tiny K = t*c+1 matmuls); frames concatenated so
    # the score matmul / softmax / read each touch ONE block.
    #   mk_t: (t*HW, ck)  viewed memory keys, memory pixels on sublanes.
    #   mvd : (co, t*HW)  decoder-folded viewed memory values, lane-dense.
    mk_t = jnp.concatenate(
        [jnp.dot(xm_pm, wk_t_ref[tt], preferred_element_type=jnp.float32)
         for tt in range(t)], axis=0)
    mvd = jnp.concatenate(
        [jnp.dot(wvd_ref[tt], xm_cf, preferred_element_type=jnp.float32)
         for tt in range(t)], axis=1)

    # Scores: (t*HW, HW) -- single live block, query pixels lane-dense.
    s = jnp.dot(mk_t, qk, preferred_element_type=jnp.float32)

    # Softmax over the memory (sublane) axis; probabilities stay UNnormalized.
    m = jnp.max(s, axis=0, keepdims=True)              # (1, HW)
    p = jnp.exp(s - m)
    l = jnp.sum(p, axis=0, keepdims=True)              # (1, HW)

    # Value read fused with the decoder's read half: (co, HW), lane-dense.
    acc = jnp.dot(mvd, p, preferred_element_type=jnp.float32)

    # approx reciprocal (EUP slot) + one Newton step ~= exact denominator.
    r = pl.reciprocal(l, approx=True)
    inv_l = r * (2.0 - l * r)

    preds = acc * inv_l + preds_base                    # (co, HW)
    preds_out = preds.astype(preds_ref.dtype)
    preds_ref[0] = preds_out

    # Per-batch sum of squared error -> SMEM scalar (loss finished outside).
    d = preds_out.astype(jnp.float32) - tgt_ref[0]
    sse_ref[0, 0, 0] = jnp.sum(d * d)


# --------------------------- parameters & helpers ---------------------------

def init_params(key, c_in, ck, cv, c_out):
    k1, k2, k3, k4, k5, k6 = jax.random.split(key, 6)
    s = 0.1
    return {
        "wk": jax.random.normal(k1, (c_in, ck), jnp.float32) * s,
        "bk": jax.random.normal(k2, (ck,), jnp.float32) * s,
        "wv": jax.random.normal(k3, (c_in, cv), jnp.float32) * s,
        "bv": jax.random.normal(k4, (cv,), jnp.float32) * s,
        "wd": jax.random.normal(k5, (2 * cv, c_out), jnp.float32) * s,
        "bd": jax.random.normal(k6, (c_out,), jnp.float32) * s,
    }


def _effective_memory_weights(wmat, bvec, t, c):
    """Per-frame (cn, t*c+1) weights reproducing the torch .view(b, cn, t, h, w)
    reinterpretation of the (b*t, cn, h, w) 1x1-conv outputs, bias folded in.

    Viewed slot (channel kk, frame tt) reads conv channel k' of source frame n'
    with n', k' = divmod(kk*t + tt, cn)."""
    cn = wmat.shape[1]
    r = jnp.arange(cn)[:, None] * t + jnp.arange(t)[None, :]     # (cn, t)
    n_src = r // cn
    k_src = r % cn
    w_g = wmat.T[k_src]                                          # (cn, t, c)
    onehot = jax.nn.one_hot(n_src, t, dtype=wmat.dtype)          # (cn, t, t)
    w_eff = jnp.einsum("ktc,ktn->tknc", w_g, onehot).reshape(t, cn, t * c)
    b_eff = bvec[k_src].T[:, :, None]                            # (t, cn, 1)
    return jnp.concatenate([w_eff, b_eff], axis=2)               # (t, cn, t*c+1)


# --------------------------------- forward ----------------------------------

def network_forward(params, normals, query, target):
    b, t, c, h, w = normals.shape
    hw = h * w
    ck = params["wk"].shape[1]
    cv = params["wv"].shape[1]
    co = params["wd"].shape[1]
    scale = float(ck) ** -0.5

    wk, bk = params["wk"], params["bk"]
    wv, bv = params["wv"], params["bv"]
    wd, bd = params["wd"], params["bd"]
    wd_read = wd[:cv].T                                          # (co, cv)
    wd_qv = wd[cv:].T                                            # (co, cv)

    # Query key encoder: 1/sqrt(ck) and bias folded into the weight.  (ck, c+1)
    wqk_aug = jnp.concatenate([wk.T * scale, (bk * scale)[:, None]], axis=1)

    # Query value path folded through the decoder + output bias.      (co, c+1)
    wqd_aug = jnp.concatenate(
        [jnp.einsum("ov,cv->oc", wd_qv, wv, precision=_HIGHEST),
         (jnp.einsum("ov,v->o", wd_qv, bv, precision=_HIGHEST) + bd)[:, None]],
        axis=1)

    # Per-frame effective memory encoders (torch .view scramble baked in).
    wk_eff = _effective_memory_weights(wk, bk, t, c)             # (t, ck, t*c+1)
    wv_eff = _effective_memory_weights(wv, bv, t, c)             # (t, cv, t*c+1)
    wk_eff_t = jnp.transpose(wk_eff, (0, 2, 1))                  # (t, t*c+1, ck)
    wvd_eff = jnp.einsum("ov,tvj->toj", wd_read, wv_eff,
                         precision=_HIGHEST)                     # (t, co, t*c+1)

    # Channels-first inputs with a ones row for folded biases; the memory
    # frames are also passed pixel-major so the kernel needs no transposes.
    ones = jnp.ones((b, 1, hw), jnp.float32)
    xm_cf = jnp.concatenate(
        [normals.astype(jnp.float32).reshape(b, t * c, hw), ones], axis=1)
    xm_pm = jnp.transpose(xm_cf, (0, 2, 1))                      # (b, hw, t*c+1)
    xq_cf = jnp.concatenate(
        [query.astype(jnp.float32).reshape(b, c, hw), ones], axis=1)
    tgt = target.astype(jnp.float32).reshape(b, co, hw)

    kernel = functools.partial(_fused_forward_kernel, t=t)

    flops = 2 * b * hw * ((ck + co) * (c + 1)
                          + t * (t * c + 1) * (ck + co)
                          + t * hw * (ck + co))
    transcendentals = b * (t * hw * hw + hw)
    bytes_accessed = 4 * int(xm_cf.size + xm_pm.size + xq_cf.size + tgt.size
                             + wqk_aug.size + wqd_aug.size + wk_eff_t.size
                             + wvd_eff.size + b * co * hw + b)

    preds_cf, sse = pl.pallas_call(
        kernel,
        out_shape=(jax.ShapeDtypeStruct((b, co, hw), jnp.float32),
                   jax.ShapeDtypeStruct((b, 1, 1), jnp.float32)),
        grid=(b,),
        in_specs=[
            pl.BlockSpec((1, t * c + 1, hw), lambda i: (i, 0, 0)),
            pl.BlockSpec((1, hw, t * c + 1), lambda i: (i, 0, 0)),
            pl.BlockSpec((1, c + 1, hw), lambda i: (i, 0, 0)),
            pl.BlockSpec((1, co, hw), lambda i: (i, 0, 0)),
            pl.BlockSpec((ck, c + 1), lambda i: (0, 0)),
            pl.BlockSpec((co, c + 1), lambda i: (0, 0)),
            pl.BlockSpec((t, t * c + 1, ck), lambda i: (0, 0, 0)),
            pl.BlockSpec((t, co, t * c + 1), lambda i: (0, 0, 0)),
        ],
        out_specs=(
            pl.BlockSpec((1, co, hw), lambda i: (i, 0, 0)),
            pl.BlockSpec((1, 1, 1), lambda i: (i, 0, 0),
                         memory_space=pltpu.MemorySpace.SMEM),
        ),
        compiler_params=pltpu.CompilerParams(
            dimension_semantics=("parallel",)),
        cost_estimate=pl.CostEstimate(flops=flops,
                                      transcendentals=transcendentals,
                                      bytes_accessed=bytes_accessed),
    )(xm_cf, xm_pm, xq_cf, tgt, wqk_aug, wqd_aug, wk_eff_t, wvd_eff)

    preds = preds_cf.reshape(b, co, h, w)
    multi_loss = jnp.sum(sse) / float(b * co * h * w)
    return multi_loss, preds


# ----------------------------- plain-JAX reference ---------------------------

def network_forward_ref(params, normals, query, target):
    """Reference of the same stand-in STM model; torch's .view(b,c,t,h,w) of
    the contiguous (b*t, c, h, w) conv outputs is a plain row-major reshape."""
    b, t, c, h, w = normals.shape
    hw = h * w
    ck = params["wk"].shape[1]
    cv = params["wv"].shape[1]
    co = params["wd"].shape[1]
    scale = float(ck) ** -0.5

    x = normals.astype(jnp.float32).reshape(b * t, c, hw)
    mk = (jnp.einsum("nci,ck->nki", x, params["wk"], precision=_HIGHEST)
          + params["bk"][None, :, None])
    mv = (jnp.einsum("nci,cv->nvi", x, params["wv"], precision=_HIGHEST)
          + params["bv"][None, :, None])
    m_keys = mk.reshape(b, ck, t, hw)     # == torch .view on contiguous buffer
    m_vals = mv.reshape(b, cv, t, hw)

    xq = query.astype(jnp.float32).reshape(b, c, hw)
    qk = (jnp.einsum("bci,ck->bki", xq, params["wk"], precision=_HIGHEST)
          + params["bk"][None, :, None])
    qv = (jnp.einsum("bci,cv->bvi", xq, params["wv"], precision=_HIGHEST)
          + params["bv"][None, :, None])

    s = jnp.einsum("bkq,bktm->bqtm", qk * scale, m_keys,
                   precision=_HIGHEST).reshape(b, hw, t * hw)
    p = jax.nn.softmax(s, axis=-1)
    read = jnp.einsum("bqm,bvm->bvq", p, m_vals.reshape(b, cv, t * hw),
                      precision=_HIGHEST)
    dec_in = jnp.concatenate([read, qv], axis=1)
    preds = (jnp.einsum("bdq,do->boq", dec_in, params["wd"], precision=_HIGHEST)
             + params["bd"][None, :, None]).reshape(b, co, h, w)
    multi_loss = jnp.mean((preds - target.astype(jnp.float32)) ** 2)
    return multi_loss, preds


if __name__ == "__main__":
    B, T, C, H, W = 2, 3, 4, 16, 16
    CK, CV, CO = 8, 8, 1

    key = jax.random.PRNGKey(0)
    kp, kn, kq, kt = jax.random.split(key, 4)
    params = init_params(kp, C, CK, CV, CO)
    normals = jax.random.normal(kn, (B, T, C, H, W), jnp.float32)
    query = jax.random.normal(kq, (B, C, H, W), jnp.float32)
    target = jax.random.normal(kt, (B, CO, H, W), jnp.float32)

    loss, preds = jax.jit(network_forward)(params, normals, query, target)
    jax.block_until_ready((loss, preds))
    assert preds.shape == (B, CO, H, W) and loss.shape == ()
    assert bool(jnp.isfinite(loss)) and bool(jnp.all(jnp.isfinite(preds)))

    # Cross-check the fused kernel (incl. the .view scramble baked into the
    # effective memory weights and all weight folds) against the plain-JAX ref.
    loss_r, preds_r = jax.jit(network_forward_ref)(params, normals, query, target)
    jax.block_until_ready((loss_r, preds_r))
    assert jnp.allclose(preds, preds_r, atol=3e-3, rtol=2e-2), (
        "preds mismatch, max abs err = "
        + str(float(jnp.max(jnp.abs(preds - preds_r)))))
    assert jnp.allclose(loss, loss_r, atol=1e-3, rtol=1e-2), (
        float(loss), float(loss_r))

    print("KERNEL_OK")
</pallas_src>

<mosaic_0001>
module attributes {stable_mosaic.version = 11 : i64} {
  func.func @_fused_forward_kernel(%arg0: i32, %arg1: memref<1x13x256xf32, #tpu.memory_space<vmem>>, %arg2: memref<1x256x13xf32, #tpu.memory_space<vmem>>, %arg3: memref<1x5x256xf32, #tpu.memory_space<vmem>>, %arg4: memref<1x1x256xf32, #tpu.memory_space<vmem>>, %arg5: memref<8x5xf32, #tpu.memory_space<vmem>>, %arg6: memref<1x5xf32, #tpu.memory_space<vmem>>, %arg7: memref<3x13x8xf32, #tpu.memory_space<vmem>>, %arg8: memref<3x1x13xf32, #tpu.memory_space<vmem>>, %arg9: memref<1x1x256xf32, #tpu.memory_space<vmem>>, %arg10: memref<1x1x1xf32, #tpu.memory_space<smem>>) attributes {dimension_semantics = [#tpu.dimension_semantics<parallel>], iteration_bounds = array<i64: 2>, scalar_prefetch = 0 : i64, scratch_operands = 0 : i64, tpu.core_type = #tpu.core_type<tc>, window_params = [{transform_indices = @transform_0, window_bounds = array<i64: 1, 13, 256>}, {transform_indices = @transform_1, window_bounds = array<i64: 1, 256, 13>}, {transform_indices = @transform_2, window_bounds = array<i64: 1, 5, 256>}, {transform_indices = @transform_3, window_bounds = array<i64: 1, 1, 256>}, {pipeline_mode = #tpu.pipeline_mode<synchronous>, transform_indices = @transform_4, window_bounds = array<i64: 8, 5>}, {pipeline_mode = #tpu.pipeline_mode<synchronous>, transform_indices = @transform_5, window_bounds = array<i64: 1, 5>}, {pipeline_mode = #tpu.pipeline_mode<synchronous>, transform_indices = @transform_6, window_bounds = array<i64: 3, 13, 8>}, {pipeline_mode = #tpu.pipeline_mode<synchronous>, transform_indices = @transform_7, window_bounds = array<i64: 3, 1, 13>}, {transform_indices = @transform_8, window_bounds = array<i64: 1, 1, 256>}, {transform_indices = @transform_9, window_bounds = array<i64: 1, 1, 1>}]} {
    %c0 = arith.constant 0 : index
    %c0_0 = arith.constant 0 : index
    %c0_1 = arith.constant 0 : index
    %0 = vector.load %arg1[%c0, %c0_0, %c0_1] : memref<1x13x256xf32, #tpu.memory_space<vmem>>, vector<1x13x256xf32>
    %1 = vector.shape_cast %0 : vector<1x13x256xf32> to vector<13x256xf32>
    %c0_2 = arith.constant 0 : index
    %c0_3 = arith.constant 0 : index
    %c0_4 = arith.constant 0 : index
    %2 = vector.load %arg2[%c0_2, %c0_3, %c0_4] : memref<1x256x13xf32, #tpu.memory_space<vmem>>, vector<1x256x13xf32>
    %3 = vector.shape_cast %2 : vector<1x256x13xf32> to vector<256x13xf32>
    %c0_5 = arith.constant 0 : index
    %c0_6 = arith.constant 0 : index
    %c0_7 = arith.constant 0 : index
    %4 = vector.load %arg3[%c0_5, %c0_6, %c0_7] : memref<1x5x256xf32, #tpu.memory_space<vmem>>, vector<1x5x256xf32>
    %5 = vector.shape_cast %4 : vector<1x5x256xf32> to vector<5x256xf32>
    %c0_8 = arith.constant 0 : index
    %c0_9 = arith.constant 0 : index
    %6 = vector.load %arg5[%c0_8, %c0_9] : memref<8x5xf32, #tpu.memory_space<vmem>>, vector<8x5xf32>
    %cst = arith.constant dense<0.000000e+00> : vector<8x256xf32>
    %7 = tpu.matmul %6, %5, %cst {dimension_numbers = #tpu.dot_dimension_numbers<[1], [0], [0], [1], [0, 0, 1, 1], [], []>} : vector<8x5xf32>, vector<5x256xf32>, vector<8x256xf32> -> vector<8x256xf32>
    %c0_10 = arith.constant 0 : index
    %c0_11 = arith.constant 0 : index
    %8 = vector.load %arg6[%c0_10, %c0_11] : memref<1x5xf32, #tpu.memory_space<vmem>>, vector<1x5xf32>
    %cst_12 = arith.constant dense<0.000000e+00> : vector<1x256xf32>
    %9 = tpu.matmul %8, %5, %cst_12 {dimension_numbers = #tpu.dot_dimension_numbers<[1], [0], [0], [1], [0, 0, 1, 1], [], []>} : vector<1x5xf32>, vector<5x256xf32>, vector<1x256xf32> -> vector<1x256xf32>
    %c0_13 = arith.constant 0 : index
    %c0_14 = arith.constant 0 : index
    %c0_15 = arith.constant 0 : index
    %10 = vector.load %arg7[%c0_13, %c0_14, %c0_15] : memref<3x13x8xf32, #tpu.memory_space<vmem>>, vector<1x13x8xf32>
    %11 = vector.shape_cast %10 : vector<1x13x8xf32> to vector<13x8xf32>
    %cst_16 = arith.constant dense<0.000000e+00> : vector<256x8xf32>
    %12 = tpu.matmul %3, %11, %cst_16 {dimension_numbers = #tpu.dot_dimension_numbers<[1], [0], [0], [1], [0, 0, 1, 1], [], []>} : vector<256x13xf32>, vector<13x8xf32>, vector<256x8xf32> -> vector<256x8xf32>
    %c1 = arith.constant 1 : index
    %c0_17 = arith.constant 0 : index
    %c0_18 = arith.constant 0 : index
    %13 = vector.load %arg7[%c1, %c0_17, %c0_18] : memref<3x13x8xf32, #tpu.memory_space<vmem>>, vector<1x13x8xf32>
    %14 = vector.shape_cast %13 : vector<1x13x8xf32> to vector<13x8xf32>
    %cst_19 = arith.constant dense<0.000000e+00> : vector<256x8xf32>
    %15 = tpu.matmul %3, %14, %cst_19 {dimension_numbers = #tpu.dot_dimension_numbers<[1], [0], [0], [1], [0, 0, 1, 1], [], []>} : vector<256x13xf32>, vector<13x8xf32>, vector<256x8xf32> -> vector<256x8xf32>
    %c2 = arith.constant 2 : index
    %c0_20 = arith.constant 0 : index
    %c0_21 = arith.constant 0 : index
    %16 = vector.load %arg7[%c2, %c0_20, %c0_21] : memref<3x13x8xf32, #tpu.memory_space<vmem>>, vector<1x13x8xf32>
    %17 = vector.shape_cast %16 : vector<1x13x8xf32> to vector<13x8xf32>
    %cst_22 = arith.constant dense<0.000000e+00> : vector<256x8xf32>
    %18 = tpu.matmul %3, %17, %cst_22 {dimension_numbers = #tpu.dot_dimension_numbers<[1], [0], [0], [1], [0, 0, 1, 1], [], []>} : vector<256x13xf32>, vector<13x8xf32>, vector<256x8xf32> -> vector<256x8xf32>
    %19 = tpu.concatenate %12, %15, %18 in 0 : vector<256x8xf32>, vector<256x8xf32>, vector<256x8xf32> -> vector<768x8xf32>
    %c0_23 = arith.constant 0 : index
    %c0_24 = arith.constant 0 : index
    %c0_25 = arith.constant 0 : index
    %20 = vector.load %arg8[%c0_23, %c0_24, %c0_25] : memref<3x1x13xf32, #tpu.memory_space<vmem>>, vector<1x1x13xf32>
    %21 = vector.shape_cast %20 : vector<1x1x13xf32> to vector<1x13xf32>
    %cst_26 = arith.constant dense<0.000000e+00> : vector<1x256xf32>
    %22 = tpu.matmul %21, %1, %cst_26 {dimension_numbers = #tpu.dot_dimension_numbers<[1], [0], [0], [1], [0, 0, 1, 1], [], []>} : vector<1x13xf32>, vector<13x256xf32>, vector<1x256xf32> -> vector<1x256xf32>
    %c1_27 = arith.constant 1 : index
    %c0_28 = arith.constant 0 : index
    %c0_29 = arith.constant 0 : index
    %23 = vector.load %arg8[%c1_27, %c0_28, %c0_29] : memref<3x1x13xf32, #tpu.memory_space<vmem>>, vector<1x1x13xf32>
    %24 = vector.shape_cast %23 : vector<1x1x13xf32> to vector<1x13xf32>
    %cst_30 = arith.constant dense<0.000000e+00> : vector<1x256xf32>
    %25 = tpu.matmul %24, %1, %cst_30 {dimension_numbers = #tpu.dot_dimension_numbers<[1], [0], [0], [1], [0, 0, 1, 1], [], []>} : vector<1x13xf32>, vector<13x256xf32>, vector<1x256xf32> -> vector<1x256xf32>
    %c2_31 = arith.constant 2 : index
    %c0_32 = arith.constant 0 : index
    %c0_33 = arith.constant 0 : index
    %26 = vector.load %arg8[%c2_31, %c0_32, %c0_33] : memref<3x1x13xf32, #tpu.memory_space<vmem>>, vector<1x1x13xf32>
    %27 = vector.shape_cast %26 : vector<1x1x13xf32> to vector<1x13xf32>
    %cst_34 = arith.constant dense<0.000000e+00> : vector<1x256xf32>
    %28 = tpu.matmul %27, %1, %cst_34 {dimension_numbers = #tpu.dot_dimension_numbers<[1], [0], [0], [1], [0, 0, 1, 1], [], []>} : vector<1x13xf32>, vector<13x256xf32>, vector<1x256xf32> -> vector<1x256xf32>
    %29 = tpu.concatenate %22, %25, %28 in 1 : vector<1x256xf32>, vector<1x256xf32>, vector<1x256xf32> -> vector<1x768xf32>
    %cst_35 = arith.constant dense<0.000000e+00> : vector<768x256xf32>
    %30 = tpu.matmul %19, %7, %cst_35 {dimension_numbers = #tpu.dot_dimension_numbers<[1], [0], [0], [1], [0, 0, 1, 1], [], []>} : vector<768x8xf32>, vector<8x256xf32>, vector<768x256xf32> -> vector<768x256xf32>
    %cst_36 = arith.constant dense<0xFF800000> : vector<256xf32>
    %31 = vector.multi_reduction <maximumf>, %30, %cst_36 [0] : vector<768x256xf32> to vector<256xf32>
    %32 = vector.shape_cast %31 : vector<256xf32> to vector<1x256xf32>
    %33 = vector.broadcast %32 : vector<1x256xf32> to vector<768x256xf32>
    %34 = arith.subf %30, %33 : vector<768x256xf32>
    %35 = math.exp %34 : vector<768x256xf32>
    %cst_37 = arith.constant dense<0.000000e+00> : vector<256xf32>
    %36 = vector.multi_reduction <add>, %35, %cst_37 [0] : vector<768x256xf32> to vector<256xf32>
    %37 = vector.shape_cast %36 : vector<256xf32> to vector<1x256xf32>
    %cst_38 = arith.constant dense<0.000000e+00> : vector<1x256xf32>
    %38 = tpu.matmul %29, %35, %cst_38 {dimension_numbers = #tpu.dot_dimension_numbers<[1], [0], [0], [1], [0, 0, 1, 1], [], []>} : vector<1x768xf32>, vector<768x256xf32>, vector<1x256xf32> -> vector<1x256xf32>
    %39 = tpu.reciprocal %37 {approx = true} : vector<1x256xf32> -> vector<1x256xf32>
    %40 = arith.mulf %37, %39 : vector<1x256xf32>
    %cst_39 = arith.constant 2.000000e+00 : f32
    %41 = vector.broadcast %cst_39 : f32 to vector<1x256xf32>
    %42 = arith.subf %41, %40 : vector<1x256xf32>
    %43 = arith.mulf %39, %42 : vector<1x256xf32>
    %44 = arith.mulf %38, %43 : vector<1x256xf32>
    %45 = arith.addf %44, %9 : vector<1x256xf32>
    %c0_40 = arith.constant 0 : index
    %c0_41 = arith.constant 0 : index
    %c0_42 = arith.constant 0 : index
    %46 = vector.load %arg9[%c0_40, %c0_41, %c0_42] : memref<1x1x256xf32, #tpu.memory_space<vmem>>, vector<1x1x256xf32>
    %47 = vector.shape_cast %46 : vector<1x1x256xf32> to vector<1x256xf32>
    %48 = vector.shape_cast %45 : vector<1x256xf32> to vector<1x1x256xf32>
    tpu.vector_store %arg9[%c0_40, %c0_41, %c0_42], %48 {strides = array<i32>} : memref<1x1x256xf32, #tpu.memory_space<vmem>>, vector<1x1x256xf32>,
    %c0_43 = arith.constant 0 : index
    %c0_44 = arith.constant 0 : index
    %c0_45 = arith.constant 0 : index
    %49 = vector.load %arg4[%c0_43, %c0_44, %c0_45] : memref<1x1x256xf32, #tpu.memory_space<vmem>>, vector<1x1x256xf32>
    %50 = vector.shape_cast %49 : vector<1x1x256xf32> to vector<1x256xf32>
    %51 = arith.subf %45, %50 : vector<1x256xf32>
    %52 = arith.mulf %51, %51 : vector<1x256xf32>
    %53 = vector.shape_cast %52 : vector<1x256xf32> to vector<1x1x256xf32>
    %cst_46 = arith.constant dense<0.000000e+00> : vector<1xf32>
    %54 = vector.multi_reduction <add>, %53, %cst_46 [1, 2] : vector<1x1x256xf32> to vector<1xf32>
    %55 = vector.shape_cast %54 : vector<1xf32> to vector<1x1x1xf32>
    %56 = vector.extract %55[0, 0, 0] : f32 from vector<1x1x1xf32>
    %c0_47 = arith.constant 0 : index
    %c0_48 = arith.constant 0 : index
    %c0_49 = arith.constant 0 : index
    %57 = memref.load %arg10[%c0_47, %c0_48, %c0_49] : memref<1x1x1xf32, #tpu.memory_space<smem>>
    memref.store %56, %arg10[%c0_47, %c0_48, %c0_49] : memref<1x1x1xf32, #tpu.memory_space<smem>>
    return
  }
  func.func @transform_0(%arg0: i32) -> (i32, i32, i32) {
    %c0_i32 = arith.constant 0 : i32
    %c0_i32_0 = arith.constant 0 : i32
    %c0_i32_1 = arith.constant 0 : i32
    return %arg0, %c0_i32, %c0_i32_0 : i32, i32, i32
  }
  func.func @transform_1(%arg0: i32) -> (i32, i32, i32) {
    %c0_i32 = arith.constant 0 : i32
    %c0_i32_0 = arith.constant 0 : i32
    %c0_i32_1 = arith.constant 0 : i32
    return %arg0, %c0_i32, %c0_i32_0 : i32, i32, i32
  }
  func.func @transform_2(%arg0: i32) -> (i32, i32, i32) {
    %c0_i32 = arith.constant 0 : i32
    %c0_i32_0 = arith.constant 0 : i32
    %c0_i32_1 = arith.constant 0 : i32
    return %arg0, %c0_i32, %c0_i32_0 : i32, i32, i32
  }
  func.func @transform_3(%arg0: i32) -> (i32, i32, i32) {
    %c0_i32 = arith.constant 0 : i32
    %c0_i32_0 = arith.constant 0 : i32
    %c0_i32_1 = arith.constant 0 : i32
    return %arg0, %c0_i32, %c0_i32_0 : i32, i32, i32
  }
  func.func @transform_4(%arg0: i32) -> (i32, i32) {
    %c0_i32 = arith.constant 0 : i32
    %c0_i32_0 = arith.constant 0 : i32
    %c0_i32_1 = arith.constant 0 : i32
    return %c0_i32, %c0_i32_0 : i32, i32
  }
  func.func @transform_5(%arg0: i32) -> (i32, i32) {
    %c0_i32 = arith.constant 0 : i32
    %c0_i32_0 = arith.constant 0 : i32
    %c0_i32_1 = arith.constant 0 : i32
    return %c0_i32, %c0_i32_0 : i32, i32
  }
  func.func @transform_6(%arg0: i32) -> (i32, i32, i32) {
    %c0_i32 = arith.constant 0 : i32
    %c0_i32_0 = arith.constant 0 : i32
    %c0_i32_1 = arith.constant 0 : i32
    %c0_i32_2 = arith.constant 0 : i32
    return %c0_i32, %c0_i32_0, %c0_i32_1 : i32, i32, i32
  }
  func.func @transform_7(%arg0: i32) -> (i32, i32, i32) {
    %c0_i32 = arith.constant 0 : i32
    %c0_i32_0 = arith.constant 0 : i32
    %c0_i32_1 = arith.constant 0 : i32
    %c0_i32_2 = arith.constant 0 : i32
    return %c0_i32, %c0_i32_0, %c0_i32_1 : i32, i32, i32
  }
  func.func @transform_8(%arg0: i32) -> (i32, i32, i32) {
    %c0_i32 = arith.constant 0 : i32
    %c0_i32_0 = arith.constant 0 : i32
    %c0_i32_1 = arith.constant 0 : i32
    return %arg0, %c0_i32, %c0_i32_0 : i32, i32, i32
  }
  func.func @transform_9(%arg0: i32) -> (i32, i32, i32) {
    %c0_i32 = arith.constant 0 : i32
    %c0_i32_0 = arith.constant 0 : i32
    %c0_i32_1 = arith.constant 0 : i32
    return %arg0, %c0_i32, %c0_i32_0 : i32, i32, i32
  }
}

</mosaic_0001>

<llo_original>
// kernel: network_forward.1
$region0: #{network_forward.1}
  #allocation0 [shape = 'u32[]', space=smem, size = 0x4, offset = 0x4, fixed_abs, tag = 'smem constant byte address 0x4 - core index']
  #allocation1 [shape = 'u32[144,128]{1,0:T(1,128)}', space=vmem, size = 0x12000, scoped, tag = 'internal scratch']
  %s0 = inlined_call_operand.vmem [shape: f32[2,13,256], index: 0, kind: input, shape index: {}]
  %s1 = inlined_call_operand.vmem [shape: f32[2,256,13], index: 1, kind: input, shape index: {}]
  %s2 = inlined_call_operand.vmem [shape: f32[2,5,256], index: 2, kind: input, shape index: {}]
  %s3 = inlined_call_operand.vmem [shape: f32[2,1,256], index: 3, kind: input, shape index: {}]
  %s4 = inlined_call_operand.vmem [shape: f32[8,5], index: 4, kind: input, shape index: {}]
  %s5 = inlined_call_operand.vmem [shape: f32[1,5], index: 5, kind: input, shape index: {}]
  %s6 = inlined_call_operand.vmem [shape: f32[3,13,8], index: 6, kind: input, shape index: {}]
  %s7 = inlined_call_operand.vmem [shape: f32[3,1,13], index: 7, kind: input, shape index: {}]
  %s8 = inlined_call_operand.vmem [shape: f32[2,1,256], index: 8, kind: output, shape index: {0}]
  %s9 = inlined_call_operand.vmem [shape: f32[2,1,1], index: 9, kind: output, shape index: {1}]
  %10 = xla_tuple %s8, %s9
  %s11 = sld [smem:[#allocation0]]
  $region73: #{network_forward.1} parent=0
    _
  %s13 = ssub.s32 1, %s11
  %s14 = scalar_select 0, %s13, %s11
  $region1: #{network_forward.1} parent=0
    #allocation2 [shape = 'u8[1024]{0}', space=smem, size = 0x400, scoped, tag = 'output window, operand 1']
    #allocation3 [shape = 's32[2]{0}', space=sflag, size = 0x8, scoped, tag = 'scoped memory for network_forward.1']
    %15 = vsyncpa [#allocation3], 0
    %s16 = scalar_lea.sflag [#allocation3], 1
    %17 = vsyncpa %s16, 0
    loop: start=0, step=1, limit=4
    $region2: #{network_forward.1} parent=1 // loop_pre_header
      _
    $region3: #{network_forward.1} parent=1 // loop_header
      %s19 = sphi 0, %s23
      %p20 = scmp.ge.s32.totalorder %s19, 4
      %s29 = sphi 0, %s31
      %s32 = sphi 0, %s29
      %s33 = sphi 0, %s32
      %s49 = sphi 0, %s33
      %s55 = sphi 0, %s57
      %s58 = sphi 0, %s55
      %s59 = sphi 0, %s58
      %s75 = sphi 0, %s59
      %s81 = sphi 0, %s83
      %s84 = sphi 0, %s81
      %s85 = sphi 0, %s84
      %s101 = sphi 0, %s85
      %s107 = sphi 0, %s109
      %s110 = sphi 0, %s107
      %s111 = sphi 0, %s110
      %s127 = sphi 0, %s111
      %s131 = sphi 0, %s131
      %s133 = sphi 0, %s131
      %s134 = sphi 0, %s133
      %s148 = sphi 0, %s134
      %s152 = sphi 0, %s152
      %s154 = sphi 0, %s152
      %s155 = sphi 0, %s154
      %s169 = sphi 0, %s155
      %s173 = sphi 0, %s173
      %s175 = sphi 0, %s173
      %s176 = sphi 0, %s175
      %s190 = sphi 0, %s176
      %s194 = sphi 0, %s194
      %s196 = sphi 0, %s194
      %s197 = sphi 0, %s196
      %s211 = sphi 0, %s197
      %s217 = sphi 0, %s219
      %s220 = sphi 0, %s217
      %s221 = sphi 0, %s220
      %s237 = sphi 0, %s221
      %s243 = sphi 0, %s245
      %s246 = sphi 0, %s243
      %s247 = sphi 0, %s246
      %s263 = sphi 0, %s247
    $region4: #{network_forward.1} parent=1 // loop_header_branch
      %22 = sbr.rel (%p20) target = $region8
    $region5: #{network_forward.1} parent=1 // loop_body
      %s24 = ssub.s32 %s19, 1
      %s25 = ssub.s32 %s19, 2
      %s26 = sadd.s32 %s19, 1
      %s27 = ssub.s32 %s19, %s26
      %p28 = scmp.eq.s32.totalorder %s27, 0
      %s30 = sadd.s32 %s29, 1
      %s31 = scalar_select %p28, %s29, %s30
      %p34 = pneg %p28
      %p35 = scmp.eq.s32.totalorder %s19, 1
      %p36 = por %p34, %p35
      %p37 = scmp.ne.s32.totalorder %s29, %s32
      %p38 = scmp.eq.s32.totalorder %s19, 0
      %p39 = por %p37, %p38
      %p40 = scmp.ne.s32.totalorder %s29, %s32
      %p41 = scmp.eq.s32.totalorder %s24, 1
      %p42 = por %p40, %p41
      %p43 = scmp.ne.s32.totalorder %s32, %s33
      %p44 = scmp.eq.s32.totalorder %s24, 0
      %p45 = por %p43, %p44
      %p46 = scmp.ne.s32.totalorder %s32, %s33
      %p47 = scmp.eq.s32.totalorder %s25, 1
      %p48 = por %p46, %p47
      %p50 = scmp.ne.s32.totalorder %s33, %s49
      %p51 = scmp.eq.s32.totalorder %s25, 0
      %p52 = por %p50, %p51
      %s53 = ssub.s32 %s19, %s26
      %p54 = scmp.eq.s32.totalorder %s53, 0
      %s56 = sadd.s32 %s55, 1
      %s57 = scalar_select %p54, %s55, %s56
      %p60 = pneg %p54
      %p61 = scmp.eq.s32.totalorder %s19, 1
      %p62 = por %p60, %p61
      %p63 = scmp.ne.s32.totalorder %s55, %s58
      %p64 = scmp.eq.s32.totalorder %s19, 0
      %p65 = por %p63, %p64
      %p66 = scmp.ne.s32.totalorder %s55, %s58
      %p67 = scmp.eq.s32.totalorder %s24, 1
      %p68 = por %p66, %p67
      %p69 = scmp.ne.s32.totalorder %s58, %s59
      %p70 = scmp.eq.s32.totalorder %s24, 0
      %p71 = por %p69, %p70
      %p72 = scmp.ne.s32.totalorder %s58, %s59
      %p73 = scmp.eq.s32.totalorder %s25, 1
      %p74 = por %p72, %p73
      %p76 = scmp.ne.s32.totalorder %s59, %s75
      %p77 = scmp.eq.s32.totalorder %s25, 0
      %p78 = por %p76, %p77
      %s79 = ssub.s32 %s19, %s26
      %p80 = scmp.eq.s32.totalorder %s79, 0
      %s82 = sadd.s32 %s81, 1
      %s83 = scalar_select %p80, %s81, %s82
      %p86 = pneg %p80
      %p87 = scmp.eq.s32.totalorder %s19, 1
      %p88 = por %p86, %p87
      %p89 = scmp.ne.s32.totalorder %s81, %s84
      %p90 = scmp.eq.s32.totalorder %s19, 0
      %p91 = por %p89, %p90
      %p92 = scmp.ne.s32.totalorder %s81, %s84
      %p93 = scmp.eq.s32.totalorder %s24, 1
      %p94 = por %p92, %p93
      %p95 = scmp.ne.s32.totalorder %s84, %s85
      %p96 = scmp.eq.s32.totalorder %s24, 0
      %p97 = por %p95, %p96
      %p98 = scmp.ne.s32.totalorder %s84, %s85
      %p99 = scmp.eq.s32.totalorder %s25, 1
      %p100 = por %p98, %p99
      %p102 = scmp.ne.s32.totalorder %s85, %s101
      %p103 = scmp.eq.s32.totalorder %s25, 0
      %p104 = por %p102, %p103
      %s105 = ssub.s32 %s19, %s26
      %p106 = scmp.eq.s32.totalorder %s105, 0
      %s108 = sadd.s32 %s107, 1
      %s109 = scalar_select %p106, %s107, %s108
      %p112 = pneg %p106
      %p113 = scmp.eq.s32.totalorder %s19, 1
      %p114 = por %p112, %p113
      %p115 = scmp.ne.s32.totalorder %s107, %s110
      %p116 = scmp.eq.s32.totalorder %s19, 0
      %p117 = por %p115, %p116
      %p118 = scmp.ne.s32.totalorder %s107, %s110
      %p119 = scmp.eq.s32.totalorder %s24, 1
      %p120 = por %p118, %p119
      %p121 = scmp.ne.s32.totalorder %s110, %s111
      %p122 = scmp.eq.s32.totalorder %s24, 0
      %p123 = por %p121, %p122
      %p124 = scmp.ne.s32.totalorder %s110, %s111
      %p125 = scmp.eq.s32.totalorder %s25, 1
      %p126 = por %p124, %p125
      %p128 = scmp.ne.s32.totalorder %s111, %s127
      %p129 = scmp.eq.s32.totalorder %s25, 0
      %p130 = por %p128, %p129
      %s132 = sadd.s32 %s131, 1
      %p135 = scmp.eq.s32.totalorder %s19, 1
      %p136 = scmp.ne.s32.totalorder %s131, %s133
      %p137 = scmp.eq.s32.totalorder %s19, 0
      %p138 = por %p136, %p137
      %p139 = scmp.ne.s32.totalorder %s131, %s133
      %p140 = scmp.eq.s32.totalorder %s24, 1
      %p141 = por %p139, %p140
      %p142 = scmp.ne.s32.totalorder %s133, %s134
      %p143 = scmp.eq.s32.totalorder %s24, 0
      %p144 = por %p142, %p143
      %p145 = scmp.ne.s32.totalorder %s133, %s134
      %p146 = scmp.eq.s32.totalorder %s25, 1
      %p147 = por %p145, %p146
      %p149 = scmp.ne.s32.totalorder %s134, %s148
      %p150 = scmp.eq.s32.totalorder %s25, 0
      %p151 = por %p149, %p150
      %s153 = sadd.s32 %s152, 1
      %p156 = scmp.eq.s32.totalorder %s19, 1
      %p157 = scmp.ne.s32.totalorder %s152, %s154
      %p158 = scmp.eq.s32.totalorder %s19, 0
      %p159 = por %p157, %p158
      %p160 = scmp.ne.s32.totalorder %s152, %s154
      %p161 = scmp.eq.s32.totalorder %s24, 1
      %p162 = por %p160, %p161
      %p163 = scmp.ne.s32.totalorder %s154, %s155
      %p164 = scmp.eq.s32.totalorder %s24, 0
      %p165 = por %p163, %p164
      %p166 = scmp.ne.s32.totalorder %s154, %s155
      %p167 = scmp.eq.s32.totalorder %s25, 1
      %p168 = por %p166, %p167
      %p170 = scmp.ne.s32.totalorder %s155, %s169
      %p171 = scmp.eq.s32.totalorder %s25, 0
      %p172 = por %p170, %p171
      %s174 = sadd.s32 %s173, 1
      %p177 = scmp.eq.s32.totalorder %s19, 1
      %p178 = scmp.ne.s32.totalorder %s173, %s175
      %p179 = scmp.eq.s32.totalorder %s19, 0
      %p180 = por %p178, %p179
      %p181 = scmp.ne.s32.totalorder %s173, %s175
      %p182 = scmp.eq.s32.totalorder %s24, 1
      %p183 = por %p181, %p182
      %p184 = scmp.ne.s32.totalorder %s175, %s176
      %p185 = scmp.eq.s32.totalorder %s24, 0
      %p186 = por %p184, %p185
      %p187 = scmp.ne.s32.totalorder %s175, %s176
      %p188 = scmp.eq.s32.totalorder %s25, 1
      %p189 = por %p187, %p188
      %p191 = scmp.ne.s32.totalorder %s176, %s190
      %p192 = scmp.eq.s32.totalorder %s25, 0
      %p193 = por %p191, %p192
      %s195 = sadd.s32 %s194, 1
      %p198 = scmp.eq.s32.totalorder %s19, 1
      %p199 = scmp.ne.s32.totalorder %s194, %s196
      %p200 = scmp.eq.s32.totalorder %s19, 0
      %p201 = por %p199, %p200
      %p202 = scmp.ne.s32.totalorder %s194, %s196
      %p203 = scmp.eq.s32.totalorder %s24, 1
      %p204 = por %p202, %p203
      %p205 = scmp.ne.s32.totalorder %s196, %s197
      %p206 = scmp.eq.s32.totalorder %s24, 0
      %p207 = por %p205, %p206
      %p208 = scmp.ne.s32.totalorder %s196, %s197
      %p209 = scmp.eq.s32.totalorder %s25, 1
      %p210 = por %p208, %p209
      %p212 = scmp.ne.s32.totalorder %s197, %s211
      %p213 = scmp.eq.s32.totalorder %s25, 0
      %p214 = por %p212, %p213
      %s215 = ssub.s32 %s19, %s26
      %p216 = scmp.eq.s32.totalorder %s215, 0
      %s218 = sadd.s32 %s217, 1
      %s219 = scalar_select %p216, %s217, %s218
      %p222 = pneg %p216
      %p223 = scmp.eq.s32.totalorder %s19, 1
      %p224 = por %p222, %p223
      %p225 = scmp.ne.s32.totalorder %s217, %s220
      %p226 = scmp.eq.s32.totalorder %s19, 0
      %p227 = por %p225, %p226
      %p228 = scmp.ne.s32.totalorder %s217, %s220
      %p229 = scmp.eq.s32.totalorder %s24, 1
      %p230 = por %p228, %p229
      %p231 = scmp.ne.s32.totalorder %s220, %s221
      %p232 = scmp.eq.s32.totalorder %s24, 0
      %p233 = por %p231, %p232
      %p234 = scmp.ne.s32.totalorder %s220, %s221
      %p235 = scmp.eq.s32.totalorder %s25, 1
      %p236 = por %p234, %p235
      %p238 = scmp.ne.s32.totalorder %s221, %s237
      %p239 = scmp.eq.s32.totalorder %s25, 0
      %p240 = por %p238, %p239
      %s241 = ssub.s32 %s19, %s26
      %p242 = scmp.eq.s32.totalorder %s241, 0
      %s244 = sadd.s32 %s243, 1
      %s245 = scalar_select %p242, %s243, %s244
      %p248 = pneg %p242
      %p249 = scmp.eq.s32.totalorder %s19, 1
      %p250 = por %p248, %p249
      %p251 = scmp.ne.s32.totalorder %s243, %s246
      %p252 = scmp.eq.s32.totalorder %s19, 0
      %p253 = por %p251, %p252
      %p254 = scmp.ne.s32.totalorder %s243, %s246
      %p255 = scmp.eq.s32.totalorder %s24, 1
      %p256 = por %p254, %p255
      %p257 = scmp.ne.s32.totalorder %s246, %s247
      %p258 = scmp.eq.s32.totalorder %s24, 0
      %p259 = por %p257, %p258
      %p260 = scmp.ne.s32.totalorder %s246, %s247
      %p261 = scmp.eq.s32.totalorder %s25, 1
      %p262 = por %p260, %p261
      %p264 = scmp.ne.s32.totalorder %s247, %s263
      %p265 = scmp.eq.s32.totalorder %s25, 0
      %p266 = por %p264, %p265
      %p267 = scmp.le.s32.totalorder 1, %s19
      %p268 = scmp.lt.s32.totalorder %s19, 3
      %p269 = pnand %p267, %p268
      %p270 = pneg %p269
      // Predicated region
      $region9: #{network_forward.1} parent=5 // pred_check
        _
      $region10: #{network_forward.1} parent=5 // pred_check_branch
        %272 = sbr.rel (%p269) target = $region12
      $region11: #{network_forward.1} parent=5 // pred_region
        %s273 = ssub.s32 %s19, 1
        // Predicated region
        $region13: #{network_forward.1} parent=11 // pred_check
          %p274 = pneg %p144
        $region14: #{network_forward.1} parent=11 // pred_check_branch
          %276 = sbr.rel (%p274) target = $region16
        $region15: #{network_forward.1} parent=11 // pred_region
          _
        $region16: #{network_forward.1} parent=11 // pred_fallthru
          _
        // Predicated region
        $region17: #{network_forward.1} parent=11 // pred_check
          %p277 = pneg %p165
        $region18: #{network_forward.1} parent=11 // pred_check_branch
          %279 = sbr.rel (%p277) target = $region20
        $region19: #{network_forward.1} parent=11 // pred_region
          _
        $region20: #{network_forward.1} parent=11 // pred_fallthru
          _
        // Predicated region
        $region21: #{network_forward.1} parent=11 // pred_check
          %p280 = pneg %p186
        $region22: #{network_forward.1} parent=11 // pred_check_branch
          %282 = sbr.rel (%p280) target = $region24
        $region23: #{network_forward.1} parent=11 // pred_region
          _
        $region24: #{network_forward.1} parent=11 // pred_fallthru
          _
        // Predicated region
        $region25: #{network_forward.1} parent=11 // pred_check
          %p283 = pneg %p207
        $region26: #{network_forward.1} parent=11 // pred_check_branch
          %285 = sbr.rel (%p283) target = $region28
        $region27: #{network_forward.1} parent=11 // pred_region
          _
        $region28: #{network_forward.1} parent=11 // pred_fallthru
          _
      $region12: #{network_forward.1} parent=5 // pred_fallthru
        _
      %p286 = scmp.lt.s32.totalorder %s19, 2
      // Predicated region
      $region29: #{network_forward.1} parent=5 // pred_check
        %p287 = pneg %p286
      $region30: #{network_forward.1} parent=5 // pred_check_branch
        %289 = sbr.rel (%p287) target = $region32
      $region31: #{network_forward.1} parent=5 // pred_region
        // Predicated region
        $region33: #{network_forward.1} parent=31 // pred_check
          %p290 = pneg %p39
        $region34: #{network_forward.1} parent=31 // pred_check_branch
          %292 = sbr.rel (%p290) target = $region36
        $region35: #{network_forward.1} parent=31 // pred_region
          %p293 = scmp.lt.s32.totalorder %s19, 1
          %s294 = scalar_select %p293, %s19, 1
          %s295 = smul.addr %s294, 4
          %s296 = smul.addr %s295, 8
          %s297 = scalar_lea.vmem %s0, %s296
        $region36: #{network_forward.1} parent=31 // pred_fallthru
          _
        // Predicated region
        $region37: #{network_forward.1} parent=31 // pred_check
          %p298 = pneg %p65
        $region38: #{network_forward.1} parent=31 // pred_check_branch
          %300 = sbr.rel (%p298) target = $region40
        $region39: #{network_forward.1} parent=31 // pred_region
          %p301 = scmp.lt.s32.totalorder %s19, 1
          %s302 = scalar_select %p301, %s19, 1
          %s303 = smul.addr %s302, 32
          %s304 = smul.addr %s303, 8
          %s305 = scalar_lea.vmem %s1, %s304
        $region40: #{network_forward.1} parent=31 // pred_fallthru
          _
        // Predicated region
        $region41: #{network_forward.1} parent=31 // pred_check
          %p306 = pneg %p91
        $region42: #{network_forward.1} parent=31 // pred_check_branch
          %308 = sbr.rel (%p306) target = $region44
        $region43: #{network_forward.1} parent=31 // pred_region
          %p309 = scmp.lt.s32.totalorder %s19, 1
          %s310 = scalar_select %p309, %s19, 1
          %s311 = smul.addr %s310, 2
          %s312 = smul.addr %s311, 8
          %s313 = scalar_lea.vmem %s2, %s312
        $region44: #{network_forward.1} parent=31 // pred_fallthru
          _
        // Predicated region
        $region45: #{network_forward.1} parent=31 // pred_check
          %p314 = pneg %p117
        $region46: #{network_forward.1} parent=31 // pred_check_branch
          %316 = sbr.rel (%p314) target = $region48
        $region47: #{network_forward.1} parent=31 // pred_region
          %p317 = scmp.lt.s32.totalorder %s19, 1
          %s318 = scalar_select %p317, %s19, 1
          %s319 = smul.addr %s318, 2
          %s320 = scalar_lea.vmem %s3, %s319
        $region48: #{network_forward.1} parent=31 // pred_fallthru
          _
      $region32: #{network_forward.1} parent=5 // pred_fallthru
        _
      %p321 = scmp.le.s32.totalorder 1, %s19
      %p322 = scmp.lt.s32.totalorder %s19, 3
      %p323 = pnand %p321, %p322
      %p324 = pneg %p323
      // Predicated region
      $region49: #{network_forward.1} parent=5 // pred_check
        _
      $region50: #{network_forward.1} parent=5 // pred_check_branch
        %326 = sbr.rel (%p323) target = $region52
      $region51: #{network_forward.1} parent=5 // pred_region
        %s327 = ssub.s32 %s19, 1
        %p328 = scmp.lt.s32.totalorder %s24, 1
        %s329 = scalar_select %p328, %s24, 1
        %s330 = smul.addr %s329, 4
        %s331 = smul.addr %s330, 8
        %s332 = scalar_lea.vmem %s0, %s331
        %p333 = pneg %p45
        %p334 = pneg %p42
        %p335 = scmp.lt.s32.totalorder %s24, 1
        %s336 = scalar_select %p335, %s24, 1
        %s337 = smul.addr %s336, 32
        %s338 = smul.addr %s337, 8
        %s339 = scalar_lea.vmem %s1, %s338
        %p340 = pneg %p71
        %p341 = pneg %p68
        %p342 = scmp.lt.s32.totalorder %s24, 1
        %s343 = scalar_select %p342, %s24, 1
        %s344 = smul.addr %s343, 2
        %s345 = smul.addr %s344, 8
        %s346 = scalar_lea.vmem %s2, %s345
        %p347 = pneg %p97
        %p348 = pneg %p94
        %p349 = scmp.lt.s32.totalorder %s24, 1
        %s350 = scalar_select %p349, %s24, 1
        %s351 = smul.addr %s350, 2
        %s352 = scalar_lea.vmem %s3, %s351
        %p353 = pneg %p123
        %p354 = pneg %p120
        %p355 = pneg %p144
        %p356 = pneg %p141
        %p357 = pneg %p165
        %p358 = pneg %p162
        %p359 = pneg %p186
        %p360 = pneg %p183
        %p361 = pneg %p207
        %p362 = pneg %p204
        %p363 = pneg %p233
        %p364 = pneg %p230
        %p365 = scmp.lt.s32.totalorder %s24, 1
        %s366 = scalar_select %p365, %s24, 1
        %s367 = smul.addr %s366, 2
        %s368 = scalar_lea.vmem %s8, %s367
        %p369 = pneg %p259
        %p370 = pneg %p256
        %s371 = sand.u32 %s246, 1
        %s372 = scalar_lea.sflag [#allocation3], %s371
        %s373 = sand.u32 %s246, 1
        %s374 = smul.addr %s373, 128
        %s375 = scalar_lea.smem [#allocation2], %s374
        %p376 = scmp.lt.s32.totalorder %s24, 1
        %s377 = scalar_select %p376, %s24, 1
        %s378 = smul.addr %s377, 4
        %s379 = smul.addr %s378, 8
        %s380 = scalar_lea.vmem %s0, %s379
        %p381 = scmp.lt.s32.totalorder %s24, 1
        %s382 = scalar_select %p381, %s24, 1
        %s383 = smul.addr %s382, 32
        %s384 = smul.addr %s383, 8
        %s385 = scalar_lea.vmem %s1, %s384
        %p386 = scmp.lt.s32.totalorder %s24, 1
        %s387 = scalar_select %p386, %s24, 1
        %s388 = smul.addr %s387, 2
        %s389 = smul.addr %s388, 8
        %s390 = scalar_lea.vmem %s2, %s389
        %p391 = scmp.lt.s32.totalorder %s24, 1
        %s392 = scalar_select %p391, %s24, 1
        %s393 = smul.addr %s392, 2
        %s394 = scalar_lea.vmem %s3, %s393
        %p395 = scmp.lt.s32.totalorder %s24, 1
        %s396 = scalar_select %p395, %s24, 1
        %s397 = smul.addr %s396, 2
        %s398 = scalar_lea.vmem %s8, %s397
        %v399 = vld [vmem:[%s380] sm:$0xff]
        %v400 = vld [vmem:[%s380 + $0x8] sm:$0xff]
        %v401 = vld [vmem:[%s380 + $0x10] sm:$0x1f]
        %v402 = vld [vmem:[%s380 + $0x18] sm:$0x1f]
        %v403 = vld [vmem:[%s385] sm:$0xff]
        %v404 = vld [vmem:[%s385 + $0x8] sm:$0xff]
        %v405 = vld [vmem:[%s385 + $0x10] sm:$0xff]
        %v406 = vld [vmem:[%s385 + $0x18] sm:$0xff]
        %v407 = vld [vmem:[%s385 + $0x20] sm:$0xff]
        %v408 = vld [vmem:[%s385 + $0x28] sm:$0xff]
        %v409 = vld [vmem:[%s385 + $0x30] sm:$0xff]
        %v410 = vld [vmem:[%s385 + $0x38] sm:$0xff]
        %v411 = vld [vmem:[%s385 + $0x40] sm:$0xff]
        %v412 = vld [vmem:[%s385 + $0x48] sm:$0xff]
        %v413 = vld [vmem:[%s385 + $0x50] sm:$0xff]
        %v414 = vld [vmem:[%s385 + $0x58] sm:$0xff]
        %v415 = vld [vmem:[%s385 + $0x60] sm:$0xff]
        %v416 = vld [vmem:[%s385 + $0x68] sm:$0xff]
        %v417 = vld [vmem:[%s385 + $0x70] sm:$0xff]
        %v418 = vld [vmem:[%s385 + $0x78] sm:$0xff]
        %v419 = vld [vmem:[%s385 + $0x80] sm:$0xff]
        %v420 = vld [vmem:[%s385 + $0x88] sm:$0xff]
        %v421 = vld [vmem:[%s385 + $0x90] sm:$0xff]
        %v422 = vld [vmem:[%s385 + $0x98] sm:$0xff]
        %v423 = vld [vmem:[%s385 + $0xa0] sm:$0xff]
        %v424 = vld [vmem:[%s385 + $0xa8] sm:$0xff]
        %v425 = vld [vmem:[%s385 + $0xb0] sm:$0xff]
        %v426 = vld [vmem:[%s385 + $0xb8] sm:$0xff]
        %v427 = vld [vmem:[%s385 + $0xc0] sm:$0xff]
        %v428 = vld [vmem:[%s385 + $0xc8] sm:$0xff]
        %v429 = vld [vmem:[%s385 + $0xd0] sm:$0xff]
        %v430 = vld [vmem:[%s385 + $0xd8] sm:$0xff]
        %v431 = vld [vmem:[%s385 + $0xe0] sm:$0xff]
        %v432 = vld [vmem:[%s385 + $0xe8] sm:$0xff]
        %v433 = vld [vmem:[%s385 + $0xf0] sm:$0xff]
        %v434 = vld [vmem:[%s385 + $0xf8] sm:$0xff]
        %v435 = vld [vmem:[%s390] sm:$0x1f]
        %v436 = vld [vmem:[%s390 + $0x8] sm:$0x1f]
        %v437 = vld [vmem:[%s4] sm:$0xff]
        %vm438 = vcmask 39936
        %v440 = vsel %vm438, %v437, 0
        %vm442 = vcmask 1044480
        %v444 = vsel %vm442, %v435, 0
        %v447 = vsel %vm442, %v436, 0
        %449 = vmatprep.subr.mxu0 %v447
        %450 = vmatpush1.msra.mxu0 %v444
        %451 = vmatprep.subr.mxu0 0.0
        %452 = vmatpush1.msra.mxu0 0.0
        %453 = vmatprep.subr.mxu0 0.0
        %454 = vmatpush1.msra.mxu0 0.0
        %455 = vmatprep.subr.mxu0 0.0
        %456 = vmatpush1.msra.mxu0 0.0
        %457 = vmatprep.subr.mxu0 0.0
        %458 = vmatpush1.msra.mxu0 0.0
        %459 = vmatprep.subr.mxu0 0.0
        %460 = vmatpush1.msra.mxu0 0.0
        %461 = vmatprep.subr.mxu0 0.0
        %462 = vmatpush1.msra.mxu0 0.0
        %463 = vmatprep.subr.mxu0 0.0
        %464 = vmatpush1.msra.mxu0 0.0
        %465 = vmatprep.subr.mxu0 0.0
        %466 = vmatpush1.msra.mxu0 0.0
        %467 = vmatprep.subr.mxu0 0.0
        %468 = vmatpush1.msra.mxu0 0.0
        %469 = vmatprep.subr.mxu0 0.0
        %470 = vmatpush1.msra.mxu0 0.0
        %471 = vmatprep.subr.mxu0 0.0
        %472 = vmatpush1.msra.mxu0 0.0
        %473 = vmatprep.subr.mxu0 0.0
        %474 = vmatpush1.msra.mxu0 0.0
        %475 = vmatprep.subr.mxu0 0.0
        %476 = vmatpush1.msra.mxu0 0.0
        %477 = vmatprep.subr.mxu0 0.0
        %478 = vmatpush1.msra.mxu0 0.0
        %479 = vmatprep.subr.mxu0 0.0
        %480 = vmatpush1.msra.mxu0 0.0
        %481 = vmatprep.subr.mxu0 0.0
        %482 = vmatpush1.msra.mxu0 0.0
        %483 = vmatprep.subr.mxu0 0.0
        %484 = vmatpush1.msra.mxu0 0.0
        %485 = vmatprep.subr.mxu0 0.0
        %486 = vmatpush1.msra.mxu0 0.0
        %487 = vmatprep.subr.mxu0 0.0
        %488 = vmatpush1.msra.mxu0 0.0
        %489 = vmatprep.subr.mxu0 0.0
        %490 = vmatpush1.msra.mxu0 0.0
        %491 = vmatprep.subr.mxu0 0.0
        %492 = vmatpush1.msra.mxu0 0.0
        %493 = vmatprep.subr.mxu0 0.0
        %494 = vmatpush1.msra.mxu0 0.0
        %495 = vmatprep.subr.mxu0 0.0
        %496 = vmatpush1.msra.mxu0 0.0
        %497 = vmatprep.subr.mxu0 0.0
        %498 = vmatpush1.msra.mxu0 0.0
        %499 = vmatprep.subr.mxu0 0.0
        %500 = vmatpush1.msra.mxu0 0.0
        %501 = vmatprep.subr.mxu0 0.0
        %502 = vmatpush1.msra.mxu0 0.0
        %503 = vmatprep.subr.mxu0 0.0
        %504 = vmatpush1.msra.mxu0 0.0
        %505 = vmatprep.subr.mxu0 0.0
        %506 = vmatpush1.msra.mxu0 0.0
        %507 = vmatprep.subr.mxu0 0.0
        %508 = vmatpush1.msra.mxu0 0.0
        %509 = vmatprep.subr.mxu0 0.0
        %510 = vmatpush1.msra.mxu0 0.0
        %511 = vmatprep.subr.mxu0 0.0
        %512 = vmatpush1.msra.mxu0 0.0
        %513 = vmatprep.mubr.f32.mxu0 0.0
        %514 = vmatmul.mubr.f32.gmra.mrb[0].mxu0 %v440
        %v515 = vpop.f32.mrb[0].mxu0
        %v516 = vadd.f32 0.0, %v515
        %v517 = vpop.f32.mrb[0].mxu0
        %v518 = vadd.f32 0.0, %v517
        %519 = vdwg.mxu0
        %v520 = vld [vmem:[%s5] sm:$0x1]
        %v522 = vsel %vm438, %v520, 0
        %524 = vmatprep.subr.mxu0 %v447
        %525 = vmatpush1.msra.mxu0 %v444
        %526 = vmatprep.subr.mxu0 0.0
        %527 = vmatpush1.msra.mxu0 0.0
        %528 = vmatprep.subr.mxu0 0.0
        %529 = vmatpush1.msra.mxu0 0.0
        %530 = vmatprep.subr.mxu0 0.0
        %531 = vmatpush1.msra.mxu0 0.0
        %532 = vmatprep.subr.mxu0 0.0
        %533 = vmatpush1.msra.mxu0 0.0
        %534 = vmatprep.subr.mxu0 0.0
        %535 = vmatpush1.msra.mxu0 0.0
        %536 = vmatprep.subr.mxu0 0.0
        %537 = vmatpush1.msra.mxu0 0.0
        %538 = vmatprep.subr.mxu0 0.0
        %539 = vmatpush1.msra.mxu0 0.0
        %540 = vmatprep.subr.mxu0 0.0
        %541 = vmatpush1.msra.mxu0 0.0
        %542 = vmatprep.subr.mxu0 0.0
        %543 = vmatpush1.msra.mxu0 0.0
        %544 = vmatprep.subr.mxu0 0.0
        %545 = vmatpush1.msra.mxu0 0.0
        %546 = vmatprep.subr.mxu0 0.0
        %547 = vmatpush1.msra.mxu0 0.0
        %548 = vmatprep.subr.mxu0 0.0
        %549 = vmatpush1.msra.mxu0 0.0
        %550 = vmatprep.subr.mxu0 0.0
        %551 = vmatpush1.msra.mxu0 0.0
        %552 = vmatprep.subr.mxu0 0.0
        %553 = vmatpush1.msra.mxu0 0.0
        %554 = vmatprep.subr.mxu0 0.0
        %555 = vmatpush1.msra.mxu0 0.0
        %556 = vmatprep.subr.mxu0 0.0
        %557 = vmatpush1.msra.mxu0 0.0
        %558 = vmatprep.subr.mxu0 0.0
        %559 = vmatpush1.msra.mxu0 0.0
        %560 = vmatprep.subr.mxu0 0.0
        %561 = vmatpush1.msra.mxu0 0.0
        %562 = vmatprep.subr.mxu0 0.0
        %563 = vmatpush1.msra.mxu0 0.0
        %564 = vmatprep.subr.mxu0 0.0
        %565 = vmatpush1.msra.mxu0 0.0
        %566 = vmatprep.subr.mxu0 0.0
        %567 = vmatpush1.msra.mxu0 0.0
        %568 = vmatprep.subr.mxu0 0.0
        %569 = vmatpush1.msra.mxu0 0.0
        %570 = vmatprep.subr.mxu0 0.0
        %571 = vmatpush1.msra.mxu0 0.0
        %572 = vmatprep.subr.mxu0 0.0
        %573 = vmatpush1.msra.mxu0 0.0
        %574 = vmatprep.subr.mxu0 0.0
        %575 = vmatpush1.msra.mxu0 0.0
        %576 = vmatprep.subr.mxu0 0.0
        %577 = vmatpush1.msra.mxu0 0.0
        %578 = vmatprep.subr.mxu0 0.0
        %579 = vmatpush1.msra.mxu0 0.0
        %580 = vmatprep.subr.mxu0 0.0
        %581 = vmatpush1.msra.mxu0 0.0
        %582 = vmatprep.subr.mxu0 0.0
        %583 = vmatpush1.msra.mxu0 0.0
        %584 = vmatprep.subr.mxu0 0.0
        %585 = vmatpush1.msra.mxu0 0.0
        %586 = vmatprep.subr.mxu0 0.0
        %587 = vmatpush1.msra.mxu0 0.0
        %588 = vmatprep.mubr.f32.mxu0 0.0
        %589 = vmatmul.mubr.f32.gmra.mrb[0].mxu0 %v522
        %v590 = vpop.f32.mrb[0].mxu0
        %v591 = vadd.f32 0.0, %v590
        %v592 = vpop.f32.mrb[0].mxu0
        %v593 = vadd.f32 0.0, %v592
        %594 = vdwg.mxu0
        %v595 = vld [vmem:[%s6] sm:$0xff]
        %v596 = vld [vmem:[%s6 + $0x8] sm:$0x1f]
        %vm597 = vcmask 105472
        %v599 = vsel %vm597, %v403, 0
        %v602 = vsel %vm597, %v404, 0
        %v605 = vsel %vm597, %v405, 0
        %v608 = vsel %vm597, %v406, 0
        %v611 = vsel %vm597, %v407, 0
        %v614 = vsel %vm597, %v408, 0
        %v617 = vsel %vm597, %v409, 0
        %v620 = vsel %vm597, %v410, 0
        %v623 = vsel %vm597, %v411, 0
        %v626 = vsel %vm597, %v412, 0
        %v629 = vsel %vm597, %v413, 0
        %v632 = vsel %vm597, %v414, 0
        %v635 = vsel %vm597, %v415, 0
        %v638 = vsel %vm597, %v416, 0
        %v641 = vsel %vm597, %v417, 0
        %v644 = vsel %vm597, %v418, 0
        %v647 = vsel %vm597, %v419, 0
        %v650 = vsel %vm597, %v420, 0
        %v653 = vsel %vm597, %v421, 0
        %v656 = vsel %vm597, %v422, 0
        %v659 = vsel %vm597, %v423, 0
        %v662 = vsel %vm597, %v424, 0
        %v665 = vsel %vm597, %v425, 0
        %v668 = vsel %vm597, %v426, 0
        %v671 = vsel %vm597, %v427, 0
        %v674 = vsel %vm597, %v428, 0
        %v677 = vsel %vm597, %v429, 0
        %v680 = vsel %vm597, %v430, 0
        %v683 = vsel %vm597, %v431, 0
        %v686 = vsel %vm597, %v432, 0
        %v689 = vsel %vm597, %v433, 0
        %v692 = vsel %vm597, %v434, 0
        %v695 = vsel %vm442, %v596, 0
        %697 = vmatprep.subr.mxu0 0.0
        %698 = vmatpush1.msra.mxu0 %v595
        %699 = vmatprep.subr.mxu0 0.0
        %700 = vmatpush1.msra.mxu0 %v695
        %701 = vmatprep.subr.mxu0 0.0
        %702 = vmatpush1.msra.mxu0 0.0
        %703 = vmatprep.subr.mxu0 0.0
        %704 = vmatpush1.msra.mxu0 0.0
        %705 = vmatprep.subr.mxu0 0.0
        %706 = vmatpush1.msra.mxu0 0.0
        %707 = vmatprep.subr.mxu0 0.0
        %708 = vmatpush1.msra.mxu0 0.0
        %709 = vmatprep.subr.mxu0 0.0
        %710 = vmatpush1.msra.mxu0 0.0
        %711 = vmatprep.subr.mxu0 0.0
        %712 = vmatpush1.msra.mxu0 0.0
        %713 = vmatprep.subr.mxu0 0.0
        %714 = vmatpush1.msra.mxu0 0.0
        %715 = vmatprep.subr.mxu0 0.0
        %716 = vmatpush1.msra.mxu0 0.0
        %717 = vmatprep.subr.mxu0 0.0
        %718 = vmatpush1.msra.mxu0 0.0
        %719 = vmatprep.subr.mxu0 0.0
        %720 = vmatpush1.msra.mxu0 0.0
        %721 = vmatprep.subr.mxu0 0.0
        %722 = vmatpush1.msra.mxu0 0.0
        %723 = vmatprep.subr.mxu0 0.0
        %724 = vmatpush1.msra.mxu0 0.0
        %725 = vmatprep.subr.mxu0 0.0
        %726 = vmatpush1.msra.mxu0 0.0
        %727 = vmatprep.subr.mxu0 0.0
        %728 = vmatpush1.msra.mxu0 0.0
        %729 = vmatprep.subr.mxu0 0.0
        %730 = vmatpush1.msra.mxu0 0.0
        %731 = vmatprep.subr.mxu0 0.0
        %732 = vmatpush1.msra.mxu0 0.0
        %733 = vmatprep.subr.mxu0 0.0
        %734 = vmatpush1.msra.mxu0 0.0
        %735 = vmatprep.subr.mxu0 0.0
        %736 = vmatpush1.msra.mxu0 0.0
        %737 = vmatprep.subr.mxu0 0.0
        %738 = vmatpush1.msra.mxu0 0.0
        %739 = vmatprep.subr.mxu0 0.0
        %740 = vmatpush1.msra.mxu0 0.0
        %741 = vmatprep.subr.mxu0 0.0
        %742 = vmatpush1.msra.mxu0 0.0
        %743 = vmatprep.subr.mxu0 0.0
        %744 = vmatpush1.msra.mxu0 0.0
        %745 = vmatprep.subr.mxu0 0.0
        %746 = vmatpush1.msra.mxu0 0.0
        %747 = vmatprep.subr.mxu0 0.0
        %748 = vmatpush1.msra.mxu0 0.0
        %749 = vmatprep.subr.mxu0 0.0
        %750 = vmatpush1.msra.mxu0 0.0
        %751 = vmatprep.subr.mxu0 0.0
        %752 = vmatpush1.msra.mxu0 0.0
        %753 = vmatprep.subr.mxu0 0.0
        %754 = vmatpush1.msra.mxu0 0.0
        %755 = vmatprep.subr.mxu0 0.0
        %756 = vmatpush1.msra.mxu0 0.0
        %757 = vmatprep.subr.mxu0 0.0
        %758 = vmatpush1.msra.mxu0 0.0
        %759 = vmatprep.subr.mxu0 0.0
        %760 = vmatpush1.msra.mxu0 0.0
        %761 = vmatprep.mubr.f32.mxu0 0.0
        %762 = vmatmul.mubr.f32.gmra.mrb[0].mxu0 %v599
        %v763 = vpop.f32.mrb[0].mxu0
        %v764 = vadd.f32 0.0, %v763
        %v765 = vpop.f32.mrb[0].mxu0
        %766 = vmatprep.mubr.f32.mxu0 0.0
        %767 = vmatmul.mubr.f32.gmra.mrb[0].mxu0 %v602
        %v768 = vpop.f32.mrb[0].mxu0
        %v769 = vadd.f32 0.0, %v768
        %v770 = vpop.f32.mrb[0].mxu0
        %771 = vmatprep.mubr.f32.mxu0 0.0
        %772 = vmatmul.mubr.f32.gmra.mrb[0].mxu0 %v605
        %v773 = vpop.f32.mrb[0].mxu0
        %v774 = vadd.f32 0.0, %v773
        %v775 = vpop.f32.mrb[0].mxu0
        %776 = vmatprep.mubr.f32.mxu0 0.0
        %777 = vmatmul.mubr.f32.gmra.mrb[0].mxu0 %v608
        %v778 = vpop.f32.mrb[0].mxu0
        %v779 = vadd.f32 0.0, %v778
        %v780 = vpop.f32.mrb[0].mxu0
        %781 = vmatprep.mubr.f32.mxu0 0.0
        %782 = vmatmul.mubr.f32.gmra.mrb[0].mxu0 %v611
        %v783 = vpop.f32.mrb[0].mxu0
        %v784 = vadd.f32 0.0, %v783
        %v785 = vpop.f32.mrb[0].mxu0
        %786 = vmatprep.mubr.f32.mxu0 0.0
        %787 = vmatmul.mubr.f32.gmra.mrb[0].mxu0 %v614
        %v788 = vpop.f32.mrb[0].mxu0
        %v789 = vadd.f32 0.0, %v788
        %v790 = vpop.f32.mrb[0].mxu0
        %791 = vmatprep.mubr.f32.mxu0 0.0
        %792 = vmatmul.mubr.f32.gmra.mrb[0].mxu0 %v617
        %v793 = vpop.f32.mrb[0].mxu0
        %v794 = vadd.f32 0.0, %v793
        %v795 = vpop.f32.mrb[0].mxu0
        %796 = vmatprep.mubr.f32.mxu0 0.0
        %797 = vmatmul.mubr.f32.gmra.mrb[0].mxu0 %v620
        %v798 = vpop.f32.mrb[0].mxu0
        %v799 = vadd.f32 0.0, %v798
        %v800 = vpop.f32.mrb[0].mxu0
        %801 = vmatprep.mubr.f32.mxu0 0.0
        %802 = vmatmul.mubr.f32.gmra.mrb[0].mxu0 %v623
        %v803 = vpop.f32.mrb[0].mxu0
        %v804 = vadd.f32 0.0, %v803
        %v805 = vpop.f32.mrb[0].mxu0
        %806 = vmatprep.mubr.f32.mxu0 0.0
        %807 = vmatmul.mubr.f32.gmra.mrb[0].mxu0 %v626
        %v808 = vpop.f32.mrb[0].mxu0
        %v809 = vadd.f32 0.0, %v808
        %v810 = vpop.f32.mrb[0].mxu0
        %811 = vmatprep.mubr.f32.mxu0 0.0
        %812 = vmatmul.mubr.f32.gmra.mrb[0].mxu0 %v629
        %v813 = vpop.f32.mrb[0].mxu0
        %v814 = vadd.f32 0.0, %v813
        %v815 = vpop.f32.mrb[0].mxu0
        %816 = vmatprep.mubr.f32.mxu0 0.0
        %817 = vmatmul.mubr.f32.gmra.mrb[0].mxu0 %v632
        %v818 = vpop.f32.mrb[0].mxu0
        %v819 = vadd.f32 0.0, %v818
        %v820 = vpop.f32.mrb[0].mxu0
        %821 = vmatprep.mubr.f32.mxu0 0.0
        %822 = vmatmul.mubr.f32.gmra.mrb[0].mxu0 %v635
        %v823 = vpop.f32.mrb[0].mxu0
        %v824 = vadd.f32 0.0, %v823
        %v825 = vpop.f32.mrb[0].mxu0
        %826 = vmatprep.mubr.f32.mxu0 0.0
        %827 = vmatmul.mubr.f32.gmra.mrb[0].mxu0 %v638
        %v828 = vpop.f32.mrb[0].mxu0
        %v829 = vadd.f32 0.0, %v828
        %v830 = vpop.f32.mrb[0].mxu0
        %831 = vmatprep.mubr.f32.mxu0 0.0
        %832 = vmatmul.mubr.f32.gmra.mrb[0].mxu0 %v641
        %v833 = vpop.f32.mrb[0].mxu0
        %v834 = vadd.f32 0.0, %v833
        %v835 = vpop.f32.mrb[0].mxu0
        %836 = vmatprep.mubr.f32.mxu0 0.0
        %837 = vmatmul.mubr.f32.gmra.mrb[0].mxu0 %v644
        %v838 = vpop.f32.mrb[0].mxu0
        %v839 = vadd.f32 0.0, %v838
        %v840 = vpop.f32.mrb[0].mxu0
        %841 = vmatprep.mubr.f32.mxu0 0.0
        %842 = vmatmul.mubr.f32.gmra.mrb[0].mxu0 %v647
        %v843 = vpop.f32.mrb[0].mxu0
        %v844 = vadd.f32 0.0, %v843
        %v845 = vpop.f32.mrb[0].mxu0
        %846 = vmatprep.mubr.f32.mxu0 0.0
        %847 = vmatmul.mubr.f32.gmra.mrb[0].mxu0 %v650
        %v848 = vpop.f32.mrb[0].mxu0
        %v849 = vadd.f32 0.0, %v848
        %v850 = vpop.f32.mrb[0].mxu0
        %851 = vmatprep.mubr.f32.mxu0 0.0
        %852 = vmatmul.mubr.f32.gmra.mrb[0].mxu0 %v653
        %v853 = vpop.f32.mrb[0].mxu0
        %v854 = vadd.f32 0.0, %v853
        %v855 = vpop.f32.mrb[0].mxu0
        %856 = vmatprep.mubr.f32.mxu0 0.0
        %857 = vmatmul.mubr.f32.gmra.mrb[0].mxu0 %v656
        %v858 = vpop.f32.mrb[0].mxu0
        %v859 = vadd.f32 0.0, %v858
        %v860 = vpop.f32.mrb[0].mxu0
        %861 = vmatprep.mubr.f32.mxu0 0.0
        %862 = vmatmul.mubr.f32.gmra.mrb[0].mxu0 %v659
        %v863 = vpop.f32.mrb[0].mxu0
        %v864 = vadd.f32 0.0, %v863
        %v865 = vpop.f32.mrb[0].mxu0
        %866 = vmatprep.mubr.f32.mxu0 0.0
        %867 = vmatmul.mubr.f32.gmra.mrb[0].mxu0 %v662
        %v868 = vpop.f32.mrb[0].mxu0
        %v869 = vadd.f32 0.0, %v868
        %v870 = vpop.f32.mrb[0].mxu0
        %871 = vmatprep.mubr.f32.mxu0 0.0
        %872 = vmatmul.mubr.f32.gmra.mrb[0].mxu0 %v665
        %v873 = vpop.f32.mrb[0].mxu0
        %v874 = vadd.f32 0.0, %v873
        %v875 = vpop.f32.mrb[0].mxu0
        %876 = vmatprep.mubr.f32.mxu0 0.0
        %877 = vmatmul.mubr.f32.gmra.mrb[0].mxu0 %v668
        %v878 = vpop.f32.mrb[0].mxu0
        %v879 = vadd.f32 0.0, %v878
        %v880 = vpop.f32.mrb[0].mxu0
        %881 = vmatprep.mubr.f32.mxu0 0.0
        %882 = vmatmul.mubr.f32.gmra.mrb[0].mxu0 %v671
        %v883 = vpop.f32.mrb[0].mxu0
        %v884 = vadd.f32 0.0, %v883
        %v885 = vpop.f32.mrb[0].mxu0
        %886 = vmatprep.mubr.f32.mxu0 0.0
        %887 = vmatmul.mubr.f32.gmra.mrb[0].mxu0 %v674
        %v888 = vpop.f32.mrb[0].mxu0
        %v889 = vadd.f32 0.0, %v888
        %v890 = vpop.f32.mrb[0].mxu0
        %891 = vmatprep.mubr.f32.mxu0 0.0
        %892 = vmatmul.mubr.f32.gmra.mrb[0].mxu0 %v677
        %v893 = vpop.f32.mrb[0].mxu0
        %v894 = vadd.f32 0.0, %v893
        %v895 = vpop.f32.mrb[0].mxu0
        %896 = vmatprep.mubr.f32.mxu0 0.0
        %897 = vmatmul.mubr.f32.gmra.mrb[0].mxu0 %v680
        %v898 = vpop.f32.mrb[0].mxu0
        %v899 = vadd.f32 0.0, %v898
        %v900 = vpop.f32.mrb[0].mxu0
        %901 = vmatprep.mubr.f32.mxu0 0.0
        %902 = vmatmul.mubr.f32.gmra.mrb[0].mxu0 %v683
        %v903 = vpop.f32.mrb[0].mxu0
        %v904 = vadd.f32 0.0, %v903
        %v905 = vpop.f32.mrb[0].mxu0
        %906 = vmatprep.mubr.f32.mxu0 0.0
        %907 = vmatmul.mubr.f32.gmra.mrb[0].mxu0 %v686
        %v908 = vpop.f32.mrb[0].mxu0
        %v909 = vadd.f32 0.0, %v908
        %v910 = vpop.f32.mrb[0].mxu0
        %911 = vmatprep.mubr.f32.mxu0 0.0
        %912 = vmatmul.mubr.f32.gmra.mrb[0].mxu0 %v689
        %v913 = vpop.f32.mrb[0].mxu0
        %v914 = vadd.f32 0.0, %v913
        %v915 = vpop.f32.mrb[0].mxu0
        %916 = vmatprep.mubr.f32.mxu0 0.0
        %917 = vmatmul.mubr.f32.gmra.mrb[0].mxu0 %v692
        %v918 = vpop.f32.mrb[0].mxu0
        %v919 = vadd.f32 0.0, %v918
        %v920 = vpop.f32.mrb[0].mxu0
        %921 = vdwg.mxu0
        %s922 = scalar_lea.vmem %s6, 16
        %v923 = vld [vmem:[%s922] sm:$0xff]
        %v924 = vld [vmem:[%s922 + $0x8] sm:$0x1f]
        %v926 = vsel %vm442, %v924, 0
        %928 = vmatprep.subr.mxu0 0.0
        %929 = vmatpush1.msra.mxu0 %v923
        %930 = vmatprep.subr.mxu0 0.0
        %931 = vmatpush1.msra.mxu0 %v926
        %932 = vmatprep.subr.mxu0 0.0
        %933 = vmatpush1.msra.mxu0 0.0
        %934 = vmatprep.subr.mxu0 0.0
        %935 = vmatpush1.msra.mxu0 0.0
        %936 = vmatprep.subr.mxu0 0.0
        %937 = vmatpush1.msra.mxu0 0.0
        %938 = vmatprep.subr.mxu0 0.0
        %939 = vmatpush1.msra.mxu0 0.0
        %940 = vmatprep.subr.mxu0 0.0
        %941 = vmatpush1.msra.mxu0 0.0
        %942 = vmatprep.subr.mxu0 0.0
        %943 = vmatpush1.msra.mxu0 0.0
        %944 = vmatprep.subr.mxu0 0.0
        %945 = vmatpush1.msra.mxu0 0.0
        %946 = vmatprep.subr.mxu0 0.0
        %947 = vmatpush1.msra.mxu0 0.0
        %948 = vmatprep.subr.mxu0 0.0
        %949 = vmatpush1.msra.mxu0 0.0
        %950 = vmatprep.subr.mxu0 0.0
        %951 = vmatpush1.msra.mxu0 0.0
        %952 = vmatprep.subr.mxu0 0.0
        %953 = vmatpush1.msra.mxu0 0.0
        %954 = vmatprep.subr.mxu0 0.0
        %955 = vmatpush1.msra.mxu0 0.0
        %956 = vmatprep.subr.mxu0 0.0
        %957 = vmatpush1.msra.mxu0 0.0
        %958 = vmatprep.subr.mxu0 0.0
        %959 = vmatpush1.msra.mxu0 0.0
        %960 = vmatprep.subr.mxu0 0.0
        %961 = vmatpush1.msra.mxu0 0.0
        %962 = vmatprep.subr.mxu0 0.0
        %963 = vmatpush1.msra.mxu0 0.0
        %964 = vmatprep.subr.mxu0 0.0
        %965 = vmatpush1.msra.mxu0 0.0
        %966 = vmatprep.subr.mxu0 0.0
        %967 = vmatpush1.msra.mxu0 0.0
        %968 = vmatprep.subr.mxu0 0.0
        %969 = vmatpush1.msra.mxu0 0.0
        %970 = vmatprep.subr.mxu0 0.0
        %971 = vmatpush1.msra.mxu0 0.0
        %972 = vmatprep.subr.mxu0 0.0
        %973 = vmatpush1.msra.mxu0 0.0
        %974 = vmatprep.subr.mxu0 0.0
        %975 = vmatpush1.msra.mxu0 0.0
        %976 = vmatprep.subr.mxu0 0.0
        %977 = vmatpush1.msra.mxu0 0.0
        %978 = vmatprep.subr.mxu0 0.0
        %979 = vmatpush1.msra.mxu0 0.0
        %980 = vmatprep.subr.mxu0 0.0
        %981 = vmatpush1.msra.mxu0 0.0
        %982 = vmatprep.subr.mxu0 0.0
        %983 = vmatpush1.msra.mxu0 0.0
        %984 = vmatprep.subr.mxu0 0.0
        %985 = vmatpush1.msra.mxu0 0.0
        %986 = vmatprep.subr.mxu0 0.0
        %987 = vmatpush1.msra.mxu0 0.0
        %988 = vmatprep.subr.mxu0 0.0
        %989 = vmatpush1.msra.mxu0 0.0
        %990 = vmatprep.subr.mxu0 0.0
        %991 = vmatpush1.msra.mxu0 0.0
        %992 = vmatprep.mubr.f32.mxu0 0.0
        %993 = vmatmul.mubr.f32.gmra.mrb[0].mxu0 %v599
        %v994 = vpop.f32.mrb[0].mxu0
        %v995 = vadd.f32 0.0, %v994
        %v996 = vpop.f32.mrb[0].mxu0
        %997 = vmatprep.mubr.f32.mxu0 0.0
        %998 = vmatmul.mubr.f32.gmra.mrb[0].mxu0 %v602
        %v999 = vpop.f32.mrb[0].mxu0
        %v1000 = vadd.f32 0.0, %v999
        %v1001 = vpop.f32.mrb[0].mxu0
        %1002 = vmatprep.mubr.f32.mxu0 0.0
        %1003 = vmatmul.mubr.f32.gmra.mrb[0].mxu0 %v605
        %v1004 = vpop.f32.mrb[0].mxu0
        %v1005 = vadd.f32 0.0, %v1004
        %v1006 = vpop.f32.mrb[0].mxu0
        %1007 = vmatprep.mubr.f32.mxu0 0.0
        %1008 = vmatmul.mubr.f32.gmra.mrb[0].mxu0 %v608
        %v1009 = vpop.f32.mrb[0].mxu0
        %v1010 = vadd.f32 0.0, %v1009
        %v1011 = vpop.f32.mrb[0].mxu0
        %1012 = vmatprep.mubr.f32.mxu0 0.0
        %1013 = vmatmul.mubr.f32.gmra.mrb[0].mxu0 %v611
        %v1014 = vpop.f32.mrb[0].mxu0
        %v1015 = vadd.f32 0.0, %v1014
        %v1016 = vpop.f32.mrb[0].mxu0
        %1017 = vmatprep.mubr.f32.mxu0 0.0
        %1018 = vmatmul.mubr.f32.gmra.mrb[0].mxu0 %v614
        %v1019 = vpop.f32.mrb[0].mxu0
        %v1020 = vadd.f32 0.0, %v1019
        %v1021 = vpop.f32.mrb[0].mxu0
        %1022 = vmatprep.mubr.f32.mxu0 0.0
        %1023 = vmatmul.mubr.f32.gmra.mrb[0].mxu0 %v617
        %v1024 = vpop.f32.mrb[0].mxu0
        %v1025 = vadd.f32 0.0, %v1024
        %v1026 = vpop.f32.mrb[0].mxu0
        %1027 = vmatprep.mubr.f32.mxu0 0.0
        %1028 = vmatmul.mubr.f32.gmra.mrb[0].mxu0 %v620
        %v1029 = vpop.f32.mrb[0].mxu0
        %v1030 = vadd.f32 0.0, %v1029
        %v1031 = vpop.f32.mrb[0].mxu0
        %1032 = vmatprep.mubr.f32.mxu0 0.0
        %1033 = vmatmul.mubr.f32.gmra.mrb[0].mxu0 %v623
        %v1034 = vpop.f32.mrb[0].mxu0
        %v1035 = vadd.f32 0.0, %v1034
        %v1036 = vpop.f32.mrb[0].mxu0
        %1037 = vmatprep.mubr.f32.mxu0 0.0
        %1038 = vmatmul.mubr.f32.gmra.mrb[0].mxu0 %v626
        %v1039 = vpop.f32.mrb[0].mxu0
        %v1040 = vadd.f32 0.0, %v1039
        %v1041 = vpop.f32.mrb[0].mxu0
        %1042 = vmatprep.mubr.f32.mxu0 0.0
        %1043 = vmatmul.mubr.f32.gmra.mrb[0].mxu0 %v629
        %v1044 = vpop.f32.mrb[0].mxu0
        %v1045 = vadd.f32 0.0, %v1044
        %v1046 = vpop.f32.mrb[0].mxu0
        %1047 = vmatprep.mubr.f32.mxu0 0.0
        %1048 = vmatmul.mubr.f32.gmra.mrb[0].mxu0 %v632
        %v1049 = vpop.f32.mrb[0].mxu0
        %v1050 = vadd.f32 0.0, %v1049
        %v1051 = vpop.f32.mrb[0].mxu0
        %1052 = vmatprep.mubr.f32.mxu0 0.0
        %1053 = vmatmul.mubr.f32.gmra.mrb[0].mxu0 %v635
        %v1054 = vpop.f32.mrb[0].mxu0
        %v1055 = vadd.f32 0.0, %v1054
        %v1056 = vpop.f32.mrb[0].mxu0
        %1057 = vmatprep.mubr.f32.mxu0 0.0
        %1058 = vmatmul.mubr.f32.gmra.mrb[0].mxu0 %v638
        %v1059 = vpop.f32.mrb[0].mxu0
        %v1060 = vadd.f32 0.0, %v1059
        %v1061 = vpop.f32.mrb[0].mxu0
        %1062 = vmatprep.mubr.f32.mxu0 0.0
        %1063 = vmatmul.mubr.f32.gmra.mrb[0].mxu0 %v641
        %v1064 = vpop.f32.mrb[0].mxu0
        %v1065 = vadd.f32 0.0, %v1064
        %v1066 = vpop.f32.mrb[0].mxu0
        %1067 = vmatprep.mubr.f32.mxu0 0.0
        %1068 = vmatmul.mubr.f32.gmra.mrb[0].mxu0 %v644
        %v1069 = vpop.f32.mrb[0].mxu0
        %v1070 = vadd.f32 0.0, %v1069
        %v1071 = vpop.f32.mrb[0].mxu0
        %1072 = vmatprep.mubr.f32.mxu0 0.0
        %1073 = vmatmul.mubr.f32.gmra.mrb[0].mxu0 %v647
        %v1074 = vpop.f32.mrb[0].mxu0
        %v1075 = vadd.f32 0.0, %v1074
        %v1076 = vpop.f32.mrb[0].mxu0
        %1077 = vmatprep.mubr.f32.mxu0 0.0
        %1078 = vmatmul.mubr.f32.gmra.mrb[0].mxu0 %v650
        %v1079 = vpop.f32.mrb[0].mxu0
        %v1080 = vadd.f32 0.0, %v1079
        %v1081 = vpop.f32.mrb[0].mxu0
        %1082 = vmatprep.mubr.f32.mxu0 0.0
        %1083 = vmatmul.mubr.f32.gmra.mrb[0].mxu0 %v653
        %v1084 = vpop.f32.mrb[0].mxu0
        %v1085 = vadd.f32 0.0, %v1084
        %v1086 = vpop.f32.mrb[0].mxu0
        %1087 = vmatprep.mubr.f32.mxu0 0.0
        %1088 = vmatmul.mubr.f32.gmra.mrb[0].mxu0 %v656
        %v1089 = vpop.f32.mrb[0].mxu0
        %v1090 = vadd.f32 0.0, %v1089
        %v1091 = vpop.f32.mrb[0].mxu0
        %1092 = vmatprep.mubr.f32.mxu0 0.0
        %1093 = vmatmul.mubr.f32.gmra.mrb[0].mxu0 %v659
        %v1094 = vpop.f32.mrb[0].mxu0
        %v1095 = vadd.f32 0.0, %v1094
        %v1096 = vpop.f32.mrb[0].mxu0
        %1097 = vmatprep.mubr.f32.mxu0 0.0
        %1098 = vmatmul.mubr.f32.gmra.mrb[0].mxu0 %v662
        %v1099 = vpop.f32.mrb[0].mxu0
        %v1100 = vadd.f32 0.0, %v1099
        %v1101 = vpop.f32.mrb[0].mxu0
        %1102 = vmatprep.mubr.f32.mxu0 0.0
        %1103 = vmatmul.mubr.f32.gmra.mrb[0].mxu0 %v665
        %v1104 = vpop.f32.mrb[0].mxu0
        %v1105 = vadd.f32 0.0, %v1104
        %v1106 = vpop.f32.mrb[0].mxu0
        %1107 = vmatprep.mubr.f32.mxu0 0.0
        %1108 = vmatmul.mubr.f32.gmra.mrb[0].mxu0 %v668
        %v1109 = vpop.f32.mrb[0].mxu0
        %v1110 = vadd.f32 0.0, %v1109
        %v1111 = vpop.f32.mrb[0].mxu0
        %1112 = vmatprep.mubr.f32.mxu0 0.0
        %1113 = vmatmul.mubr.f32.gmra.mrb[0].mxu0 %v671
        %v1114 = vpop.f32.mrb[0].mxu0
        %v1115 = vadd.f32 0.0, %v1114
        %v1116 = vpop.f32.mrb[0].mxu0
        %1117 = vmatprep.mubr.f32.mxu0 0.0
        %1118 = vmatmul.mubr.f32.gmra.mrb[0].mxu0 %v674
        %v1119 = vpop.f32.mrb[0].mxu0
        %v1120 = vadd.f32 0.0, %v1119
        %v1121 = vpop.f32.mrb[0].mxu0
        %1122 = vmatprep.mubr.f32.mxu0 0.0
        %1123 = vmatmul.mubr.f32.gmra.mrb[0].mxu0 %v677
        %v1124 = vpop.f32.mrb[0].mxu0
        %v1125 = vadd.f32 0.0, %v1124
        %v1126 = vpop.f32.mrb[0].mxu0
        %1127 = vmatprep.mubr.f32.mxu0 0.0
        %1128 = vmatmul.mubr.f32.gmra.mrb[0].mxu0 %v680
        %v1129 = vpop.f32.mrb[0].mxu0
        %v1130 = vadd.f32 0.0, %v1129
        %v1131 = vpop.f32.mrb[0].mxu0
        %1132 = vmatprep.mubr.f32.mxu0 0.0
        %1133 = vmatmul.mubr.f32.gmra.mrb[0].mxu0 %v683
        %v1134 = vpop.f32.mrb[0].mxu0
        %v1135 = vadd.f32 0.0, %v1134
        %v1136 = vpop.f32.mrb[0].mxu0
        %1137 = vmatprep.mubr.f32.mxu0 0.0
        %1138 = vmatmul.mubr.f32.gmra.mrb[0].mxu0 %v686
        %v1139 = vpop.f32.mrb[0].mxu0
        %v1140 = vadd.f32 0.0, %v1139
        %v1141 = vpop.f32.mrb[0].mxu0
        %1142 = vmatprep.mubr.f32.mxu0 0.0
        %1143 = vmatmul.mubr.f32.gmra.mrb[0].mxu0 %v689
        %v1144 = vpop.f32.mrb[0].mxu0
        %v1145 = vadd.f32 0.0, %v1144
        %v1146 = vpop.f32.mrb[0].mxu0
        %1147 = vmatprep.mubr.f32.mxu0 0.0
        %1148 = vmatmul.mubr.f32.gmra.mrb[0].mxu0 %v692
        %v1149 = vpop.f32.mrb[0].mxu0
        %v1150 = vadd.f32 0.0, %v1149
        %v1151 = vpop.f32.mrb[0].mxu0
        %1152 = vdwg.mxu0
        %s1153 = scalar_lea.vmem %s6, 32
        %v1154 = vld [vmem:[%s1153] sm:$0xff]
        %v1155 = vld [vmem:[%s1153 + $0x8] sm:$0x1f]
        %v1157 = vsel %vm442, %v1155, 0
        %1159 = vmatprep.subr.mxu0 0.0
        %1160 = vmatpush1.msra.mxu0 %v1154
        %1161 = vmatprep.subr.mxu0 0.0
        %1162 = vmatpush1.msra.mxu0 %v1157
        %1163 = vmatprep.subr.mxu0 0.0
        %1164 = vmatpush1.msra.mxu0 0.0
        %1165 = vmatprep.subr.mxu0 0.0
        %1166 = vmatpush1.msra.mxu0 0.0
        %1167 = vmatprep.subr.mxu0 0.0
        %1168 = vmatpush1.msra.mxu0 0.0
        %1169 = vmatprep.subr.mxu0 0.0
        %1170 = vmatpush1.msra.mxu0 0.0
        %1171 = vmatprep.subr.mxu0 0.0
        %1172 = vmatpush1.msra.mxu0 0.0
        %1173 = vmatprep.subr.mxu0 0.0
        %1174 = vmatpush1.msra.mxu0 0.0
        %1175 = vmatprep.subr.mxu0 0.0
        %1176 = vmatpush1.msra.mxu0 0.0
        %1177 = vmatprep.subr.mxu0 0.0
        %1178 = vmatpush1.msra.mxu0 0.0
        %1179 = vmatprep.subr.mxu0 0.0
        %1180 = vmatpush1.msra.mxu0 0.0
        %1181 = vmatprep.subr.mxu0 0.0
        %1182 = vmatpush1.msra.mxu0 0.0
        %1183 = vmatprep.subr.mxu0 0.0
        %1184 = vmatpush1.msra.mxu0 0.0
        %1185 = vmatprep.subr.mxu0 0.0
        %1186 = vmatpush1.msra.mxu0 0.0
        %1187 = vmatprep.subr.mxu0 0.0
        %1188 = vmatpush1.msra.mxu0 0.0
        %1189 = vmatprep.subr.mxu0 0.0
        %1190 = vmatpush1.msra.mxu0 0.0
        %1191 = vmatprep.subr.mxu0 0.0
        %1192 = vmatpush1.msra.mxu0 0.0
        %1193 = vmatprep.subr.mxu0 0.0
        %1194 = vmatpush1.msra.mxu0 0.0
        %1195 = vmatprep.subr.mxu0 0.0
        %1196 = vmatpush1.msra.mxu0 0.0
        %1197 = vmatprep.subr.mxu0 0.0
        %1198 = vmatpush1.msra.mxu0 0.0
        %1199 = vmatprep.subr.mxu0 0.0
        %1200 = vmatpush1.msra.mxu0 0.0
        %1201 = vmatprep.subr.mxu0 0.0
        %1202 = vmatpush1.msra.mxu0 0.0
        %1203 = vmatprep.subr.mxu0 0.0
        %1204 = vmatpush1.msra.mxu0 0.0
        %1205 = vmatprep.subr.mxu0 0.0
        %1206 = vmatpush1.msra.mxu0 0.0
        %1207 = vmatprep.subr.mxu0 0.0
        %1208 = vmatpush1.msra.mxu0 0.0
        %1209 = vmatprep.subr.mxu0 0.0
        %1210 = vmatpush1.msra.mxu0 0.0
        %1211 = vmatprep.subr.mxu0 0.0
        %1212 = vmatpush1.msra.mxu0 0.0
        %1213 = vmatprep.subr.mxu0 0.0
        %1214 = vmatpush1.msra.mxu0 0.0
        %1215 = vmatprep.subr.mxu0 0.0
        %1216 = vmatpush1.msra.mxu0 0.0
        %1217 = vmatprep.subr.mxu0 0.0
        %1218 = vmatpush1.msra.mxu0 0.0
        %1219 = vmatprep.subr.mxu0 0.0
        %1220 = vmatpush1.msra.mxu0 0.0
        %1221 = vmatprep.subr.mxu0 0.0
        %1222 = vmatpush1.msra.mxu0 0.0
        %1223 = vmatprep.mubr.f32.mxu0 0.0
        %1224 = vmatmul.mubr.f32.gmra.mrb[0].mxu0 %v599
        %v1225 = vpop.f32.mrb[0].mxu0
        %v1226 = vadd.f32 0.0, %v1225
        %v1227 = vpop.f32.mrb[0].mxu0
        %1228 = vmatprep.mubr.f32.mxu0 0.0
        %1229 = vmatmul.mubr.f32.gmra.mrb[0].mxu0 %v602
        %v1230 = vpop.f32.mrb[0].mxu0
        %v1231 = vadd.f32 0.0, %v1230
        %v1232 = vpop.f32.mrb[0].mxu0
        %1233 = vmatprep.mubr.f32.mxu0 0.0
        %1234 = vmatmul.mubr.f32.gmra.mrb[0].mxu0 %v605
        %v1235 = vpop.f32.mrb[0].mxu0
        %v1236 = vadd.f32 0.0, %v1235
        %v1237 = vpop.f32.mrb[0].mxu0
        %1238 = vmatprep.mubr.f32.mxu0 0.0
        %1239 = vmatmul.mubr.f32.gmra.mrb[0].mxu0 %v608
        %v1240 = vpop.f32.mrb[0].mxu0
        %v1241 = vadd.f32 0.0, %v1240
        %v1242 = vpop.f32.mrb[0].mxu0
        %1243 = vmatprep.mubr.f32.mxu0 0.0
        %1244 = vmatmul.mubr.f32.gmra.mrb[0].mxu0 %v611
        %v1245 = vpop.f32.mrb[0].mxu0
        %v1246 = vadd.f32 0.0, %v1245
        %v1247 = vpop.f32.mrb[0].mxu0
        %1248 = vmatprep.mubr.f32.mxu0 0.0
        %1249 = vmatmul.mubr.f32.gmra.mrb[0].mxu0 %v614
        %v1250 = vpop.f32.mrb[0].mxu0
        %v1251 = vadd.f32 0.0, %v1250
        %v1252 = vpop.f32.mrb[0].mxu0
        %1253 = vmatprep.mubr.f32.mxu0 0.0
        %1254 = vmatmul.mubr.f32.gmra.mrb[0].mxu0 %v617
        %v1255 = vpop.f32.mrb[0].mxu0
        %v1256 = vadd.f32 0.0, %v1255
        %v1257 = vpop.f32.mrb[0].mxu0
        %1258 = vmatprep.mubr.f32.mxu0 0.0
        %1259 = vmatmul.mubr.f32.gmra.mrb[0].mxu0 %v620
        %v1260 = vpop.f32.mrb[0].mxu0
        %v1261 = vadd.f32 0.0, %v1260
        %v1262 = vpop.f32.mrb[0].mxu0
        %1263 = vmatprep.mubr.f32.mxu0 0.0
        %1264 = vmatmul.mubr.f32.gmra.mrb[0].mxu0 %v623
        %v1265 = vpop.f32.mrb[0].mxu0
        %v1266 = vadd.f32 0.0, %v1265
        %v1267 = vpop.f32.mrb[0].mxu0
        %1268 = vmatprep.mubr.f32.mxu0 0.0
        %1269 = vmatmul.mubr.f32.gmra.mrb[0].mxu0 %v626
        %v1270 = vpop.f32.mrb[0].mxu0
        %v1271 = vadd.f32 0.0, %v1270
        %v1272 = vpop.f32.mrb[0].mxu0
        %1273 = vmatprep.mubr.f32.mxu0 0.0
        %1274 = vmatmul.mubr.f32.gmra.mrb[0].mxu0 %v629
        %v1275 = vpop.f32.mrb[0].mxu0
        %v1276 = vadd.f32 0.0, %v1275
        %v1277 = vpop.f32.mrb[0].mxu0
        %1278 = vmatprep.mubr.f32.mxu0 0.0
        %1279 = vmatmul.mubr.f32.gmra.mrb[0].mxu0 %v632
        %v1280 = vpop.f32.mrb[0].mxu0
        %v1281 = vadd.f32 0.0, %v1280
        %v1282 = vpop.f32.mrb[0].mxu0
        %1283 = vmatprep.mubr.f32.mxu0 0.0
        %1284 = vmatmul.mubr.f32.gmra.mrb[0].mxu0 %v635
        %v1285 = vpop.f32.mrb[0].mxu0
        %v1286 = vadd.f32 0.0, %v1285
        %v1287 = vpop.f32.mrb[0].mxu0
        %1288 = vmatprep.mubr.f32.mxu0 0.0
        %1289 = vmatmul.mubr.f32.gmra.mrb[0].mxu0 %v638
        %v1290 = vpop.f32.mrb[0].mxu0
        %v1291 = vadd.f32 0.0, %v1290
        %v1292 = vpop.f32.mrb[0].mxu0
        %1293 = vmatprep.mubr.f32.mxu0 0.0
        %1294 = vmatmul.mubr.f32.gmra.mrb[0].mxu0 %v641
        %v1295 = vpop.f32.mrb[0].mxu0
        %v1296 = vadd.f32 0.0, %v1295
        %v1297 = vpop.f32.mrb[0].mxu0
        %1298 = vmatprep.mubr.f32.mxu0 0.0
        %1299 = vmatmul.mubr.f32.gmra.mrb[0].mxu0 %v644
        %v1300 = vpop.f32.mrb[0].mxu0
        %v1301 = vadd.f32 0.0, %v1300
        %v1302 = vpop.f32.mrb[0].mxu0
        %1303 = vmatprep.mubr.f32.mxu0 0.0
        %1304 = vmatmul.mubr.f32.gmra.mrb[0].mxu0 %v647
        %v1305 = vpop.f32.mrb[0].mxu0
        %v1306 = vadd.f32 0.0, %v1305
        %v1307 = vpop.f32.mrb[0].mxu0
        %1308 = vmatprep.mubr.f32.mxu0 0.0
        %1309 = vmatmul.mubr.f32.gmra.mrb[0].mxu0 %v650
        %v1310 = vpop.f32.mrb[0].mxu0
        %v1311 = vadd.f32 0.0, %v1310
        %v1312 = vpop.f32.mrb[0].mxu0
        %1313 = vmatprep.mubr.f32.mxu0 0.0
        %1314 = vmatmul.mubr.f32.gmra.mrb[0].mxu0 %v653
        %v1315 = vpop.f32.mrb[0].mxu0
        %v1316 = vadd.f32 0.0, %v1315
        %v1317 = vpop.f32.mrb[0].mxu0
        %1318 = vmatprep.mubr.f32.mxu0 0.0
        %1319 = vmatmul.mubr.f32.gmra.mrb[0].mxu0 %v656
        %v1320 = vpop.f32.mrb[0].mxu0
        %v1321 = vadd.f32 0.0, %v1320
        %v1322 = vpop.f32.mrb[0].mxu0
        %1323 = vmatprep.mubr.f32.mxu0 0.0
        %1324 = vmatmul.mubr.f32.gmra.mrb[0].mxu0 %v659
        %v1325 = vpop.f32.mrb[0].mxu0
        %v1326 = vadd.f32 0.0, %v1325
        %v1327 = vpop.f32.mrb[0].mxu0
        %1328 = vmatprep.mubr.f32.mxu0 0.0
        %1329 = vmatmul.mubr.f32.gmra.mrb[0].mxu0 %v662
        %v1330 = vpop.f32.mrb[0].mxu0
        %v1331 = vadd.f32 0.0, %v1330
        %v1332 = vpop.f32.mrb[0].mxu0
        %1333 = vmatprep.mubr.f32.mxu0 0.0
        %1334 = vmatmul.mubr.f32.gmra.mrb[0].mxu0 %v665
        %v1335 = vpop.f32.mrb[0].mxu0
        %v1336 = vadd.f32 0.0, %v1335
        %v1337 = vpop.f32.mrb[0].mxu0
        %1338 = vmatprep.mubr.f32.mxu0 0.0
        %1339 = vmatmul.mubr.f32.gmra.mrb[0].mxu0 %v668
        %v1340 = vpop.f32.mrb[0].mxu0
        %v1341 = vadd.f32 0.0, %v1340
        %v1342 = vpop.f32.mrb[0].mxu0
        %1343 = vmatprep.mubr.f32.mxu0 0.0
        %1344 = vmatmul.mubr.f32.gmra.mrb[0].mxu0 %v671
        %v1345 = vpop.f32.mrb[0].mxu0
        %v1346 = vadd.f32 0.0, %v1345
        %v1347 = vpop.f32.mrb[0].mxu0
        %1348 = vmatprep.mubr.f32.mxu0 0.0
        %1349 = vmatmul.mubr.f32.gmra.mrb[0].mxu0 %v674
        %v1350 = vpop.f32.mrb[0].mxu0
        %v1351 = vadd.f32 0.0, %v1350
        %v1352 = vpop.f32.mrb[0].mxu0
        %1353 = vmatprep.mubr.f32.mxu0 0.0
        %1354 = vmatmul.mubr.f32.gmra.mrb[0].mxu0 %v677
        %v1355 = vpop.f32.mrb[0].mxu0
        %v1356 = vadd.f32 0.0, %v1355
        %v1357 = vpop.f32.mrb[0].mxu0
        %1358 = vmatprep.mubr.f32.mxu0 0.0
        %1359 = vmatmul.mubr.f32.gmra.mrb[0].mxu0 %v680
        %v1360 = vpop.f32.mrb[0].mxu0
        %v1361 = vadd.f32 0.0, %v1360
        %v1362 = vpop.f32.mrb[0].mxu0
        %1363 = vmatprep.mubr.f32.mxu0 0.0
        %1364 = vmatmul.mubr.f32.gmra.mrb[0].mxu0 %v683
        %v1365 = vpop.f32.mrb[0].mxu0
        %v1366 = vadd.f32 0.0, %v1365
        %v1367 = vpop.f32.mrb[0].mxu0
        %1368 = vmatprep.mubr.f32.mxu0 0.0
        %1369 = vmatmul.mubr.f32.gmra.mrb[0].mxu0 %v686
        %v1370 = vpop.f32.mrb[0].mxu0
        %v1371 = vadd.f32 0.0, %v1370
        %v1372 = vpop.f32.mrb[0].mxu0
        %1373 = vmatprep.mubr.f32.mxu0 0.0
        %1374 = vmatmul.mubr.f32.gmra.mrb[0].mxu0 %v689
        %v1375 = vpop.f32.mrb[0].mxu0
        %v1376 = vadd.f32 0.0, %v1375
        %v1377 = vpop.f32.mrb[0].mxu0
        %1378 = vmatprep.mubr.f32.mxu0 0.0
        %1379 = vmatmul.mubr.f32.gmra.mrb[0].mxu0 %v692
        %v1380 = vpop.f32.mrb[0].mxu0
        %v1381 = vadd.f32 0.0, %v1380
        %v1382 = vpop.f32.mrb[0].mxu0
        %1383 = vdwg.mxu0
        %v1384 = vld [vmem:[%s7] sm:$0x1]
        %v1386 = vsel %vm597, %v1384, 0
        %v1389 = vsel %vm442, %v401, 0
        %v1392 = vsel %vm442, %v402, 0
        %1394 = vmatprep.subr.mxu0 %v400
        %1395 = vmatpush1.msra.mxu0 %v399
        %1396 = vmatprep.subr.mxu0 %v1392
        %1397 = vmatpush1.msra.mxu0 %v1389
        %1398 = vmatprep.subr.mxu0 0.0
        %1399 = vmatpush1.msra.mxu0 0.0
        %1400 = vmatprep.subr.mxu0 0.0
        %1401 = vmatpush1.msra.mxu0 0.0
        %1402 = vmatprep.subr.mxu0 0.0
        %1403 = vmatpush1.msra.mxu0 0.0
        %1404 = vmatprep.subr.mxu0 0.0
        %1405 = vmatpush1.msra.mxu0 0.0
        %1406 = vmatprep.subr.mxu0 0.0
        %1407 = vmatpush1.msra.mxu0 0.0
        %1408 = vmatprep.subr.mxu0 0.0
        %1409 = vmatpush1.msra.mxu0 0.0
        %1410 = vmatprep.subr.mxu0 0.0
        %1411 = vmatpush1.msra.mxu0 0.0
        %1412 = vmatprep.subr.mxu0 0.0
        %1413 = vmatpush1.msra.mxu0 0.0
        %1414 = vmatprep.subr.mxu0 0.0
        %1415 = vmatpush1.msra.mxu0 0.0
        %1416 = vmatprep.subr.mxu0 0.0
        %1417 = vmatpush1.msra.mxu0 0.0
        %1418 = vmatprep.subr.mxu0 0.0
        %1419 = vmatpush1.msra.mxu0 0.0
        %1420 = vmatprep.subr.mxu0 0.0
        %1421 = vmatpush1.msra.mxu0 0.0
        %1422 = vmatprep.subr.mxu0 0.0
        %1423 = vmatpush1.msra.mxu0 0.0
        %1424 = vmatprep.subr.mxu0 0.0
        %1425 = vmatpush1.msra.mxu0 0.0
        %1426 = vmatprep.subr.mxu0 0.0
        %1427 = vmatpush1.msra.mxu0 0.0
        %1428 = vmatprep.subr.mxu0 0.0
        %1429 = vmatpush1.msra.mxu0 0.0
        %1430 = vmatprep.subr.mxu0 0.0
        %1431 = vmatpush1.msra.mxu0 0.0
        %1432 = vmatprep.subr.mxu0 0.0
        %1433 = vmatpush1.msra.mxu0 0.0
        %1434 = vmatprep.subr.mxu0 0.0
        %1435 = vmatpush1.msra.mxu0 0.0
        %1436 = vmatprep.subr.mxu0 0.0
        %1437 = vmatpush1.msra.mxu0 0.0
        %1438 = vmatprep.subr.mxu0 0.0
        %1439 = vmatpush1.msra.mxu0 0.0
        %1440 = vmatprep.subr.mxu0 0.0
        %1441 = vmatpush1.msra.mxu0 0.0
        %1442 = vmatprep.subr.mxu0 0.0
        %1443 = vmatpush1.msra.mxu0 0.0
        %1444 = vmatprep.subr.mxu0 0.0
        %1445 = vmatpush1.msra.mxu0 0.0
        %1446 = vmatprep.subr.mxu0 0.0
        %1447 = vmatpush1.msra.mxu0 0.0
        %1448 = vmatprep.subr.mxu0 0.0
        %1449 = vmatpush1.msra.mxu0 0.0
        %1450 = vmatprep.subr.mxu0 0.0
        %1451 = vmatpush1.msra.mxu0 0.0
        %1452 = vmatprep.subr.mxu0 0.0
        %1453 = vmatpush1.msra.mxu0 0.0
        %1454 = vmatprep.subr.mxu0 0.0
        %1455 = vmatpush1.msra.mxu0 0.0
        %1456 = vmatprep.subr.mxu0 0.0
        %1457 = vmatpush1.msra.mxu0 0.0
        %1458 = vmatprep.mubr.f32.mxu0 0.0
        %1459 = vmatmul.mubr.f32.gmra.mrb[0].mxu0 %v1386
        %v1460 = vpop.f32.mrb[0].mxu0
        %v1461 = vadd.f32 0.0, %v1460
        %v1462 = vpop.f32.mrb[0].mxu0
        %v1463 = vadd.f32 0.0, %v1462
        %1464 = vdwg.mxu0
        %s1465 = scalar_lea.vmem %s7, 1
        %v1466 = vld [vmem:[%s1465] sm:$0x1]
        %v1468 = vsel %vm597, %v1466, 0
        %1470 = vmatprep.subr.mxu0 %v400
        %1471 = vmatpush1.msra.mxu0 %v399
        %1472 = vmatprep.subr.mxu0 %v1392
        %1473 = vmatpush1.msra.mxu0 %v1389
        %1474 = vmatprep.subr.mxu0 0.0
        %1475 = vmatpush1.msra.mxu0 0.0
        %1476 = vmatprep.subr.mxu0 0.0
        %1477 = vmatpush1.msra.mxu0 0.0
        %1478 = vmatprep.subr.mxu0 0.0
        %1479 = vmatpush1.msra.mxu0 0.0
        %1480 = vmatprep.subr.mxu0 0.0
        %1481 = vmatpush1.msra.mxu0 0.0
        %1482 = vmatprep.subr.mxu0 0.0
        %1483 = vmatpush1.msra.mxu0 0.0
        %1484 = vmatprep.subr.mxu0 0.0
        %1485 = vmatpush1.msra.mxu0 0.0
        %1486 = vmatprep.subr.mxu0 0.0
        %1487 = vmatpush1.msra.mxu0 0.0
        %1488 = vmatprep.subr.mxu0 0.0
        %1489 = vmatpush1.msra.mxu0 0.0
        %1490 = vmatprep.subr.mxu0 0.0
        %1491 = vmatpush1.msra.mxu0 0.0
        %1492 = vmatprep.subr.mxu0 0.0
        %1493 = vmatpush1.msra.mxu0 0.0
        %1494 = vmatprep.subr.mxu0 0.0
        %1495 = vmatpush1.msra.mxu0 0.0
        %1496 = vmatprep.subr.mxu0 0.0
        %1497 = vmatpush1.msra.mxu0 0.0
        %1498 = vmatprep.subr.mxu0 0.0
        %1499 = vmatpush1.msra.mxu0 0.0
        %1500 = vmatprep.subr.mxu0 0.0
        %1501 = vmatpush1.msra.mxu0 0.0
        %1502 = vmatprep.subr.mxu0 0.0
        %1503 = vmatpush1.msra.mxu0 0.0
        %1504 = vmatprep.subr.mxu0 0.0
        %1505 = vmatpush1.msra.mxu0 0.0
        %1506 = vmatprep.subr.mxu0 0.0
        %1507 = vmatpush1.msra.mxu0 0.0
        %1508 = vmatprep.subr.mxu0 0.0
        %1509 = vmatpush1.msra.mxu0 0.0
        %1510 = vmatprep.subr.mxu0 0.0
        %1511 = vmatpush1.msra.mxu0 0.0
        %1512 = vmatprep.subr.mxu0 0.0
        %1513 = vmatpush1.msra.mxu0 0.0
        %1514 = vmatprep.subr.mxu0 0.0
        %1515 = vmatpush1.msra.mxu0 0.0
        %1516 = vmatprep.subr.mxu0 0.0
        %1517 = vmatpush1.msra.mxu0 0.0
        %1518 = vmatprep.subr.mxu0 0.0
        %1519 = vmatpush1.msra.mxu0 0.0
        %1520 = vmatprep.subr.mxu0 0.0
        %1521 = vmatpush1.msra.mxu0 0.0
        %1522 = vmatprep.subr.mxu0 0.0
        %1523 = vmatpush1.msra.mxu0 0.0
        %1524 = vmatprep.subr.mxu0 0.0
        %1525 = vmatpush1.msra.mxu0 0.0
        %1526 = vmatprep.subr.mxu0 0.0
        %1527 = vmatpush1.msra.mxu0 0.0
        %1528 = vmatprep.subr.mxu0 0.0
        %1529 = vmatpush1.msra.mxu0 0.0
        %1530 = vmatprep.subr.mxu0 0.0
        %1531 = vmatpush1.msra.mxu0 0.0
        %1532 = vmatprep.subr.mxu0 0.0
        %1533 = vmatpush1.msra.mxu0 0.0
        %1534 = vmatprep.mubr.f32.mxu0 0.0
        %1535 = vmatmul.mubr.f32.gmra.mrb[0].mxu0 %v1468
        %v1536 = vpop.f32.mrb[0].mxu0
        %v1537 = vadd.f32 0.0, %v1536
        %v1538 = vpop.f32.mrb[0].mxu0
        %v1539 = vadd.f32 0.0, %v1538
        %1540 = vdwg.mxu0
        %s1541 = scalar_lea.vmem %s7, 2
        %v1542 = vld [vmem:[%s1541] sm:$0x1]
        %v1544 = vsel %vm597, %v1542, 0
        %1546 = vmatprep.subr.mxu0 %v400
        %1547 = vmatpush1.msra.mxu0 %v399
        %1548 = vmatprep.subr.mxu0 %v1392
        %1549 = vmatpush1.msra.mxu0 %v1389
        %1550 = vmatprep.subr.mxu0 0.0
        %1551 = vmatpush1.msra.mxu0 0.0
        %1552 = vmatprep.subr.mxu0 0.0
        %1553 = vmatpush1.msra.mxu0 0.0
        %1554 = vmatprep.subr.mxu0 0.0
        %1555 = vmatpush1.msra.mxu0 0.0
        %1556 = vmatprep.subr.mxu0 0.0
        %1557 = vmatpush1.msra.mxu0 0.0
        %1558 = vmatprep.subr.mxu0 0.0
        %1559 = vmatpush1.msra.mxu0 0.0
        %1560 = vmatprep.subr.mxu0 0.0
        %1561 = vmatpush1.msra.mxu0 0.0
        %1562 = vmatprep.subr.mxu0 0.0
        %1563 = vmatpush1.msra.mxu0 0.0
        %1564 = vmatprep.subr.mxu0 0.0
        %1565 = vmatpush1.msra.mxu0 0.0
        %1566 = vmatprep.subr.mxu0 0.0
        %1567 = vmatpush1.msra.mxu0 0.0
        %1568 = vmatprep.subr.mxu0 0.0
        %1569 = vmatpush1.msra.mxu0 0.0
        %1570 = vmatprep.subr.mxu0 0.0
        %1571 = vmatpush1.msra.mxu0 0.0
        %1572 = vmatprep.subr.mxu0 0.0
        %1573 = vmatpush1.msra.mxu0 0.0
        %1574 = vmatprep.subr.mxu0 0.0
        %1575 = vmatpush1.msra.mxu0 0.0
        %1576 = vmatprep.subr.mxu0 0.0
        %1577 = vmatpush1.msra.mxu0 0.0
        %1578 = vmatprep.subr.mxu0 0.0
        %1579 = vmatpush1.msra.mxu0 0.0
        %1580 = vmatprep.subr.mxu0 0.0
        %1581 = vmatpush1.msra.mxu0 0.0
        %1582 = vmatprep.subr.mxu0 0.0
        %1583 = vmatpush1.msra.mxu0 0.0
        %1584 = vmatprep.subr.mxu0 0.0
        %1585 = vmatpush1.msra.mxu0 0.0
        %1586 = vmatprep.subr.mxu0 0.0
        %1587 = vmatpush1.msra.mxu0 0.0
        %1588 = vmatprep.subr.mxu0 0.0
        %1589 = vmatpush1.msra.mxu0 0.0
        %1590 = vmatprep.subr.mxu0 0.0
        %1591 = vmatpush1.msra.mxu0 0.0
        %1592 = vmatprep.subr.mxu0 0.0
        %1593 = vmatpush1.msra.mxu0 0.0
        %1594 = vmatprep.subr.mxu0 0.0
        %1595 = vmatpush1.msra.mxu0 0.0
        %1596 = vmatprep.subr.mxu0 0.0
        %1597 = vmatpush1.msra.mxu0 0.0
        %1598 = vmatprep.subr.mxu0 0.0
        %1599 = vmatpush1.msra.mxu0 0.0
        %1600 = vmatprep.subr.mxu0 0.0
        %1601 = vmatpush1.msra.mxu0 0.0
        %1602 = vmatprep.subr.mxu0 0.0
        %1603 = vmatpush1.msra.mxu0 0.0
        %1604 = vmatprep.subr.mxu0 0.0
        %1605 = vmatpush1.msra.mxu0 0.0
        %1606 = vmatprep.subr.mxu0 0.0
        %1607 = vmatpush1.msra.mxu0 0.0
        %1608 = vmatprep.subr.mxu0 0.0
        %1609 = vmatpush1.msra.mxu0 0.0
        %1610 = vmatprep.mubr.f32.mxu0 0.0
        %1611 = vmatmul.mubr.f32.gmra.mrb[0].mxu0 %v1544
        %v1612 = vpop.f32.mrb[0].mxu0
        %v1613 = vadd.f32 0.0, %v1612
        %v1614 = vpop.f32.mrb[0].mxu0
        %v1615 = vadd.f32 0.0, %v1614
        %1616 = vdwg.mxu0
        %vm1617 = vcmask 64512
        %v1619 = vsel %vm1617, %v764, 0
        %v1622 = vsel %vm1617, %v769, 0
        %v1625 = vsel %vm1617, %v774, 0
        %v1628 = vsel %vm1617, %v779, 0
        %v1631 = vsel %vm1617, %v784, 0
        %v1634 = vsel %vm1617, %v789, 0
        %v1637 = vsel %vm1617, %v794, 0
        %v1640 = vsel %vm1617, %v799, 0
        %v1643 = vsel %vm1617, %v804, 0
        %v1646 = vsel %vm1617, %v809, 0
        %v1649 = vsel %vm1617, %v814, 0
        %v1652 = vsel %vm1617, %v819, 0
        %v1655 = vsel %vm1617, %v824, 0
        %v1658 = vsel %vm1617, %v829, 0
        %v1661 = vsel %vm1617, %v834, 0
        %v1664 = vsel %vm1617, %v839, 0
        %v1667 = vsel %vm1617, %v844, 0
        %v1670 = vsel %vm1617, %v849, 0
        %v1673 = vsel %vm1617, %v854, 0
        %v1676 = vsel %vm1617, %v859, 0
        %v1679 = vsel %vm1617, %v864, 0
        %v1682 = vsel %vm1617, %v869, 0
        %v1685 = vsel %vm1617, %v874, 0
        %v1688 = vsel %vm1617, %v879, 0
        %v1691 = vsel %vm1617, %v884, 0
        %v1694 = vsel %vm1617, %v889, 0
        %v1697 = vsel %vm1617, %v894, 0
        %v1700 = vsel %vm1617, %v899, 0
        %v1703 = vsel %vm1617, %v904, 0
        %v1706 = vsel %vm1617, %v909, 0
        %v1709 = vsel %vm1617, %v914, 0
        %v1712 = vsel %vm1617, %v919, 0
        %v1715 = vsel %vm1617, %v995, 0
        %v1718 = vsel %vm1617, %v1000, 0
        %v1721 = vsel %vm1617, %v1005, 0
        %v1724 = vsel %vm1617, %v1010, 0
        %v1727 = vsel %vm1617, %v1015, 0
        %v1730 = vsel %vm1617, %v1020, 0
        %v1733 = vsel %vm1617, %v1025, 0
        %v1736 = vsel %vm1617, %v1030, 0
        %v1739 = vsel %vm1617, %v1035, 0
        %v1742 = vsel %vm1617, %v1040, 0
        %v1745 = vsel %vm1617, %v1045, 0
        %v1748 = vsel %vm1617, %v1050, 0
        %v1751 = vsel %vm1617, %v1055, 0
        %v1754 = vsel %vm1617, %v1060, 0
        %v1757 = vsel %vm1617, %v1065, 0
        %v1760 = vsel %vm1617, %v1070, 0
        %v1763 = vsel %vm1617, %v1075, 0
        %v1766 = vsel %vm1617, %v1080, 0
        %v1769 = vsel %vm1617, %v1085, 0
        %v1772 = vsel %vm1617, %v1090, 0
        %v1775 = vsel %vm1617, %v1095, 0
        %v1778 = vsel %vm1617, %v1100, 0
        %v1781 = vsel %vm1617, %v1105, 0
        %v1784 = vsel %vm1617, %v1110, 0
        %v1787 = vsel %vm1617, %v1115, 0
        %v1790 = vsel %vm1617, %v1120, 0
        %v1793 = vsel %vm1617, %v1125, 0
        %v1796 = vsel %vm1617, %v1130, 0
        %v1799 = vsel %vm1617, %v1135, 0
        %v1802 = vsel %vm1617, %v1140, 0
        %v1805 = vsel %vm1617, %v1145, 0
        %v1808 = vsel %vm1617, %v1150, 0
        %v1811 = vsel %vm1617, %v1226, 0
        %v1814 = vsel %vm1617, %v1231, 0
        %v1817 = vsel %vm1617, %v1236, 0
        %v1820 = vsel %vm1617, %v1241, 0
        %v1823 = vsel %vm1617, %v1246, 0
        %v1826 = vsel %vm1617, %v1251, 0
        %v1829 = vsel %vm1617, %v1256, 0
        %v1832 = vsel %vm1617, %v1261, 0
        %v1835 = vsel %vm1617, %v1266, 0
        %v1838 = vsel %vm1617, %v1271, 0
        %v1841 = vsel %vm1617, %v1276, 0
        %v1844 = vsel %vm1617, %v1281, 0
        %v1847 = vsel %vm1617, %v1286, 0
        %v1850 = vsel %vm1617, %v1291, 0
        %v1853 = vsel %vm1617, %v1296, 0
        %v1856 = vsel %vm1617, %v1301, 0
        %v1859 = vsel %vm1617, %v1306, 0
        %v1862 = vsel %vm1617, %v1311, 0
        %v1865 = vsel %vm1617, %v1316, 0
        %v1868 = vsel %vm1617, %v1321, 0
        %v1871 = vsel %vm1617, %v1326, 0
        %v1874 = vsel %vm1617, %v1331, 0
        %v1877 = vsel %vm1617, %v1336, 0
        %v1880 = vsel %vm1617, %v1341, 0
        %v1883 = vsel %vm1617, %v1346, 0
        %v1886 = vsel %vm1617, %v1351, 0
        %v1889 = vsel %vm1617, %v1356, 0
        %v1892 = vsel %vm1617, %v1361, 0
        %v1895 = vsel %vm1617, %v1366, 0
        %v1898 = vsel %vm1617, %v1371, 0
        %v1901 = vsel %vm1617, %v1376, 0
        %v1904 = vsel %vm1617, %v1381, 0
        %1906 = vmatprep.subr.mxu0 %v518
        %1907 = vmatpush1.msra.mxu0 %v516
        %1908 = vmatprep.subr.mxu0 0.0
        %1909 = vmatpush1.msra.mxu0 0.0
        %1910 = vmatprep.subr.mxu0 0.0
        %1911 = vmatpush1.msra.mxu0 0.0
        %1912 = vmatprep.subr.mxu0 0.0
        %1913 = vmatpush1.msra.mxu0 0.0
        %1914 = vmatprep.subr.mxu0 0.0
        %1915 = vmatpush1.msra.mxu0 0.0
        %1916 = vmatprep.subr.mxu0 0.0
        %1917 = vmatpush1.msra.mxu0 0.0
        %1918 = vmatprep.subr.mxu0 0.0
        %1919 = vmatpush1.msra.mxu0 0.0
        %1920 = vmatprep.subr.mxu0 0.0
        %1921 = vmatpush1.msra.mxu0 0.0
        %1922 = vmatprep.subr.mxu0 0.0
        %1923 = vmatpush1.msra.mxu0 0.0
        %1924 = vmatprep.subr.mxu0 0.0
        %1925 = vmatpush1.msra.mxu0 0.0
        %1926 = vmatprep.subr.mxu0 0.0
        %1927 = vmatpush1.msra.mxu0 0.0
        %1928 = vmatprep.subr.mxu0 0.0
        %1929 = vmatpush1.msra.mxu0 0.0
        %1930 = vmatprep.subr.mxu0 0.0
        %1931 = vmatpush1.msra.mxu0 0.0
        %1932 = vmatprep.subr.mxu0 0.0
        %1933 = vmatpush1.msra.mxu0 0.0
        %1934 = vmatprep.subr.mxu0 0.0
        %1935 = vmatpush1.msra.mxu0 0.0
        %1936 = vmatprep.subr.mxu0 0.0
        %1937 = vmatpush1.msra.mxu0 0.0
        %1938 = vmatprep.subr.mxu0 0.0
        %1939 = vmatpush1.msra.mxu0 0.0
        %1940 = vmatprep.subr.mxu0 0.0
        %1941 = vmatpush1.msra.mxu0 0.0
        %1942 = vmatprep.subr.mxu0 0.0
        %1943 = vmatpush1.msra.mxu0 0.0
        %1944 = vmatprep.subr.mxu0 0.0
        %1945 = vmatpush1.msra.mxu0 0.0
        %1946 = vmatprep.subr.mxu0 0.0
        %1947 = vmatpush1.msra.mxu0 0.0
        %1948 = vmatprep.subr.mxu0 0.0
        %1949 = vmatpush1.msra.mxu0 0.0
        %1950 = vmatprep.subr.mxu0 0.0
        %1951 = vmatpush1.msra.mxu0 0.0
        %1952 = vmatprep.subr.mxu0 0.0
        %1953 = vmatpush1.msra.mxu0 0.0
        %1954 = vmatprep.subr.mxu0 0.0
        %1955 = vmatpush1.msra.mxu0 0.0
        %1956 = vmatprep.subr.mxu0 0.0
        %1957 = vmatpush1.msra.mxu0 0.0
        %1958 = vmatprep.subr.mxu0 0.0
        %1959 = vmatpush1.msra.mxu0 0.0
        %1960 = vmatprep.subr.mxu0 0.0
        %1961 = vmatpush1.msra.mxu0 0.0
        %1962 = vmatprep.subr.mxu0 0.0
        %1963 = vmatpush1.msra.mxu0 0.0
        %1964 = vmatprep.subr.mxu0 0.0
        %1965 = vmatpush1.msra.mxu0 0.0
        %1966 = vmatprep.subr.mxu0 0.0
        %1967 = vmatpush1.msra.mxu0 0.0
        %1968 = vmatprep.subr.mxu0 0.0
        %1969 = vmatpush1.msra.mxu0 0.0
        %1970 = vmatprep.mubr.f32.mxu0 0.0
        %1971 = vmatmul.mubr.f32.gmra.mrb[0].mxu0 %v1619
        %v1972 = vpop.f32.mrb[0].mxu0
        %v1973 = vadd.f32 0.0, %v1972
        %v1974 = vpop.f32.mrb[0].mxu0
        %v1975 = vadd.f32 0.0, %v1974
        %1976 = vmatprep.mubr.f32.mxu0 0.0
        %1977 = vmatmul.mubr.f32.gmra.mrb[0].mxu0 %v1622
        %v1978 = vpop.f32.mrb[0].mxu0
        %v1979 = vadd.f32 0.0, %v1978
        %v1980 = vpop.f32.mrb[0].mxu0
        %v1981 = vadd.f32 0.0, %v1980
        %1982 = vmatprep.mubr.f32.mxu0 0.0
        %1983 = vmatmul.mubr.f32.gmra.mrb[0].mxu0 %v1625
        %v1984 = vpop.f32.mrb[0].mxu0
        %v1985 = vadd.f32 0.0, %v1984
        %v1986 = vpop.f32.mrb[0].mxu0
        %v1987 = vadd.f32 0.0, %v1986
        %1988 = vmatprep.mubr.f32.mxu0 0.0
        %1989 = vmatmul.mubr.f32.gmra.mrb[0].mxu0 %v1628
        %v1990 = vpop.f32.mrb[0].mxu0
        %v1991 = vadd.f32 0.0, %v1990
        %v1992 = vpop.f32.mrb[0].mxu0
        %v1993 = vadd.f32 0.0, %v1992
        %1994 = vmatprep.mubr.f32.mxu0 0.0
        %1995 = vmatmul.mubr.f32.gmra.mrb[0].mxu0 %v1631
        %v1996 = vpop.f32.mrb[0].mxu0
        %v1997 = vadd.f32 0.0, %v1996
        %v1998 = vpop.f32.mrb[0].mxu0
        %v1999 = vadd.f32 0.0, %v1998
        %2000 = vmatprep.mubr.f32.mxu0 0.0
        %2001 = vmatmul.mubr.f32.gmra.mrb[0].mxu0 %v1634
        %v2002 = vpop.f32.mrb[0].mxu0
        %v2003 = vadd.f32 0.0, %v2002
        %v2004 = vpop.f32.mrb[0].mxu0
        %v2005 = vadd.f32 0.0, %v2004
        %2006 = vmatprep.mubr.f32.mxu0 0.0
        %2007 = vmatmul.mubr.f32.gmra.mrb[0].mxu0 %v1637
        %v2008 = vpop.f32.mrb[0].mxu0
        %v2009 = vadd.f32 0.0, %v2008
        %v2010 = vpop.f32.mrb[0].mxu0
        %v2011 = vadd.f32 0.0, %v2010
        %2012 = vmatprep.mubr.f32.mxu0 0.0
        %2013 = vmatmul.mubr.f32.gmra.mrb[0].mxu0 %v1640
        %v2014 = vpop.f32.mrb[0].mxu0
        %v2015 = vadd.f32 0.0, %v2014
        %v2016 = vpop.f32.mrb[0].mxu0
        %v2017 = vadd.f32 0.0, %v2016
        %2018 = vmatprep.mubr.f32.mxu0 0.0
        %2019 = vmatmul.mubr.f32.gmra.mrb[0].mxu0 %v1643
        %v2020 = vpop.f32.mrb[0].mxu0
        %v2021 = vadd.f32 0.0, %v2020
        %v2022 = vpop.f32.mrb[0].mxu0
        %v2023 = vadd.f32 0.0, %v2022
        %2024 = vmatprep.mubr.f32.mxu0 0.0
        %2025 = vmatmul.mubr.f32.gmra.mrb[0].mxu0 %v1646
        %v2026 = vpop.f32.mrb[0].mxu0
        %v2027 = vadd.f32 0.0, %v2026
        %v2028 = vpop.f32.mrb[0].mxu0
        %v2029 = vadd.f32 0.0, %v2028
        %2030 = vmatprep.mubr.f32.mxu0 0.0
        %2031 = vmatmul.mubr.f32.gmra.mrb[0].mxu0 %v1649
        %v2032 = vpop.f32.mrb[0].mxu0
        %v2033 = vadd.f32 0.0, %v2032
        %v2034 = vpop.f32.mrb[0].mxu0
        %v2035 = vadd.f32 0.0, %v2034
        %2036 = vmatprep.mubr.f32.mxu0 0.0
        %2037 = vmatmul.mubr.f32.gmra.mrb[0].mxu0 %v1652
        %v2038 = vpop.f32.mrb[0].mxu0
        %v2039 = vadd.f32 0.0, %v2038
        %v2040 = vpop.f32.mrb[0].mxu0
        %v2041 = vadd.f32 0.0, %v2040
        %2042 = vmatprep.mubr.f32.mxu0 0.0
        %2043 = vmatmul.mubr.f32.gmra.mrb[0].mxu0 %v1655
        %v2044 = vpop.f32.mrb[0].mxu0
        %v2045 = vadd.f32 0.0, %v2044
        %v2046 = vpop.f32.mrb[0].mxu0
        %v2047 = vadd.f32 0.0, %v2046
        %2048 = vmatprep.mubr.f32.mxu0 0.0
        %2049 = vmatmul.mubr.f32.gmra.mrb[0].mxu0 %v1658
        %v2050 = vpop.f32.mrb[0].mxu0
        %v2051 = vadd.f32 0.0, %v2050
        %v2052 = vpop.f32.mrb[0].mxu0
        %v2053 = vadd.f32 0.0, %v2052
        %2054 = vmatprep.mubr.f32.mxu0 0.0
        %2055 = vmatmul.mubr.f32.gmra.mrb[0].mxu0 %v1661
        %v2056 = vpop.f32.mrb[0].mxu0
        %v2057 = vadd.f32 0.0, %v2056
        %v2058 = vpop.f32.mrb[0].mxu0
        %v2059 = vadd.f32 0.0, %v2058
        %2060 = vmatprep.mubr.f32.mxu0 0.0
        %2061 = vmatmul.mubr.f32.gmra.mrb[0].mxu0 %v1664
        %v2062 = vpop.f32.mrb[0].mxu0
        %v2063 = vadd.f32 0.0, %v2062
        %v2064 = vpop.f32.mrb[0].mxu0
        %v2065 = vadd.f32 0.0, %v2064
        %2066 = vmatprep.mubr.f32.mxu0 0.0
        %2067 = vmatmul.mubr.f32.gmra.mrb[0].mxu0 %v1667
        %v2068 = vpop.f32.mrb[0].mxu0
        %v2069 = vadd.f32 0.0, %v2068
        %v2070 = vpop.f32.mrb[0].mxu0
        %v2071 = vadd.f32 0.0, %v2070
        %2072 = vmatprep.mubr.f32.mxu0 0.0
        %2073 = vmatmul.mubr.f32.gmra.mrb[0].mxu0 %v1670
        %v2074 = vpop.f32.mrb[0].mxu0
        %v2075 = vadd.f32 0.0, %v2074
        %v2076 = vpop.f32.mrb[0].mxu0
        %v2077 = vadd.f32 0.0, %v2076
        %2078 = vmatprep.mubr.f32.mxu0 0.0
        %2079 = vmatmul.mubr.f32.gmra.mrb[0].mxu0 %v1673
        %v2080 = vpop.f32.mrb[0].mxu0
        %v2081 = vadd.f32 0.0, %v2080
        %v2082 = vpop.f32.mrb[0].mxu0
        %v2083 = vadd.f32 0.0, %v2082
        %2084 = vmatprep.mubr.f32.mxu0 0.0
        %2085 = vmatmul.mubr.f32.gmra.mrb[0].mxu0 %v1676
        %v2086 = vpop.f32.mrb[0].mxu0
        %v2087 = vadd.f32 0.0, %v2086
        %v2088 = vpop.f32.mrb[0].mxu0
        %v2089 = vadd.f32 0.0, %v2088
        %2090 = vmatprep.mubr.f32.mxu0 0.0
        %2091 = vmatmul.mubr.f32.gmra.mrb[0].mxu0 %v1679
        %v2092 = vpop.f32.mrb[0].mxu0
        %v2093 = vadd.f32 0.0, %v2092
        %v2094 = vpop.f32.mrb[0].mxu0
        %v2095 = vadd.f32 0.0, %v2094
        %2096 = vmatprep.mubr.f32.mxu0 0.0
        %2097 = vmatmul.mubr.f32.gmra.mrb[0].mxu0 %v1682
        %v2098 = vpop.f32.mrb[0].mxu0
        %v2099 = vadd.f32 0.0, %v2098
        %v2100 = vpop.f32.mrb[0].mxu0
        %v2101 = vadd.f32 0.0, %v2100
        %2102 = vmatprep.mubr.f32.mxu0 0.0
        %2103 = vmatmul.mubr.f32.gmra.mrb[0].mxu0 %v1685
        %v2104 = vpop.f32.mrb[0].mxu0
        %v2105 = vadd.f32 0.0, %v2104
        %v2106 = vpop.f32.mrb[0].mxu0
        %v2107 = vadd.f32 0.0, %v2106
        %2108 = vmatprep.mubr.f32.mxu0 0.0
        %2109 = vmatmul.mubr.f32.gmra.mrb[0].mxu0 %v1688
        %v2110 = vpop.f32.mrb[0].mxu0
        %v2111 = vadd.f32 0.0, %v2110
        %v2112 = vpop.f32.mrb[0].mxu0
        %v2113 = vadd.f32 0.0, %v2112
        %2114 = vmatprep.mubr.f32.mxu0 0.0
        %2115 = vmatmul.mubr.f32.gmra.mrb[0].mxu0 %v1691
        %v2116 = vpop.f32.mrb[0].mxu0
        %v2117 = vadd.f32 0.0, %v2116
        %v2118 = vpop.f32.mrb[0].mxu0
        %v2119 = vadd.f32 0.0, %v2118
        %2120 = vmatprep.mubr.f32.mxu0 0.0
        %2121 = vmatmul.mubr.f32.gmra.mrb[0].mxu0 %v1694
        %v2122 = vpop.f32.mrb[0].mxu0
        %v2123 = vadd.f32 0.0, %v2122
        %v2124 = vpop.f32.mrb[0].mxu0
        %v2125 = vadd.f32 0.0, %v2124
        %2126 = vmatprep.mubr.f32.mxu0 0.0
        %2127 = vmatmul.mubr.f32.gmra.mrb[0].mxu0 %v1697
        %v2128 = vpop.f32.mrb[0].mxu0
        %v2129 = vadd.f32 0.0, %v2128
        %v2130 = vpop.f32.mrb[0].mxu0
        %v2131 = vadd.f32 0.0, %v2130
        %2132 = vmatprep.mubr.f32.mxu0 0.0
        %2133 = vmatmul.mubr.f32.gmra.mrb[0].mxu0 %v1700
        %v2134 = vpop.f32.mrb[0].mxu0
        %v2135 = vadd.f32 0.0, %v2134
        %v2136 = vpop.f32.mrb[0].mxu0
        %v2137 = vadd.f32 0.0, %v2136
        %2138 = vmatprep.mubr.f32.mxu0 0.0
        %2139 = vmatmul.mubr.f32.gmra.mrb[0].mxu0 %v1703
        %v2140 = vpop.f32.mrb[0].mxu0
        %v2141 = vadd.f32 0.0, %v2140
        %v2142 = vpop.f32.mrb[0].mxu0
        %v2143 = vadd.f32 0.0, %v2142
        %2144 = vmatprep.mubr.f32.mxu0 0.0
        %2145 = vmatmul.mubr.f32.gmra.mrb[0].mxu0 %v1706
        %v2146 = vpop.f32.mrb[0].mxu0
        %v2147 = vadd.f32 0.0, %v2146
        %v2148 = vpop.f32.mrb[0].mxu0
        %v2149 = vadd.f32 0.0, %v2148
        %2150 = vmatprep.mubr.f32.mxu0 0.0
        %2151 = vmatmul.mubr.f32.gmra.mrb[0].mxu0 %v1709
        %v2152 = vpop.f32.mrb[0].mxu0
        %v2153 = vadd.f32 0.0, %v2152
        %v2154 = vpop.f32.mrb[0].mxu0
        %v2155 = vadd.f32 0.0, %v2154
        %2156 = vmatprep.mubr.f32.mxu0 0.0
        %2157 = vmatmul.mubr.f32.gmra.mrb[0].mxu0 %v1712
        %v2158 = vpop.f32.mrb[0].mxu0
        %v2159 = vadd.f32 0.0, %v2158
        %v2160 = vpop.f32.mrb[0].mxu0
        %v2161 = vadd.f32 0.0, %v2160
        %2162 = vmatprep.mubr.f32.mxu0 0.0
        %2163 = vmatmul.mubr.f32.gmra.mrb[0].mxu0 %v1715
        %v2164 = vpop.f32.mrb[0].mxu0
        %v2165 = vadd.f32 0.0, %v2164
        %v2166 = vpop.f32.mrb[0].mxu0
        %v2167 = vadd.f32 0.0, %v2166
        %2168 = vmatprep.mubr.f32.mxu0 0.0
        %2169 = vmatmul.mubr.f32.gmra.mrb[0].mxu0 %v1718
        %v2170 = vpop.f32.mrb[0].mxu0
        %v2171 = vadd.f32 0.0, %v2170
        %v2172 = vpop.f32.mrb[0].mxu0
        %v2173 = vadd.f32 0.0, %v2172
        %2174 = vmatprep.mubr.f32.mxu0 0.0
        %2175 = vmatmul.mubr.f32.gmra.mrb[0].mxu0 %v1721
        %v2176 = vpop.f32.mrb[0].mxu0
        %v2177 = vadd.f32 0.0, %v2176
        %v2178 = vpop.f32.mrb[0].mxu0
        %v2179 = vadd.f32 0.0, %v2178
        %2180 = vmatprep.mubr.f32.mxu0 0.0
        %2181 = vmatmul.mubr.f32.gmra.mrb[0].mxu0 %v1724
        %v2182 = vpop.f32.mrb[0].mxu0
        %v2183 = vadd.f32 0.0, %v2182
        %v2184 = vpop.f32.mrb[0].mxu0
        %v2185 = vadd.f32 0.0, %v2184
        %2186 = vmatprep.mubr.f32.mxu0 0.0
        %2187 = vmatmul.mubr.f32.gmra.mrb[0].mxu0 %v1727
        %v2188 = vpop.f32.mrb[0].mxu0
        %v2189 = vadd.f32 0.0, %v2188
        %v2190 = vpop.f32.mrb[0].mxu0
        %v2191 = vadd.f32 0.0, %v2190
        %2192 = vmatprep.mubr.f32.mxu0 0.0
        %2193 = vmatmul.mubr.f32.gmra.mrb[0].mxu0 %v1730
        %v2194 = vpop.f32.mrb[0].mxu0
        %v2195 = vadd.f32 0.0, %v2194
        %v2196 = vpop.f32.mrb[0].mxu0
        %v2197 = vadd.f32 0.0, %v2196
        %2198 = vmatprep.mubr.f32.mxu0 0.0
        %2199 = vmatmul.mubr.f32.gmra.mrb[0].mxu0 %v1733
        %v2200 = vpop.f32.mrb[0].mxu0
        %v2201 = vadd.f32 0.0, %v2200
        %v2202 = vpop.f32.mrb[0].mxu0
        %v2203 = vadd.f32 0.0, %v2202
        %2204 = vmatprep.mubr.f32.mxu0 0.0
        %2205 = vmatmul.mubr.f32.gmra.mrb[0].mxu0 %v1736
        %v2206 = vpop.f32.mrb[0].mxu0
        %v2207 = vadd.f32 0.0, %v2206
        %v2208 = vpop.f32.mrb[0].mxu0
        %v2209 = vadd.f32 0.0, %v2208
        %2210 = vmatprep.mubr.f32.mxu0 0.0
        %2211 = vmatmul.mubr.f32.gmra.mrb[0].mxu0 %v1739
        %v2212 = vpop.f32.mrb[0].mxu0
        %v2213 = vadd.f32 0.0, %v2212
        %v2214 = vpop.f32.mrb[0].mxu0
        %v2215 = vadd.f32 0.0, %v2214
        %2216 = vmatprep.mubr.f32.mxu0 0.0
        %2217 = vmatmul.mubr.f32.gmra.mrb[0].mxu0 %v1742
        %v2218 = vpop.f32.mrb[0].mxu0
        %v2219 = vadd.f32 0.0, %v2218
        %v2220 = vpop.f32.mrb[0].mxu0
        %v2221 = vadd.f32 0.0, %v2220
        %2222 = vmatprep.mubr.f32.mxu0 0.0
        %2223 = vmatmul.mubr.f32.gmra.mrb[0].mxu0 %v1745
        %v2224 = vpop.f32.mrb[0].mxu0
        %v2225 = vadd.f32 0.0, %v2224
        %v2226 = vpop.f32.mrb[0].mxu0
        %v2227 = vadd.f32 0.0, %v2226
        %2228 = vmatprep.mubr.f32.mxu0 0.0
        %2229 = vmatmul.mubr.f32.gmra.mrb[0].mxu0 %v1748
        %v2230 = vpop.f32.mrb[0].mxu0
        %v2231 = vadd.f32 0.0, %v2230
        %v2232 = vpop.f32.mrb[0].mxu0
        %v2233 = vadd.f32 0.0, %v2232
        %2234 = vmatprep.mubr.f32.mxu0 0.0
        %2235 = vmatmul.mubr.f32.gmra.mrb[0].mxu0 %v1751
        %v2236 = vpop.f32.mrb[0].mxu0
        %v2237 = vadd.f32 0.0, %v2236
        %v2238 = vpop.f32.mrb[0].mxu0
        %v2239 = vadd.f32 0.0, %v2238
        %2240 = vmatprep.mubr.f32.mxu0 0.0
        %2241 = vmatmul.mubr.f32.gmra.mrb[0].mxu0 %v1754
        %v2242 = vpop.f32.mrb[0].mxu0
        %v2243 = vadd.f32 0.0, %v2242
        %v2244 = vpop.f32.mrb[0].mxu0
        %v2245 = vadd.f32 0.0, %v2244
        %2246 = vmatprep.mubr.f32.mxu0 0.0
        %2247 = vmatmul.mubr.f32.gmra.mrb[0].mxu0 %v1757
        %v2248 = vpop.f32.mrb[0].mxu0
        %v2249 = vadd.f32 0.0, %v2248
        %v2250 = vpop.f32.mrb[0].mxu0
        %v2251 = vadd.f32 0.0, %v2250
        %2252 = vmatprep.mubr.f32.mxu0 0.0
        %2253 = vmatmul.mubr.f32.gmra.mrb[0].mxu0 %v1760
        %v2254 = vpop.f32.mrb[0].mxu0
        %v2255 = vadd.f32 0.0, %v2254
        %v2256 = vpop.f32.mrb[0].mxu0
        %v2257 = vadd.f32 0.0, %v2256
        %2258 = vmatprep.mubr.f32.mxu0 0.0
        %2259 = vmatmul.mubr.f32.gmra.mrb[0].mxu0 %v1763
        %v2260 = vpop.f32.mrb[0].mxu0
        %v2261 = vadd.f32 0.0, %v2260
        %v2262 = vpop.f32.mrb[0].mxu0
        %v2263 = vadd.f32 0.0, %v2262
        %2264 = vmatprep.mubr.f32.mxu0 0.0
        %2265 = vmatmul.mubr.f32.gmra.mrb[0].mxu0 %v1766
        %v2266 = vpop.f32.mrb[0].mxu0
        %v2267 = vadd.f32 0.0, %v2266
        %v2268 = vpop.f32.mrb[0].mxu0
        %v2269 = vadd.f32 0.0, %v2268
        %2270 = vmatprep.mubr.f32.mxu0 0.0
        %2271 = vmatmul.mubr.f32.gmra.mrb[0].mxu0 %v1769
        %v2272 = vpop.f32.mrb[0].mxu0
        %v2273 = vadd.f32 0.0, %v2272
        %v2274 = vpop.f32.mrb[0].mxu0
        %v2275 = vadd.f32 0.0, %v2274
        %2276 = vmatprep.mubr.f32.mxu0 0.0
        %2277 = vmatmul.mubr.f32.gmra.mrb[0].mxu0 %v1772
        %v2278 = vpop.f32.mrb[0].mxu0
        %v2279 = vadd.f32 0.0, %v2278
        %v2280 = vpop.f32.mrb[0].mxu0
        %v2281 = vadd.f32 0.0, %v2280
        %2282 = vmatprep.mubr.f32.mxu0 0.0
        %2283 = vmatmul.mubr.f32.gmra.mrb[0].mxu0 %v1775
        %v2284 = vpop.f32.mrb[0].mxu0
        %v2285 = vadd.f32 0.0, %v2284
        %v2286 = vpop.f32.mrb[0].mxu0
        %v2287 = vadd.f32 0.0, %v2286
        %2288 = vmatprep.mubr.f32.mxu0 0.0
        %2289 = vmatmul.mubr.f32.gmra.mrb[0].mxu0 %v1778
        %v2290 = vpop.f32.mrb[0].mxu0
        %v2291 = vadd.f32 0.0, %v2290
        %v2292 = vpop.f32.mrb[0].mxu0
        %v2293 = vadd.f32 0.0, %v2292
        %2294 = vmatprep.mubr.f32.mxu0 0.0
        %2295 = vmatmul.mubr.f32.gmra.mrb[0].mxu0 %v1781
        %v2296 = vpop.f32.mrb[0].mxu0
        %v2297 = vadd.f32 0.0, %v2296
        %v2298 = vpop.f32.mrb[0].mxu0
        %v2299 = vadd.f32 0.0, %v2298
        %2300 = vmatprep.mubr.f32.mxu0 0.0
        %2301 = vmatmul.mubr.f32.gmra.mrb[0].mxu0 %v1784
        %v2302 = vpop.f32.mrb[0].mxu0
        %v2303 = vadd.f32 0.0, %v2302
        %v2304 = vpop.f32.mrb[0].mxu0
        %v2305 = vadd.f32 0.0, %v2304
        %2306 = vmatprep.mubr.f32.mxu0 0.0
        %2307 = vmatmul.mubr.f32.gmra.mrb[0].mxu0 %v1787
        %v2308 = vpop.f32.mrb[0].mxu0
        %v2309 = vadd.f32 0.0, %v2308
        %v2310 = vpop.f32.mrb[0].mxu0
        %v2311 = vadd.f32 0.0, %v2310
        %2312 = vmatprep.mubr.f32.mxu0 0.0
        %2313 = vmatmul.mubr.f32.gmra.mrb[0].mxu0 %v1790
        %v2314 = vpop.f32.mrb[0].mxu0
        %v2315 = vadd.f32 0.0, %v2314
        %v2316 = vpop.f32.mrb[0].mxu0
        %v2317 = vadd.f32 0.0, %v2316
        %2318 = vmatprep.mubr.f32.mxu0 0.0
        %2319 = vmatmul.mubr.f32.gmra.mrb[0].mxu0 %v1793
        %v2320 = vpop.f32.mrb[0].mxu0
        %v2321 = vadd.f32 0.0, %v2320
        %v2322 = vpop.f32.mrb[0].mxu0
        %v2323 = vadd.f32 0.0, %v2322
        %2324 = vmatprep.mubr.f32.mxu0 0.0
        %2325 = vmatmul.mubr.f32.gmra.mrb[0].mxu0 %v1796
        %v2326 = vpop.f32.mrb[0].mxu0
        %v2327 = vadd.f32 0.0, %v2326
        %v2328 = vpop.f32.mrb[0].mxu0
        %v2329 = vadd.f32 0.0, %v2328
        %2330 = vmatprep.mubr.f32.mxu0 0.0
        %2331 = vmatmul.mubr.f32.gmra.mrb[0].mxu0 %v1799
        %v2332 = vpop.f32.mrb[0].mxu0
        %v2333 = vadd.f32 0.0, %v2332
        %v2334 = vpop.f32.mrb[0].mxu0
        %v2335 = vadd.f32 0.0, %v2334
        %2336 = vmatprep.mubr.f32.mxu0 0.0
        %2337 = vmatmul.mubr.f32.gmra.mrb[0].mxu0 %v1802
        %v2338 = vpop.f32.mrb[0].mxu0
        %v2339 = vadd.f32 0.0, %v2338
        %v2340 = vpop.f32.mrb[0].mxu0
        %v2341 = vadd.f32 0.0, %v2340
        %2342 = vmatprep.mubr.f32.mxu0 0.0
        %2343 = vmatmul.mubr.f32.gmra.mrb[0].mxu0 %v1805
        %v2344 = vpop.f32.mrb[0].mxu0
        %v2345 = vadd.f32 0.0, %v2344
        %v2346 = vpop.f32.mrb[0].mxu0
        %v2347 = vadd.f32 0.0, %v2346
        %2348 = vmatprep.mubr.f32.mxu0 0.0
        %2349 = vmatmul.mubr.f32.gmra.mrb[0].mxu0 %v1808
        %v2350 = vpop.f32.mrb[0].mxu0
        %v2351 = vadd.f32 0.0, %v2350
        %v2352 = vpop.f32.mrb[0].mxu0
        %v2353 = vadd.f32 0.0, %v2352
        %2354 = vmatprep.mubr.f32.mxu0 0.0
        %2355 = vmatmul.mubr.f32.gmra.mrb[0].mxu0 %v1811
        %v2356 = vpop.f32.mrb[0].mxu0
        %v2357 = vadd.f32 0.0, %v2356
        %v2358 = vpop.f32.mrb[0].mxu0
        %v2359 = vadd.f32 0.0, %v2358
        %2360 = vmatprep.mubr.f32.mxu0 0.0
        %2361 = vmatmul.mubr.f32.gmra.mrb[0].mxu0 %v1814
        %v2362 = vpop.f32.mrb[0].mxu0
        %v2363 = vadd.f32 0.0, %v2362
        %v2364 = vpop.f32.mrb[0].mxu0
        %v2365 = vadd.f32 0.0, %v2364
        %2366 = vmatprep.mubr.f32.mxu0 0.0
        %2367 = vmatmul.mubr.f32.gmra.mrb[0].mxu0 %v1817
        %v2368 = vpop.f32.mrb[0].mxu0
        %v2369 = vadd.f32 0.0, %v2368
        %v2370 = vpop.f32.mrb[0].mxu0
        %v2371 = vadd.f32 0.0, %v2370
        %2372 = vmatprep.mubr.f32.mxu0 0.0
        %2373 = vmatmul.mubr.f32.gmra.mrb[0].mxu0 %v1820
        %v2374 = vpop.f32.mrb[0].mxu0
        %v2375 = vadd.f32 0.0, %v2374
        %v2376 = vpop.f32.mrb[0].mxu0
        %v2377 = vadd.f32 0.0, %v2376
        %2378 = vmatprep.mubr.f32.mxu0 0.0
        %2379 = vmatmul.mubr.f32.gmra.mrb[0].mxu0 %v1823
        %v2380 = vpop.f32.mrb[0].mxu0
        %v2381 = vadd.f32 0.0, %v2380
        %v2382 = vpop.f32.mrb[0].mxu0
        %v2383 = vadd.f32 0.0, %v2382
        %2384 = vmatprep.mubr.f32.mxu0 0.0
        %2385 = vmatmul.mubr.f32.gmra.mrb[0].mxu0 %v1826
        %v2386 = vpop.f32.mrb[0].mxu0
        %v2387 = vadd.f32 0.0, %v2386
        %v2388 = vpop.f32.mrb[0].mxu0
        %v2389 = vadd.f32 0.0, %v2388
        %2390 = vmatprep.mubr.f32.mxu0 0.0
        %2391 = vmatmul.mubr.f32.gmra.mrb[0].mxu0 %v1829
        %v2392 = vpop.f32.mrb[0].mxu0
        %v2393 = vadd.f32 0.0, %v2392
        %v2394 = vpop.f32.mrb[0].mxu0
        %v2395 = vadd.f32 0.0, %v2394
        %2396 = vmatprep.mubr.f32.mxu0 0.0
        %2397 = vmatmul.mubr.f32.gmra.mrb[0].mxu0 %v1832
        %v2398 = vpop.f32.mrb[0].mxu0
        %v2399 = vadd.f32 0.0, %v2398
        %v2400 = vpop.f32.mrb[0].mxu0
        %v2401 = vadd.f32 0.0, %v2400
        %2402 = vmatprep.mubr.f32.mxu0 0.0
        %2403 = vmatmul.mubr.f32.gmra.mrb[0].mxu0 %v1835
        %v2404 = vpop.f32.mrb[0].mxu0
        %v2405 = vadd.f32 0.0, %v2404
        %v2406 = vpop.f32.mrb[0].mxu0
        %v2407 = vadd.f32 0.0, %v2406
        %2408 = vmatprep.mubr.f32.mxu0 0.0
        %2409 = vmatmul.mubr.f32.gmra.mrb[0].mxu0 %v1838
        %v2410 = vpop.f32.mrb[0].mxu0
        %v2411 = vadd.f32 0.0, %v2410
        %v2412 = vpop.f32.mrb[0].mxu0
        %v2413 = vadd.f32 0.0, %v2412
        %2414 = vmatprep.mubr.f32.mxu0 0.0
        %2415 = vmatmul.mubr.f32.gmra.mrb[0].mxu0 %v1841
        %v2416 = vpop.f32.mrb[0].mxu0
        %v2417 = vadd.f32 0.0, %v2416
        %v2418 = vpop.f32.mrb[0].mxu0
        %v2419 = vadd.f32 0.0, %v2418
        %2420 = vmatprep.mubr.f32.mxu0 0.0
        %2421 = vmatmul.mubr.f32.gmra.mrb[0].mxu0 %v1844
        %v2422 = vpop.f32.mrb[0].mxu0
        %v2423 = vadd.f32 0.0, %v2422
        %v2424 = vpop.f32.mrb[0].mxu0
        %v2425 = vadd.f32 0.0, %v2424
        %2426 = vmatprep.mubr.f32.mxu0 0.0
        %2427 = vmatmul.mubr.f32.gmra.mrb[0].mxu0 %v1847
        %v2428 = vpop.f32.mrb[0].mxu0
        %v2429 = vadd.f32 0.0, %v2428
        %v2430 = vpop.f32.mrb[0].mxu0
        %v2431 = vadd.f32 0.0, %v2430
        %2432 = vmatprep.mubr.f32.mxu0 0.0
        %2433 = vmatmul.mubr.f32.gmra.mrb[0].mxu0 %v1850
        %v2434 = vpop.f32.mrb[0].mxu0
        %v2435 = vadd.f32 0.0, %v2434
        %v2436 = vpop.f32.mrb[0].mxu0
        %v2437 = vadd.f32 0.0, %v2436
        %2438 = vmatprep.mubr.f32.mxu0 0.0
        %2439 = vmatmul.mubr.f32.gmra.mrb[0].mxu0 %v1853
        %v2440 = vpop.f32.mrb[0].mxu0
        %v2441 = vadd.f32 0.0, %v2440
        %v2442 = vpop.f32.mrb[0].mxu0
        %v2443 = vadd.f32 0.0, %v2442
        %2444 = vmatprep.mubr.f32.mxu0 0.0
        %2445 = vmatmul.mubr.f32.gmra.mrb[0].mxu0 %v1856
        %v2446 = vpop.f32.mrb[0].mxu0
        %v2447 = vadd.f32 0.0, %v2446
        %v2448 = vpop.f32.mrb[0].mxu0
        %v2449 = vadd.f32 0.0, %v2448
        %2450 = vmatprep.mubr.f32.mxu0 0.0
        %2451 = vmatmul.mubr.f32.gmra.mrb[0].mxu0 %v1859
        %v2452 = vpop.f32.mrb[0].mxu0
        %v2453 = vadd.f32 0.0, %v2452
        %v2454 = vpop.f32.mrb[0].mxu0
        %v2455 = vadd.f32 0.0, %v2454
        %2456 = vmatprep.mubr.f32.mxu0 0.0
        %2457 = vmatmul.mubr.f32.gmra.mrb[0].mxu0 %v1862
        %v2458 = vpop.f32.mrb[0].mxu0
        %v2459 = vadd.f32 0.0, %v2458
        %v2460 = vpop.f32.mrb[0].mxu0
        %v2461 = vadd.f32 0.0, %v2460
        %2462 = vmatprep.mubr.f32.mxu0 0.0
        %2463 = vmatmul.mubr.f32.gmra.mrb[0].mxu0 %v1865
        %v2464 = vpop.f32.mrb[0].mxu0
        %v2465 = vadd.f32 0.0, %v2464
        %v2466 = vpop.f32.mrb[0].mxu0
        %v2467 = vadd.f32 0.0, %v2466
        %2468 = vmatprep.mubr.f32.mxu0 0.0
        %2469 = vmatmul.mubr.f32.gmra.mrb[0].mxu0 %v1868
        %v2470 = vpop.f32.mrb[0].mxu0
        %v2471 = vadd.f32 0.0, %v2470
        %v2472 = vpop.f32.mrb[0].mxu0
        %v2473 = vadd.f32 0.0, %v2472
        %2474 = vmatprep.mubr.f32.mxu0 0.0
        %2475 = vmatmul.mubr.f32.gmra.mrb[0].mxu0 %v1871
        %v2476 = vpop.f32.mrb[0].mxu0
        %v2477 = vadd.f32 0.0, %v2476
        %v2478 = vpop.f32.mrb[0].mxu0
        %v2479 = vadd.f32 0.0, %v2478
        %2480 = vmatprep.mubr.f32.mxu0 0.0
        %2481 = vmatmul.mubr.f32.gmra.mrb[0].mxu0 %v1874
        %v2482 = vpop.f32.mrb[0].mxu0
        %v2483 = vadd.f32 0.0, %v2482
        %v2484 = vpop.f32.mrb[0].mxu0
        %v2485 = vadd.f32 0.0, %v2484
        %2486 = vmatprep.mubr.f32.mxu0 0.0
        %2487 = vmatmul.mubr.f32.gmra.mrb[0].mxu0 %v1877
        %v2488 = vpop.f32.mrb[0].mxu0
        %v2489 = vadd.f32 0.0, %v2488
        %v2490 = vpop.f32.mrb[0].mxu0
        %v2491 = vadd.f32 0.0, %v2490
        %2492 = vmatprep.mubr.f32.mxu0 0.0
        %2493 = vmatmul.mubr.f32.gmra.mrb[0].mxu0 %v1880
        %v2494 = vpop.f32.mrb[0].mxu0
        %v2495 = vadd.f32 0.0, %v2494
        %v2496 = vpop.f32.mrb[0].mxu0
        %v2497 = vadd.f32 0.0, %v2496
        %2498 = vmatprep.mubr.f32.mxu0 0.0
        %2499 = vmatmul.mubr.f32.gmra.mrb[0].mxu0 %v1883
        %v2500 = vpop.f32.mrb[0].mxu0
        %v2501 = vadd.f32 0.0, %v2500
        %v2502 = vpop.f32.mrb[0].mxu0
        %v2503 = vadd.f32 0.0, %v2502
        %2504 = vmatprep.mubr.f32.mxu0 0.0
        %2505 = vmatmul.mubr.f32.gmra.mrb[0].mxu0 %v1886
        %v2506 = vpop.f32.mrb[0].mxu0
        %v2507 = vadd.f32 0.0, %v2506
        %v2508 = vpop.f32.mrb[0].mxu0
        %v2509 = vadd.f32 0.0, %v2508
        %2510 = vmatprep.mubr.f32.mxu0 0.0
        %2511 = vmatmul.mubr.f32.gmra.mrb[0].mxu0 %v1889
        %v2512 = vpop.f32.mrb[0].mxu0
        %v2513 = vadd.f32 0.0, %v2512
        %v2514 = vpop.f32.mrb[0].mxu0
        %v2515 = vadd.f32 0.0, %v2514
        %2516 = vmatprep.mubr.f32.mxu0 0.0
        %2517 = vmatmul.mubr.f32.gmra.mrb[0].mxu0 %v1892
        %v2518 = vpop.f32.mrb[0].mxu0
        %v2519 = vadd.f32 0.0, %v2518
        %v2520 = vpop.f32.mrb[0].mxu0
        %v2521 = vadd.f32 0.0, %v2520
        %2522 = vmatprep.mubr.f32.mxu0 0.0
        %2523 = vmatmul.mubr.f32.gmra.mrb[0].mxu0 %v1895
        %v2524 = vpop.f32.mrb[0].mxu0
        %v2525 = vadd.f32 0.0, %v2524
        %v2526 = vpop.f32.mrb[0].mxu0
        %v2527 = vadd.f32 0.0, %v2526
        %2528 = vmatprep.mubr.f32.mxu0 0.0
        %2529 = vmatmul.mubr.f32.gmra.mrb[0].mxu0 %v1898
        %v2530 = vpop.f32.mrb[0].mxu0
        %v2531 = vadd.f32 0.0, %v2530
        %v2532 = vpop.f32.mrb[0].mxu0
        %v2533 = vadd.f32 0.0, %v2532
        %2534 = vmatprep.mubr.f32.mxu0 0.0
        %2535 = vmatmul.mubr.f32.gmra.mrb[0].mxu0 %v1901
        %v2536 = vpop.f32.mrb[0].mxu0
        %v2537 = vadd.f32 0.0, %v2536
        %v2538 = vpop.f32.mrb[0].mxu0
        %v2539 = vadd.f32 0.0, %v2538
        %2540 = vmatprep.mubr.f32.mxu0 0.0
        %2541 = vmatmul.mubr.f32.gmra.mrb[0].mxu0 %v1904
        %v2542 = vpop.f32.mrb[0].mxu0
        %v2543 = vadd.f32 0.0, %v2542
        %v2544 = vpop.f32.mrb[0].mxu0
        %v2545 = vadd.f32 0.0, %v2544
        %2546 = vdwg.mxu0
        %v2547 = vmax.f32 %v1973, %v1985
        %v2548 = vmax.f32 %v1979, %v1991
        %v2549 = vmax.f32 %v2547, %v1997
        %v2550 = vmax.f32 %v2548, %v2003
        %v2551 = vmax.f32 %v2549, %v2009
        %v2552 = vmax.f32 %v2550, %v2015
        %v2553 = vmax.f32 %v2551, %v2021
        %v2554 = vmax.f32 %v2552, %v2027
        %v2555 = vmax.f32 %v2553, %v2033
        %v2556 = vmax.f32 %v2554, %v2039
        %v2557 = vmax.f32 %v2555, %v2045
        %v2558 = vmax.f32 %v2556, %v2051
        %v2559 = vmax.f32 %v2557, %v2057
        %v2560 = vmax.f32 %v2558, %v2063
        %v2561 = vmax.f32 %v2559, %v2069
        %v2562 = vmax.f32 %v2560, %v2075
        %v2563 = vmax.f32 %v2561, %v2081
        %v2564 = vmax.f32 %v2562, %v2087
        %v2565 = vmax.f32 %v2563, %v2093
        %v2566 = vmax.f32 %v2564, %v2099
        %v2567 = vmax.f32 %v2565, %v2105
        %v2568 = vmax.f32 %v2566, %v2111
        %v2569 = vmax.f32 %v2567, %v2117
        %v2570 = vmax.f32 %v2568, %v2123
        %v2571 = vmax.f32 %v2569, %v2129
        %v2572 = vmax.f32 %v2570, %v2135
        %v2573 = vmax.f32 %v2571, %v2141
        %v2574 = vmax.f32 %v2572, %v2147
        %v2575 = vmax.f32 %v2573, %v2153
        %v2576 = vmax.f32 %v2574, %v2159
        %v2577 = vmax.f32 %v2575, %v2165
        %v2578 = vmax.f32 %v2576, %v2171
        %v2579 = vmax.f32 %v2577, %v2177
        %v2580 = vmax.f32 %v2578, %v2183
        %v2581 = vmax.f32 %v2579, %v2189
        %v2582 = vmax.f32 %v2580, %v2195
        %v2583 = vmax.f32 %v2581, %v2201
        %v2584 = vmax.f32 %v2582, %v2207
        %v2585 = vmax.f32 %v2583, %v2213
        %v2586 = vmax.f32 %v2584, %v2219
        %v2587 = vmax.f32 %v2585, %v2225
        %v2588 = vmax.f32 %v2586, %v2231
        %v2589 = vmax.f32 %v2587, %v2237
        %v2590 = vmax.f32 %v2588, %v2243
        %v2591 = vmax.f32 %v2589, %v2249
        %v2592 = vmax.f32 %v2590, %v2255
        %v2593 = vmax.f32 %v2591, %v2261
        %v2594 = vmax.f32 %v2592, %v2267
        %v2595 = vmax.f32 %v2593, %v2273
        %v2596 = vmax.f32 %v2594, %v2279
        %v2597 = vmax.f32 %v2595, %v2285
        %v2598 = vmax.f32 %v2596, %v2291
        %v2599 = vmax.f32 %v2597, %v2297
        %v2600 = vmax.f32 %v2598, %v2303
        %v2601 = vmax.f32 %v2599, %v2309
        %v2602 = vmax.f32 %v2600, %v2315
        %v2603 = vmax.f32 %v2601, %v2321
        %v2604 = vmax.f32 %v2602, %v2327
        %v2605 = vmax.f32 %v2603, %v2333
        %v2606 = vmax.f32 %v2604, %v2339
        %v2607 = vmax.f32 %v2605, %v2345
        %v2608 = vmax.f32 %v2606, %v2351
        %v2609 = vmax.f32 %v2607, %v2357
        %v2610 = vmax.f32 %v2608, %v2363
        %v2611 = vmax.f32 %v2609, %v2369
        %v2612 = vmax.f32 %v2610, %v2375
        %v2613 = vmax.f32 %v2611, %v2381
        %v2614 = vmax.f32 %v2612, %v2387
        %v2615 = vmax.f32 %v2613, %v2393
        %v2616 = vmax.f32 %v2614, %v2399
        %v2617 = vmax.f32 %v2615, %v2405
        %v2618 = vmax.f32 %v2616, %v2411
        %v2619 = vmax.f32 %v2617, %v2417
        %v2620 = vmax.f32 %v2618, %v2423
        %v2621 = vmax.f32 %v2619, %v2429
        %v2622 = vmax.f32 %v2620, %v2435
        %v2623 = vmax.f32 %v2621, %v2441
        %v2624 = vmax.f32 %v2622, %v2447
        %v2625 = vmax.f32 %v2623, %v2453
        %v2626 = vmax.f32 %v2624, %v2459
        %v2627 = vmax.f32 %v2625, %v2465
        %v2628 = vmax.f32 %v2626, %v2471
        %v2629 = vmax.f32 %v2627, %v2477
        %v2630 = vmax.f32 %v2628, %v2483
        %v2631 = vmax.f32 %v2629, %v2489
        %v2632 = vmax.f32 %v2630, %v2495
        %v2633 = vmax.f32 %v2631, %v2501
        %v2634 = vmax.f32 %v2632, %v2507
        %v2635 = vmax.f32 %v2633, %v2513
        %v2636 = vmax.f32 %v2634, %v2519
        %v2637 = vmax.f32 %v2635, %v2525
        %v2638 = vmax.f32 %v2636, %v2531
        %v2639 = vmax.f32 %v2637, %v2537
        %v2640 = vmax.f32 %v2638, %v2543
        %v2641 = vmax.f32 %v2639, %v2640
        %v2642 = vrot.slane %v2641, 4
        %v2643 = vmax.f32 %v2641, %v2642
        %v2644 = vrot.slane %v2643, 2
        %v2645 = vmax.f32 %v2643, %v2644
        %v2646 = vrot.slane %v2645, 1
        %v2647 = vmax.f32 %v2645, %v2646
        %v2648 = vmax.f32 %v1975, %v1987
        %v2649 = vmax.f32 %v1981, %v1993
        %v2650 = vmax.f32 %v2648, %v1999
        %v2651 = vmax.f32 %v2649, %v2005
        %v2652 = vmax.f32 %v2650, %v2011
        %v2653 = vmax.f32 %v2651, %v2017
        %v2654 = vmax.f32 %v2652, %v2023
        %v2655 = vmax.f32 %v2653, %v2029
        %v2656 = vmax.f32 %v2654, %v2035
        %v2657 = vmax.f32 %v2655, %v2041
        %v2658 = vmax.f32 %v2656, %v2047
        %v2659 = vmax.f32 %v2657, %v2053
        %v2660 = vmax.f32 %v2658, %v2059
        %v2661 = vmax.f32 %v2659, %v2065
        %v2662 = vmax.f32 %v2660, %v2071
        %v2663 = vmax.f32 %v2661, %v2077
        %v2664 = vmax.f32 %v2662, %v2083
        %v2665 = vmax.f32 %v2663, %v2089
        %v2666 = vmax.f32 %v2664, %v2095
        %v2667 = vmax.f32 %v2665, %v2101
        %v2668 = vmax.f32 %v2666, %v2107
        %v2669 = vmax.f32 %v2667, %v2113
        %v2670 = vmax.f32 %v2668, %v2119
        %v2671 = vmax.f32 %v2669, %v2125
        %v2672 = vmax.f32 %v2670, %v2131
        %v2673 = vmax.f32 %v2671, %v2137
        %v2674 = vmax.f32 %v2672, %v2143
        %v2675 = vmax.f32 %v2673, %v2149
        %v2676 = vmax.f32 %v2674, %v2155
        %v2677 = vmax.f32 %v2675, %v2161
        %v2678 = vmax.f32 %v2676, %v2167
        %v2679 = vmax.f32 %v2677, %v2173
        %v2680 = vmax.f32 %v2678, %v2179
        %v2681 = vmax.f32 %v2679, %v2185
        %v2682 = vmax.f32 %v2680, %v2191
        %v2683 = vmax.f32 %v2681, %v2197
        %v2684 = vmax.f32 %v2682, %v2203
        %v2685 = vmax.f32 %v2683, %v2209
        %v2686 = vmax.f32 %v2684, %v2215
        %v2687 = vmax.f32 %v2685, %v2221
        %v2688 = vmax.f32 %v2686, %v2227
        %v2689 = vmax.f32 %v2687, %v2233
        %v2690 = vmax.f32 %v2688, %v2239
        %v2691 = vmax.f32 %v2689, %v2245
        %v2692 = vmax.f32 %v2690, %v2251
        %v2693 = vmax.f32 %v2691, %v2257
        %v2694 = vmax.f32 %v2692, %v2263
        %v2695 = vmax.f32 %v2693, %v2269
        %v2696 = vmax.f32 %v2694, %v2275
        %v2697 = vmax.f32 %v2695, %v2281
        %v2698 = vmax.f32 %v2696, %v2287
        %v2699 = vmax.f32 %v2697, %v2293
        %v2700 = vmax.f32 %v2698, %v2299
        %v2701 = vmax.f32 %v2699, %v2305
        %v2702 = vmax.f32 %v2700, %v2311
        %v2703 = vmax.f32 %v2701, %v2317
        %v2704 = vmax.f32 %v2702, %v2323
        %v2705 = vmax.f32 %v2703, %v2329
        %v2706 = vmax.f32 %v2704, %v2335
        %v2707 = vmax.f32 %v2705, %v2341
        %v2708 = vmax.f32 %v2706, %v2347
        %v2709 = vmax.f32 %v2707, %v2353
        %v2710 = vmax.f32 %v2708, %v2359
        %v2711 = vmax.f32 %v2709, %v2365
        %v2712 = vmax.f32 %v2710, %v2371
        %v2713 = vmax.f32 %v2711, %v2377
        %v2714 = vmax.f32 %v2712, %v2383
        %v2715 = vmax.f32 %v2713, %v2389
        %v2716 = vmax.f32 %v2714, %v2395
        %v2717 = vmax.f32 %v2715, %v2401
        %v2718 = vmax.f32 %v2716, %v2407
        %v2719 = vmax.f32 %v2717, %v2413
        %v2720 = vmax.f32 %v2718, %v2419
        %v2721 = vmax.f32 %v2719, %v2425
        %v2722 = vmax.f32 %v2720, %v2431
        %v2723 = vmax.f32 %v2721, %v2437
        %v2724 = vmax.f32 %v2722, %v2443
        %v2725 = vmax.f32 %v2723, %v2449
        %v2726 = vmax.f32 %v2724, %v2455
        %v2727 = vmax.f32 %v2725, %v2461
        %v2728 = vmax.f32 %v2726, %v2467
        %v2729 = vmax.f32 %v2727, %v2473
        %v2730 = vmax.f32 %v2728, %v2479
        %v2731 = vmax.f32 %v2729, %v2485
        %v2732 = vmax.f32 %v2730, %v2491
        %v2733 = vmax.f32 %v2731, %v2497
        %v2734 = vmax.f32 %v2732, %v2503
        %v2735 = vmax.f32 %v2733, %v2509
        %v2736 = vmax.f32 %v2734, %v2515
        %v2737 = vmax.f32 %v2735, %v2521
        %v2738 = vmax.f32 %v2736, %v2527
        %v2739 = vmax.f32 %v2737, %v2533
        %v2740 = vmax.f32 %v2738, %v2539
        %v2741 = vmax.f32 %v2739, %v2545
        %v2742 = vmax.f32 %v2740, %v2741
        %v2743 = vrot.slane %v2742, 4
        %v2744 = vmax.f32 %v2742, %v2743
        %v2745 = vrot.slane %v2744, 2
        %v2746 = vmax.f32 %v2744, %v2745
        %v2747 = vrot.slane %v2746, 1
        %v2748 = vmax.f32 %v2746, %v2747
        %v2749 = vsub.f32 %v1973, %v2647
        %v2750 = vsub.f32 %v1975, %v2748
        %v2751 = vsub.f32 %v1979, %v2647
        %v2752 = vsub.f32 %v1981, %v2748
        %v2753 = vsub.f32 %v1985, %v2647
        %v2754 = vsub.f32 %v1987, %v2748
        %v2755 = vsub.f32 %v1991, %v2647
        %v2756 = vsub.f32 %v1993, %v2748
        %v2757 = vsub.f32 %v1997, %v2647
        %v2758 = vsub.f32 %v1999, %v2748
        %v2759 = vsub.f32 %v2003, %v2647
        %v2760 = vsub.f32 %v2005, %v2748
        %v2761 = vsub.f32 %v2009, %v2647
        %v2762 = vsub.f32 %v2011, %v2748
        %v2763 = vsub.f32 %v2015, %v2647
        %v2764 = vsub.f32 %v2017, %v2748
        %v2765 = vsub.f32 %v2021, %v2647
        %v2766 = vsub.f32 %v2023, %v2748
        %v2767 = vsub.f32 %v2027, %v2647
        %v2768 = vsub.f32 %v2029, %v2748
        %v2769 = vsub.f32 %v2033, %v2647
        %v2770 = vsub.f32 %v2035, %v2748
        %v2771 = vsub.f32 %v2039, %v2647
        %v2772 = vsub.f32 %v2041, %v2748
        %v2773 = vsub.f32 %v2045, %v2647
        %v2774 = vsub.f32 %v2047, %v2748
        %v2775 = vsub.f32 %v2051, %v2647
        %v2776 = vsub.f32 %v2053, %v2748
        %v2777 = vsub.f32 %v2057, %v2647
        %v2778 = vsub.f32 %v2059, %v2748
        %v2779 = vsub.f32 %v2063, %v2647
        %v2780 = vsub.f32 %v2065, %v2748
        %v2781 = vsub.f32 %v2069, %v2647
        %v2782 = vsub.f32 %v2071, %v2748
        %v2783 = vsub.f32 %v2075, %v2647
        %v2784 = vsub.f32 %v2077, %v2748
        %v2785 = vsub.f32 %v2081, %v2647
        %v2786 = vsub.f32 %v2083, %v2748
        %v2787 = vsub.f32 %v2087, %v2647
        %v2788 = vsub.f32 %v2089, %v2748
        %v2789 = vsub.f32 %v2093, %v2647
        %v2790 = vsub.f32 %v2095, %v2748
        %v2791 = vsub.f32 %v2099, %v2647
        %v2792 = vsub.f32 %v2101, %v2748
        %v2793 = vsub.f32 %v2105, %v2647
        %v2794 = vsub.f32 %v2107, %v2748
        %v2795 = vsub.f32 %v2111, %v2647
        %v2796 = vsub.f32 %v2113, %v2748
        %v2797 = vsub.f32 %v2117, %v2647
        %v2798 = vsub.f32 %v2119, %v2748
        %v2799 = vsub.f32 %v2123, %v2647
        %v2800 = vsub.f32 %v2125, %v2748
        %v2801 = vsub.f32 %v2129, %v2647
        %v2802 = vsub.f32 %v2131, %v2748
        %v2803 = vsub.f32 %v2135, %v2647
        %v2804 = vsub.f32 %v2137, %v2748
        %v2805 = vsub.f32 %v2141, %v2647
        %v2806 = vsub.f32 %v2143, %v2748
        %v2807 = vsub.f32 %v2147, %v2647
        %v2808 = vsub.f32 %v2149, %v2748
        %v2809 = vsub.f32 %v2153, %v2647
        %v2810 = vsub.f32 %v2155, %v2748
        %v2811 = vsub.f32 %v2159, %v2647
        %v2812 = vsub.f32 %v2161, %v2748
        %v2813 = vsub.f32 %v2165, %v2647
        %v2814 = vsub.f32 %v2167, %v2748
        %v2815 = vsub.f32 %v2171, %v2647
        %v2816 = vsub.f32 %v2173, %v2748
        %v2817 = vsub.f32 %v2177, %v2647
        %v2818 = vsub.f32 %v2179, %v2748
        %v2819 = vsub.f32 %v2183, %v2647
        %v2820 = vsub.f32 %v2185, %v2748
        %v2821 = vsub.f32 %v2189, %v2647
        %v2822 = vsub.f32 %v2191, %v2748
        %v2823 = vsub.f32 %v2195, %v2647
        %v2824 = vsub.f32 %v2197, %v2748
        %v2825 = vsub.f32 %v2201, %v2647
        %v2826 = vsub.f32 %v2203, %v2748
        %v2827 = vsub.f32 %v2207, %v2647
        %v2828 = vsub.f32 %v2209, %v2748
        %v2829 = vsub.f32 %v2213, %v2647
        %v2830 = vsub.f32 %v2215, %v2748
        %v2831 = vsub.f32 %v2219, %v2647
        %v2832 = vsub.f32 %v2221, %v2748
        %v2833 = vsub.f32 %v2225, %v2647
        %v2834 = vsub.f32 %v2227, %v2748
        %v2835 = vsub.f32 %v2231, %v2647
        %v2836 = vsub.f32 %v2233, %v2748
        %v2837 = vsub.f32 %v2237, %v2647
        %v2838 = vsub.f32 %v2239, %v2748
        %v2839 = vsub.f32 %v2243, %v2647
        %v2840 = vsub.f32 %v2245, %v2748
        %v2841 = vsub.f32 %v2249, %v2647
        %v2842 = vsub.f32 %v2251, %v2748
        %v2843 = vsub.f32 %v2255, %v2647
        %v2844 = vsub.f32 %v2257, %v2748
        %v2845 = vsub.f32 %v2261, %v2647
        %v2846 = vsub.f32 %v2263, %v2748
        %v2847 = vsub.f32 %v2267, %v2647
        %v2848 = vsub.f32 %v2269, %v2748
        %v2849 = vsub.f32 %v2273, %v2647
        %v2850 = vsub.f32 %v2275, %v2748
        %v2851 = vsub.f32 %v2279, %v2647
        %v2852 = vsub.f32 %v2281, %v2748
        %v2853 = vsub.f32 %v2285, %v2647
        %v2854 = vsub.f32 %v2287, %v2748
        %v2855 = vsub.f32 %v2291, %v2647
        %v2856 = vsub.f32 %v2293, %v2748
        %v2857 = vsub.f32 %v2297, %v2647
        %v2858 = vsub.f32 %v2299, %v2748
        %v2859 = vsub.f32 %v2303, %v2647
        %v2860 = vsub.f32 %v2305, %v2748
        %v2861 = vsub.f32 %v2309, %v2647
        %v2862 = vsub.f32 %v2311, %v2748
        %v2863 = vsub.f32 %v2315, %v2647
        %v2864 = vsub.f32 %v2317, %v2748
        %v2865 = vsub.f32 %v2321, %v2647
        %v2866 = vsub.f32 %v2323, %v2748
        %v2867 = vsub.f32 %v2327, %v2647
        %v2868 = vsub.f32 %v2329, %v2748
        %v2869 = vsub.f32 %v2333, %v2647
        %v2870 = vsub.f32 %v2335, %v2748
        %v2871 = vsub.f32 %v2339, %v2647
        %v2872 = vsub.f32 %v2341, %v2748
        %v2873 = vsub.f32 %v2345, %v2647
        %v2874 = vsub.f32 %v2347, %v2748
        %v2875 = vsub.f32 %v2351, %v2647
        %v2876 = vsub.f32 %v2353, %v2748
        %v2877 = vsub.f32 %v2357, %v2647
        %v2878 = vsub.f32 %v2359, %v2748
        %v2879 = vsub.f32 %v2363, %v2647
        %v2880 = vsub.f32 %v2365, %v2748
        %v2881 = vsub.f32 %v2369, %v2647
        %v2882 = vsub.f32 %v2371, %v2748
        %v2883 = vsub.f32 %v2375, %v2647
        %v2884 = vsub.f32 %v2377, %v2748
        %v2885 = vsub.f32 %v2381, %v2647
        %v2886 = vsub.f32 %v2383, %v2748
        %v2887 = vsub.f32 %v2387, %v2647
        %v2888 = vsub.f32 %v2389, %v2748
        %v2889 = vsub.f32 %v2393, %v2647
        %v2890 = vsub.f32 %v2395, %v2748
        %v2891 = vsub.f32 %v2399, %v2647
        %v2892 = vsub.f32 %v2401, %v2748
        %v2893 = vsub.f32 %v2405, %v2647
        %v2894 = vsub.f32 %v2407, %v2748
        %v2895 = vsub.f32 %v2411, %v2647
        %v2896 = vsub.f32 %v2413, %v2748
        %v2897 = vsub.f32 %v2417, %v2647
        %v2898 = vsub.f32 %v2419, %v2748
        %v2899 = vsub.f32 %v2423, %v2647
        %v2900 = vsub.f32 %v2425, %v2748
        %v2901 = vsub.f32 %v2429, %v2647
        %v2902 = vsub.f32 %v2431, %v2748
        %v2903 = vsub.f32 %v2435, %v2647
        %v2904 = vsub.f32 %v2437, %v2748
        %v2905 = vsub.f32 %v2441, %v2647
        %v2906 = vsub.f32 %v2443, %v2748
        %v2907 = vsub.f32 %v2447, %v2647
        %v2908 = vsub.f32 %v2449, %v2748
        %v2909 = vsub.f32 %v2453, %v2647
        %v2910 = vsub.f32 %v2455, %v2748
        %v2911 = vsub.f32 %v2459, %v2647
        %v2912 = vsub.f32 %v2461, %v2748
        %v2913 = vsub.f32 %v2465, %v2647
        %v2914 = vsub.f32 %v2467, %v2748
        %v2915 = vsub.f32 %v2471, %v2647
        %v2916 = vsub.f32 %v2473, %v2748
        %v2917 = vsub.f32 %v2477, %v2647
        %v2918 = vsub.f32 %v2479, %v2748
        %v2919 = vsub.f32 %v2483, %v2647
        %v2920 = vsub.f32 %v2485, %v2748
        %v2921 = vsub.f32 %v2489, %v2647
        %v2922 = vsub.f32 %v2491, %v2748
        %v2923 = vsub.f32 %v2495, %v2647
        %v2924 = vsub.f32 %v2497, %v2748
        %v2925 = vsub.f32 %v2501, %v2647
        %v2926 = vsub.f32 %v2503, %v2748
        %v2927 = vsub.f32 %v2507, %v2647
        %v2928 = vsub.f32 %v2509, %v2748
        %v2929 = vsub.f32 %v2513, %v2647
        %v2930 = vsub.f32 %v2515, %v2748
        %v2931 = vsub.f32 %v2519, %v2647
        %v2932 = vsub.f32 %v2521, %v2748
        %v2933 = vsub.f32 %v2525, %v2647
        %v2934 = vsub.f32 %v2527, %v2748
        %v2935 = vsub.f32 %v2531, %v2647
        %v2936 = vsub.f32 %v2533, %v2748
        %v2937 = vsub.f32 %v2537, %v2647
        %v2938 = vsub.f32 %v2539, %v2748
        %v2939 = vsub.f32 %v2543, %v2647
        %v2940 = vsub.f32 %v2545, %v2748
        %v2941 = vmul.f32 %v2749, 1.442695
        %v2942 = vpow.pop %v2941
        %v2943 = vmul.f32 %v2750, 1.442695
        %v2944 = vpow.pop %v2943
        %v2945 = vmul.f32 %v2751, 1.442695
        %v2946 = vpow.pop %v2945
        %v2947 = vmul.f32 %v2752, 1.442695
        %v2948 = vpow.pop %v2947
        %v2949 = vmul.f32 %v2753, 1.442695
        %v2950 = vpow.pop %v2949
        %v2951 = vmul.f32 %v2754, 1.442695
        %v2952 = vpow.pop %v2951
        %v2953 = vmul.f32 %v2755, 1.442695
        %v2954 = vpow.pop %v2953
        %v2955 = vmul.f32 %v2756, 1.442695
        %v2956 = vpow.pop %v2955
        %v2957 = vmul.f32 %v2757, 1.442695
        %v2958 = vpow.pop %v2957
        %v2959 = vmul.f32 %v2758, 1.442695
        %v2960 = vpow.pop %v2959
        %v2961 = vmul.f32 %v2759, 1.442695
        %v2962 = vpow.pop %v2961
        %v2963 = vmul.f32 %v2760, 1.442695
        %v2964 = vpow.pop %v2963
        %v2965 = vmul.f32 %v2761, 1.442695
        %v2966 = vpow.pop %v2965
        %v2967 = vmul.f32 %v2762, 1.442695
        %v2968 = vpow.pop %v2967
        %v2969 = vmul.f32 %v2763, 1.442695
        %v2970 = vpow.pop %v2969
        %v2971 = vmul.f32 %v2764, 1.442695
        %v2972 = vpow.pop %v2971
        %v2973 = vmul.f32 %v2765, 1.442695
        %v2974 = vpow.pop %v2973
        %v2975 = vmul.f32 %v2766, 1.442695
        %v2976 = vpow.pop %v2975
        %v2977 = vmul.f32 %v2767, 1.442695
        %v2978 = vpow.pop %v2977
        %v2979 = vmul.f32 %v2768, 1.442695
        %v2980 = vpow.pop %v2979
        %v2981 = vmul.f32 %v2769, 1.442695
        %v2982 = vpow.pop %v2981
        %v2983 = vmul.f32 %v2770, 1.442695
        %v2984 = vpow.pop %v2983
        %v2985 = vmul.f32 %v2771, 1.442695
        %v2986 = vpow.pop %v2985
        %v2987 = vmul.f32 %v2772, 1.442695
        %v2988 = vpow.pop %v2987
        %v2989 = vmul.f32 %v2773, 1.442695
        %v2990 = vpow.pop %v2989
        %v2991 = vmul.f32 %v2774, 1.442695
        %v2992 = vpow.pop %v2991
        %v2993 = vmul.f32 %v2775, 1.442695
        %v2994 = vpow.pop %v2993
        %v2995 = vmul.f32 %v2776, 1.442695
        %v2996 = vpow.pop %v2995
        %v2997 = vmul.f32 %v2777, 1.442695
        %v2998 = vpow.pop %v2997
        %v2999 = vmul.f32 %v2778, 1.442695
        %v3000 = vpow.pop %v2999
        %v3001 = vmul.f32 %v2779, 1.442695
        %v3002 = vpow.pop %v3001
        %v3003 = vmul.f32 %v2780, 1.442695
        %v3004 = vpow.pop %v3003
        %v3005 = vmul.f32 %v2781, 1.442695
        %v3006 = vpow.pop %v3005
        %v3007 = vmul.f32 %v2782, 1.442695
        %v3008 = vpow.pop %v3007
        %v3009 = vmul.f32 %v2783, 1.442695
        %v3010 = vpow.pop %v3009
        %v3011 = vmul.f32 %v2784, 1.442695
        %v3012 = vpow.pop %v3011
        %v3013 = vmul.f32 %v2785, 1.442695
        %v3014 = vpow.pop %v3013
        %v3015 = vmul.f32 %v2786, 1.442695
        %v3016 = vpow.pop %v3015
        %v3017 = vmul.f32 %v2787, 1.442695
        %v3018 = vpow.pop %v3017
        %v3019 = vmul.f32 %v2788, 1.442695
        %v3020 = vpow.pop %v3019
        %v3021 = vmul.f32 %v2789, 1.442695
        %v3022 = vpow.pop %v3021
        %v3023 = vmul.f32 %v2790, 1.442695
        %v3024 = vpow.pop %v3023
        %v3025 = vmul.f32 %v2791, 1.442695
        %v3026 = vpow.pop %v3025
        %v3027 = vmul.f32 %v2792, 1.442695
        %v3028 = vpow.pop %v3027
        %v3029 = vmul.f32 %v2793, 1.442695
        %v3030 = vpow.pop %v3029
        %v3031 = vmul.f32 %v2794, 1.442695
        %v3032 = vpow.pop %v3031
        %v3033 = vmul.f32 %v2795, 1.442695
        %v3034 = vpow.pop %v3033
        %v3035 = vmul.f32 %v2796, 1.442695
        %v3036 = vpow.pop %v3035
        %v3037 = vmul.f32 %v2797, 1.442695
        %v3038 = vpow.pop %v3037
        %v3039 = vmul.f32 %v2798, 1.442695
        %v3040 = vpow.pop %v3039
        %v3041 = vmul.f32 %v2799, 1.442695
        %v3042 = vpow.pop %v3041
        %v3043 = vmul.f32 %v2800, 1.442695
        %v3044 = vpow.pop %v3043
        %v3045 = vmul.f32 %v2801, 1.442695
        %v3046 = vpow.pop %v3045
        %v3047 = vmul.f32 %v2802, 1.442695
        %v3048 = vpow.pop %v3047
        %v3049 = vmul.f32 %v2803, 1.442695
        %v3050 = vpow.pop %v3049
        %v3051 = vmul.f32 %v2804, 1.442695
        %v3052 = vpow.pop %v3051
        %v3053 = vmul.f32 %v2805, 1.442695
        %v3054 = vpow.pop %v3053
        %v3055 = vmul.f32 %v2806, 1.442695
        %v3056 = vpow.pop %v3055
        %v3057 = vmul.f32 %v2807, 1.442695
        %v3058 = vpow.pop %v3057
        %v3059 = vmul.f32 %v2808, 1.442695
        %v3060 = vpow.pop %v3059
        %v3061 = vmul.f32 %v2809, 1.442695
        %v3062 = vpow.pop %v3061
        %v3063 = vmul.f32 %v2810, 1.442695
        %v3064 = vpow.pop %v3063
        %v3065 = vmul.f32 %v2811, 1.442695
        %v3066 = vpow.pop %v3065
        %v3067 = vmul.f32 %v2812, 1.442695
        %v3068 = vpow.pop %v3067
        %v3069 = vmul.f32 %v2813, 1.442695
        %v3070 = vpow.pop %v3069
        %v3071 = vmul.f32 %v2814, 1.442695
        %v3072 = vpow.pop %v3071
        %v3073 = vmul.f32 %v2815, 1.442695
        %v3074 = vpow.pop %v3073
        %v3075 = vmul.f32 %v2816, 1.442695
        %v3076 = vpow.pop %v3075
        %v3077 = vmul.f32 %v2817, 1.442695
        %v3078 = vpow.pop %v3077
        %v3079 = vmul.f32 %v2818, 1.442695
        %v3080 = vpow.pop %v3079
        %v3081 = vmul.f32 %v2819, 1.442695
        %v3082 = vpow.pop %v3081
        %v3083 = vmul.f32 %v2820, 1.442695
        %v3084 = vpow.pop %v3083
        %v3085 = vmul.f32 %v2821, 1.442695
        %v3086 = vpow.pop %v3085
        %v3087 = vmul.f32 %v2822, 1.442695
        %v3088 = vpow.pop %v3087
        %v3089 = vmul.f32 %v2823, 1.442695
        %v3090 = vpow.pop %v3089
        %v3091 = vmul.f32 %v2824, 1.442695
        %v3092 = vpow.pop %v3091
        %v3093 = vmul.f32 %v2825, 1.442695
        %v3094 = vpow.pop %v3093
        %v3095 = vmul.f32 %v2826, 1.442695
        %v3096 = vpow.pop %v3095
        %v3097 = vmul.f32 %v2827, 1.442695
        %v3098 = vpow.pop %v3097
        %v3099 = vmul.f32 %v2828, 1.442695
        %v3100 = vpow.pop %v3099
        %v3101 = vmul.f32 %v2829, 1.442695
        %v3102 = vpow.pop %v3101
        %v3103 = vmul.f32 %v2830, 1.442695
        %v3104 = vpow.pop %v3103
        %v3105 = vmul.f32 %v2831, 1.442695
        %v3106 = vpow.pop %v3105
        %v3107 = vmul.f32 %v2832, 1.442695
        %v3108 = vpow.pop %v3107
        %v3109 = vmul.f32 %v2833, 1.442695
        %v3110 = vpow.pop %v3109
        %v3111 = vmul.f32 %v2834, 1.442695
        %v3112 = vpow.pop %v3111
        %v3113 = vmul.f32 %v2835, 1.442695
        %v3114 = vpow.pop %v3113
        %v3115 = vmul.f32 %v2836, 1.442695
        %v3116 = vpow.pop %v3115
        %v3117 = vmul.f32 %v2837, 1.442695
        %v3118 = vpow.pop %v3117
        %v3119 = vmul.f32 %v2838, 1.442695
        %v3120 = vpow.pop %v3119
        %v3121 = vmul.f32 %v2839, 1.442695
        %v3122 = vpow.pop %v3121
        %v3123 = vmul.f32 %v2840, 1.442695
        %v3124 = vpow.pop %v3123
        %v3125 = vmul.f32 %v2841, 1.442695
        %v3126 = vpow.pop %v3125
        %v3127 = vmul.f32 %v2842, 1.442695
        %v3128 = vpow.pop %v3127
        %v3129 = vmul.f32 %v2843, 1.442695
        %v3130 = vpow.pop %v3129
        %v3131 = vmul.f32 %v2844, 1.442695
        %v3132 = vpow.pop %v3131
        %v3133 = vmul.f32 %v2845, 1.442695
        %v3134 = vpow.pop %v3133
        %v3135 = vmul.f32 %v2846, 1.442695
        %v3136 = vpow.pop %v3135
        %v3137 = vmul.f32 %v2847, 1.442695
        %v3138 = vpow.pop %v3137
        %v3139 = vmul.f32 %v2848, 1.442695
        %v3140 = vpow.pop %v3139
        %v3141 = vmul.f32 %v2849, 1.442695
        %v3142 = vpow.pop %v3141
        %v3143 = vmul.f32 %v2850, 1.442695
        %v3144 = vpow.pop %v3143
        %v3145 = vmul.f32 %v2851, 1.442695
        %v3146 = vpow.pop %v3145
        %v3147 = vmul.f32 %v2852, 1.442695
        %v3148 = vpow.pop %v3147
        %v3149 = vmul.f32 %v2853, 1.442695
        %v3150 = vpow.pop %v3149
        %v3151 = vmul.f32 %v2854, 1.442695
        %v3152 = vpow.pop %v3151
        %v3153 = vmul.f32 %v2855, 1.442695
        %v3154 = vpow.pop %v3153
        %v3155 = vmul.f32 %v2856, 1.442695
        %v3156 = vpow.pop %v3155
        %v3157 = vmul.f32 %v2857, 1.442695
        %v3158 = vpow.pop %v3157
        %v3159 = vmul.f32 %v2858, 1.442695
        %v3160 = vpow.pop %v3159
        %v3161 = vmul.f32 %v2859, 1.442695
        %v3162 = vpow.pop %v3161
        %v3163 = vmul.f32 %v2860, 1.442695
        %v3164 = vpow.pop %v3163
        %v3165 = vmul.f32 %v2861, 1.442695
        %v3166 = vpow.pop %v3165
        %v3167 = vmul.f32 %v2862, 1.442695
        %v3168 = vpow.pop %v3167
        %v3169 = vmul.f32 %v2863, 1.442695
        %v3170 = vpow.pop %v3169
        %v3171 = vmul.f32 %v2864, 1.442695
        %v3172 = vpow.pop %v3171
        %v3173 = vmul.f32 %v2865, 1.442695
        %v3174 = vpow.pop %v3173
        %v3175 = vmul.f32 %v2866, 1.442695
        %v3176 = vpow.pop %v3175
        %v3177 = vmul.f32 %v2867, 1.442695
        %v3178 = vpow.pop %v3177
        %v3179 = vmul.f32 %v2868, 1.442695
        %v3180 = vpow.pop %v3179
        %v3181 = vmul.f32 %v2869, 1.442695
        %v3182 = vpow.pop %v3181
        %v3183 = vmul.f32 %v2870, 1.442695
        %v3184 = vpow.pop %v3183
        %v3185 = vmul.f32 %v2871, 1.442695
        %v3186 = vpow.pop %v3185
        %v3187 = vmul.f32 %v2872, 1.442695
        %v3188 = vpow.pop %v3187
        %v3189 = vmul.f32 %v2873, 1.442695
        %v3190 = vpow.pop %v3189
        %v3191 = vmul.f32 %v2874, 1.442695
        %v3192 = vpow.pop %v3191
        %v3193 = vmul.f32 %v2875, 1.442695
        %v3194 = vpow.pop %v3193
        %v3195 = vmul.f32 %v2876, 1.442695
        %v3196 = vpow.pop %v3195
        %v3197 = vmul.f32 %v2877, 1.442695
        %v3198 = vpow.pop %v3197
        %v3199 = vmul.f32 %v2878, 1.442695
        %v3200 = vpow.pop %v3199
        %v3201 = vmul.f32 %v2879, 1.442695
        %v3202 = vpow.pop %v3201
        %v3203 = vmul.f32 %v2880, 1.442695
        %v3204 = vpow.pop %v3203
        %v3205 = vmul.f32 %v2881, 1.442695
        %v3206 = vpow.pop %v3205
        %v3207 = vmul.f32 %v2882, 1.442695
        %v3208 = vpow.pop %v3207
        %v3209 = vmul.f32 %v2883, 1.442695
        %v3210 = vpow.pop %v3209
        %v3211 = vmul.f32 %v2884, 1.442695
        %v3212 = vpow.pop %v3211
        %v3213 = vmul.f32 %v2885, 1.442695
        %v3214 = vpow.pop %v3213
        %v3215 = vmul.f32 %v2886, 1.442695
        %v3216 = vpow.pop %v3215
        %v3217 = vmul.f32 %v2887, 1.442695
        %v3218 = vpow.pop %v3217
        %v3219 = vmul.f32 %v2888, 1.442695
        %v3220 = vpow.pop %v3219
        %v3221 = vmul.f32 %v2889, 1.442695
        %v3222 = vpow.pop %v3221
        %v3223 = vmul.f32 %v2890, 1.442695
        %v3224 = vpow.pop %v3223
        %v3225 = vmul.f32 %v2891, 1.442695
        %v3226 = vpow.pop %v3225
        %v3227 = vmul.f32 %v2892, 1.442695
        %v3228 = vpow.pop %v3227
        %v3229 = vmul.f32 %v2893, 1.442695
        %v3230 = vpow.pop %v3229
        %v3231 = vmul.f32 %v2894, 1.442695
        %v3232 = vpow.pop %v3231
        %v3233 = vmul.f32 %v2895, 1.442695
        %v3234 = vpow.pop %v3233
        %v3235 = vmul.f32 %v2896, 1.442695
        %v3236 = vpow.pop %v3235
        %v3237 = vmul.f32 %v2897, 1.442695
        %v3238 = vpow.pop %v3237
        %v3239 = vmul.f32 %v2898, 1.442695
        %v3240 = vpow.pop %v3239
        %v3241 = vmul.f32 %v2899, 1.442695
        %v3242 = vpow.pop %v3241
        %v3243 = vmul.f32 %v2900, 1.442695
        %v3244 = vpow.pop %v3243
        %v3245 = vmul.f32 %v2901, 1.442695
        %v3246 = vpow.pop %v3245
        %v3247 = vmul.f32 %v2902, 1.442695
        %v3248 = vpow.pop %v3247
        %v3249 = vmul.f32 %v2903, 1.442695
        %v3250 = vpow.pop %v3249
        %v3251 = vmul.f32 %v2904, 1.442695
        %v3252 = vpow.pop %v3251
        %v3253 = vmul.f32 %v2905, 1.442695
        %v3254 = vpow.pop %v3253
        %v3255 = vmul.f32 %v2906, 1.442695
        %v3256 = vpow.pop %v3255
        %v3257 = vmul.f32 %v2907, 1.442695
        %v3258 = vpow.pop %v3257
        %v3259 = vmul.f32 %v2908, 1.442695
        %v3260 = vpow.pop %v3259
        %v3261 = vmul.f32 %v2909, 1.442695
        %v3262 = vpow.pop %v3261
        %v3263 = vmul.f32 %v2910, 1.442695
        %v3264 = vpow.pop %v3263
        %v3265 = vmul.f32 %v2911, 1.442695
        %v3266 = vpow.pop %v3265
        %v3267 = vmul.f32 %v2912, 1.442695
        %v3268 = vpow.pop %v3267
        %v3269 = vmul.f32 %v2913, 1.442695
        %v3270 = vpow.pop %v3269
        %v3271 = vmul.f32 %v2914, 1.442695
        %v3272 = vpow.pop %v3271
        %v3273 = vmul.f32 %v2915, 1.442695
        %v3274 = vpow.pop %v3273
        %v3275 = vmul.f32 %v2916, 1.442695
        %v3276 = vpow.pop %v3275
        %v3277 = vmul.f32 %v2917, 1.442695
        %v3278 = vpow.pop %v3277
        %v3279 = vmul.f32 %v2918, 1.442695
        %v3280 = vpow.pop %v3279
        %v3281 = vmul.f32 %v2919, 1.442695
        %v3282 = vpow.pop %v3281
        %v3283 = vmul.f32 %v2920, 1.442695
        %v3284 = vpow.pop %v3283
        %v3285 = vmul.f32 %v2921, 1.442695
        %v3286 = vpow.pop %v3285
        %v3287 = vmul.f32 %v2922, 1.442695
        %v3288 = vpow.pop %v3287
        %v3289 = vmul.f32 %v2923, 1.442695
        %v3290 = vpow.pop %v3289
        %v3291 = vmul.f32 %v2924, 1.442695
        %v3292 = vpow.pop %v3291
        %v3293 = vmul.f32 %v2925, 1.442695
        %v3294 = vpow.pop %v3293
        %v3295 = vmul.f32 %v2926, 1.442695
        %v3296 = vpow.pop %v3295
        %v3297 = vmul.f32 %v2927, 1.442695
        %v3298 = vpow.pop %v3297
        %v3299 = vmul.f32 %v2928, 1.442695
        %v3300 = vpow.pop %v3299
        %v3301 = vmul.f32 %v2929, 1.442695
        %v3302 = vpow.pop %v3301
        %v3303 = vmul.f32 %v2930, 1.442695
        %v3304 = vpow.pop %v3303
        %v3305 = vmul.f32 %v2931, 1.442695
        %v3306 = vpow.pop %v3305
        %v3307 = vmul.f32 %v2932, 1.442695
        %v3308 = vpow.pop %v3307
        %v3309 = vmul.f32 %v2933, 1.442695
        %v3310 = vpow.pop %v3309
        %v3311 = vmul.f32 %v2934, 1.442695
        %v3312 = vpow.pop %v3311
        %v3313 = vmul.f32 %v2935, 1.442695
        %v3314 = vpow.pop %v3313
        %v3315 = vmul.f32 %v2936, 1.442695
        %v3316 = vpow.pop %v3315
        %v3317 = vmul.f32 %v2937, 1.442695
        %v3318 = vpow.pop %v3317
        %v3319 = vmul.f32 %v2938, 1.442695
        %v3320 = vpow.pop %v3319
        %v3321 = vmul.f32 %v2939, 1.442695
        %v3322 = vpow.pop %v3321
        %v3323 = vmul.f32 %v2940, 1.442695
        %v3324 = vpow.pop %v3323
        %v3325 = vadd.f32 %v2942, %v2946
        %v3326 = vadd.f32 %v3325, %v2950
        %v3327 = vadd.f32 %v3326, %v2954
        %v3328 = vadd.f32 %v3327, %v2958
        %v3329 = vadd.f32 %v3328, %v2962
        %v3330 = vadd.f32 %v3329, %v2966
        %v3331 = vadd.f32 %v3330, %v2970
        %v3332 = vadd.f32 %v3331, %v2974
        %v3333 = vadd.f32 %v3332, %v2978
        %v3334 = vadd.f32 %v3333, %v2982
        %v3335 = vadd.f32 %v3334, %v2986
        %v3336 = vadd.f32 %v3335, %v2990
        %v3337 = vadd.f32 %v3336, %v2994
        %v3338 = vadd.f32 %v3337, %v2998
        %v3339 = vadd.f32 %v3338, %v3002
        %v3340 = vadd.f32 %v3339, %v3006
        %v3341 = vadd.f32 %v3340, %v3010
        %v3342 = vadd.f32 %v3341, %v3014
        %v3343 = vadd.f32 %v3342, %v3018
        %v3344 = vadd.f32 %v3343, %v3022
        %v3345 = vadd.f32 %v3344, %v3026
        %v3346 = vadd.f32 %v3345, %v3030
        %v3347 = vadd.f32 %v3346, %v3034
        %v3348 = vadd.f32 %v3347, %v3038
        %v3349 = vadd.f32 %v3348, %v3042
        %v3350 = vadd.f32 %v3349, %v3046
        %v3351 = vadd.f32 %v3350, %v3050
        %v3352 = vadd.f32 %v3351, %v3054
        %v3353 = vadd.f32 %v3352, %v3058
        %v3354 = vadd.f32 %v3353, %v3062
        %v3355 = vadd.f32 %v3354, %v3066
        %v3356 = vadd.f32 %v3355, %v3070
        %v3357 = vadd.f32 %v3356, %v3074
        %v3358 = vadd.f32 %v3357, %v3078
        %v3359 = vadd.f32 %v3358, %v3082
        %v3360 = vadd.f32 %v3359, %v3086
        %v3361 = vadd.f32 %v3360, %v3090
        %v3362 = vadd.f32 %v3361, %v3094
        %v3363 = vadd.f32 %v3362, %v3098
        %v3364 = vadd.f32 %v3363, %v3102
        %v3365 = vadd.f32 %v3364, %v3106
        %v3366 = vadd.f32 %v3365, %v3110
        %v3367 = vadd.f32 %v3366, %v3114
        %v3368 = vadd.f32 %v3367, %v3118
        %v3369 = vadd.f32 %v3368, %v3122
        %v3370 = vadd.f32 %v3369, %v3126
        %v3371 = vadd.f32 %v3370, %v3130
        %v3372 = vadd.f32 %v3371, %v3134
        %v3373 = vadd.f32 %v3372, %v3138
        %v3374 = vadd.f32 %v3373, %v3142
        %v3375 = vadd.f32 %v3374, %v3146
        %v3376 = vadd.f32 %v3375, %v3150
        %v3377 = vadd.f32 %v3376, %v3154
        %v3378 = vadd.f32 %v3377, %v3158
        %v3379 = vadd.f32 %v3378, %v3162
        %v3380 = vadd.f32 %v3379, %v3166
        %v3381 = vadd.f32 %v3380, %v3170
        %v3382 = vadd.f32 %v3381, %v3174
        %v3383 = vadd.f32 %v3382, %v3178
        %v3384 = vadd.f32 %v3383, %v3182
        %v3385 = vadd.f32 %v3384, %v3186
        %v3386 = vadd.f32 %v3385, %v3190
        %v3387 = vadd.f32 %v3386, %v3194
        %v3388 = vadd.f32 %v3387, %v3198
        %v3389 = vadd.f32 %v3388, %v3202
        %v3390 = vadd.f32 %v3389, %v3206
        %v3391 = vadd.f32 %v3390, %v3210
        %v3392 = vadd.f32 %v3391, %v3214
        %v3393 = vadd.f32 %v3392, %v3218
        %v3394 = vadd.f32 %v3393, %v3222
        %v3395 = vadd.f32 %v3394, %v3226
        %v3396 = vadd.f32 %v3395, %v3230
        %v3397 = vadd.f32 %v3396, %v3234
        %v3398 = vadd.f32 %v3397, %v3238
        %v3399 = vadd.f32 %v3398, %v3242
        %v3400 = vadd.f32 %v3399, %v3246
        %v3401 = vadd.f32 %v3400, %v3250
        %v3402 = vadd.f32 %v3401, %v3254
        %v3403 = vadd.f32 %v3402, %v3258
        %v3404 = vadd.f32 %v3403, %v3262
        %v3405 = vadd.f32 %v3404, %v3266
        %v3406 = vadd.f32 %v3405, %v3270
        %v3407 = vadd.f32 %v3406, %v3274
        %v3408 = vadd.f32 %v3407, %v3278
        %v3409 = vadd.f32 %v3408, %v3282
        %v3410 = vadd.f32 %v3409, %v3286
        %v3411 = vadd.f32 %v3410, %v3290
        %v3412 = vadd.f32 %v3411, %v3294
        %v3413 = vadd.f32 %v3412, %v3298
        %v3414 = vadd.f32 %v3413, %v3302
        %v3415 = vadd.f32 %v3414, %v3306
        %v3416 = vadd.f32 %v3415, %v3310
        %v3417 = vadd.f32 %v3416, %v3314
        %v3418 = vadd.f32 %v3417, %v3318
        %v3419 = vadd.f32 %v3418, %v3322
        %v3420 = vrot.slane %v3419, 4
        %v3421 = vadd.f32 %v3419, %v3420
        %v3422 = vrot.slane %v3421, 2
        %v3423 = vadd.f32 %v3421, %v3422
        %v3424 = vrot.slane %v3423, 1
        %v3425 = vadd.f32 %v3423, %v3424
        %v3426 = vadd.f32 %v2944, %v2948
        %v3427 = vadd.f32 %v3426, %v2952
        %v3428 = vadd.f32 %v3427, %v2956
        %v3429 = vadd.f32 %v3428, %v2960
        %v3430 = vadd.f32 %v3429, %v2964
        %v3431 = vadd.f32 %v3430, %v2968
        %v3432 = vadd.f32 %v3431, %v2972
        %v3433 = vadd.f32 %v3432, %v2976
        %v3434 = vadd.f32 %v3433, %v2980
        %v3435 = vadd.f32 %v3434, %v2984
        %v3436 = vadd.f32 %v3435, %v2988
        %v3437 = vadd.f32 %v3436, %v2992
        %v3438 = vadd.f32 %v3437, %v2996
        %v3439 = vadd.f32 %v3438, %v3000
        %v3440 = vadd.f32 %v3439, %v3004
        %v3441 = vadd.f32 %v3440, %v3008
        %v3442 = vadd.f32 %v3441, %v3012
        %v3443 = vadd.f32 %v3442, %v3016
        %v3444 = vadd.f32 %v3443, %v3020
        %v3445 = vadd.f32 %v3444, %v3024
        %v3446 = vadd.f32 %v3445, %v3028
        %v3447 = vadd.f32 %v3446, %v3032
        %v3448 = vadd.f32 %v3447, %v3036
        %v3449 = vadd.f32 %v3448, %v3040
        %v3450 = vadd.f32 %v3449, %v3044
        %v3451 = vadd.f32 %v3450, %v3048
        %v3452 = vadd.f32 %v3451, %v3052
        %v3453 = vadd.f32 %v3452, %v3056
        %v3454 = vadd.f32 %v3453, %v3060
        %v3455 = vadd.f32 %v3454, %v3064
        %v3456 = vadd.f32 %v3455, %v3068
        %v3457 = vadd.f32 %v3456, %v3072
        %v3458 = vadd.f32 %v3457, %v3076
        %v3459 = vadd.f32 %v3458, %v3080
        %v3460 = vadd.f32 %v3459, %v3084
        %v3461 = vadd.f32 %v3460, %v3088
        %v3462 = vadd.f32 %v3461, %v3092
        %v3463 = vadd.f32 %v3462, %v3096
        %v3464 = vadd.f32 %v3463, %v3100
        %v3465 = vadd.f32 %v3464, %v3104
        %v3466 = vadd.f32 %v3465, %v3108
        %v3467 = vadd.f32 %v3466, %v3112
        %v3468 = vadd.f32 %v3467, %v3116
        %v3469 = vadd.f32 %v3468, %v3120
        %v3470 = vadd.f32 %v3469, %v3124
        %v3471 = vadd.f32 %v3470, %v3128
        %v3472 = vadd.f32 %v3471, %v3132
        %v3473 = vadd.f32 %v3472, %v3136
        %v3474 = vadd.f32 %v3473, %v3140
        %v3475 = vadd.f32 %v3474, %v3144
        %v3476 = vadd.f32 %v3475, %v3148
        %v3477 = vadd.f32 %v3476, %v3152
        %v3478 = vadd.f32 %v3477, %v3156
        %v3479 = vadd.f32 %v3478, %v3160
        %v3480 = vadd.f32 %v3479, %v3164
        %v3481 = vadd.f32 %v3480, %v3168
        %v3482 = vadd.f32 %v3481, %v3172
        %v3483 = vadd.f32 %v3482, %v3176
        %v3484 = vadd.f32 %v3483, %v3180
        %v3485 = vadd.f32 %v3484, %v3184
        %v3486 = vadd.f32 %v3485, %v3188
        %v3487 = vadd.f32 %v3486, %v3192
        %v3488 = vadd.f32 %v3487, %v3196
        %v3489 = vadd.f32 %v3488, %v3200
        %v3490 = vadd.f32 %v3489, %v3204
        %v3491 = vadd.f32 %v3490, %v3208
        %v3492 = vadd.f32 %v3491, %v3212
        %v3493 = vadd.f32 %v3492, %v3216
        %v3494 = vadd.f32 %v3493, %v3220
        %v3495 = vadd.f32 %v3494, %v3224
        %v3496 = vadd.f32 %v3495, %v3228
        %v3497 = vadd.f32 %v3496, %v3232
        %v3498 = vadd.f32 %v3497, %v3236
        %v3499 = vadd.f32 %v3498, %v3240
        %v3500 = vadd.f32 %v3499, %v3244
        %v3501 = vadd.f32 %v3500, %v3248
        %v3502 = vadd.f32 %v3501, %v3252
        %v3503 = vadd.f32 %v3502, %v3256
        %v3504 = vadd.f32 %v3503, %v3260
        %v3505 = vadd.f32 %v3504, %v3264
        %v3506 = vadd.f32 %v3505, %v3268
        %v3507 = vadd.f32 %v3506, %v3272
        %v3508 = vadd.f32 %v3507, %v3276
        %v3509 = vadd.f32 %v3508, %v3280
        %v3510 = vadd.f32 %v3509, %v3284
        %v3511 = vadd.f32 %v3510, %v3288
        %v3512 = vadd.f32 %v3511, %v3292
        %v3513 = vadd.f32 %v3512, %v3296
        %v3514 = vadd.f32 %v3513, %v3300
        %v3515 = vadd.f32 %v3514, %v3304
        %v3516 = vadd.f32 %v3515, %v3308
        %v3517 = vadd.f32 %v3516, %v3312
        %v3518 = vadd.f32 %v3517, %v3316
        %v3519 = vadd.f32 %v3518, %v3320
        %v3520 = vadd.f32 %v3519, %v3324
        %v3521 = vrot.slane %v3520, 4
        %v3522 = vadd.f32 %v3520, %v3521
        %v3523 = vrot.slane %v3522, 2
        %v3524 = vadd.f32 %v3522, %v3523
        %v3525 = vrot.slane %v3524, 1
        %v3526 = vadd.f32 %v3524, %v3525
        %3527 = vmatprep.subr.mxu0 %v2944
        %3528 = vmatpush1.msra.mxu0 %v2942
        %3529 = vmatprep.subr.mxu0 %v2948
        %3530 = vmatpush1.msra.mxu0 %v2946
        %3531 = vmatprep.subr.mxu0 %v2952
        %3532 = vmatpush1.msra.mxu0 %v2950
        %3533 = vmatprep.subr.mxu0 %v2956
        %3534 = vmatpush1.msra.mxu0 %v2954
        %3535 = vmatprep.subr.mxu0 %v2960
        %3536 = vmatpush1.msra.mxu0 %v2958
        %3537 = vmatprep.subr.mxu0 %v2964
        %3538 = vmatpush1.msra.mxu0 %v2962
        %3539 = vmatprep.subr.mxu0 %v2968
        %3540 = vmatpush1.msra.mxu0 %v2966
        %3541 = vmatprep.subr.mxu0 %v2972
        %3542 = vmatpush1.msra.mxu0 %v2970
        %3543 = vmatprep.subr.mxu0 %v2976
        %3544 = vmatpush1.msra.mxu0 %v2974
        %3545 = vmatprep.subr.mxu0 %v2980
        %3546 = vmatpush1.msra.mxu0 %v2978
        %3547 = vmatprep.subr.mxu0 %v2984
        %3548 = vmatpush1.msra.mxu0 %v2982
        %3549 = vmatprep.subr.mxu0 %v2988
        %3550 = vmatpush1.msra.mxu0 %v2986
        %3551 = vmatprep.subr.mxu0 %v2992
        %3552 = vmatpush1.msra.mxu0 %v2990
        %3553 = vmatprep.subr.mxu0 %v2996
        %3554 = vmatpush1.msra.mxu0 %v2994
        %3555 = vmatprep.subr.mxu0 %v3000
        %3556 = vmatpush1.msra.mxu0 %v2998
        %3557 = vmatprep.subr.mxu0 %v3004
        %3558 = vmatpush1.msra.mxu0 %v3002
        %3559 = vmatprep.subr.mxu0 %v3008
        %3560 = vmatpush1.msra.mxu0 %v3006
        %3561 = vmatprep.subr.mxu0 %v3012
        %3562 = vmatpush1.msra.mxu0 %v3010
        %3563 = vmatprep.subr.mxu0 %v3016
        %3564 = vmatpush1.msra.mxu0 %v3014
        %3565 = vmatprep.subr.mxu0 %v3020
        %3566 = vmatpush1.msra.mxu0 %v3018
        %3567 = vmatprep.subr.mxu0 %v3024
        %3568 = vmatpush1.msra.mxu0 %v3022
        %3569 = vmatprep.subr.mxu0 %v3028
        %3570 = vmatpush1.msra.mxu0 %v3026
        %3571 = vmatprep.subr.mxu0 %v3032
        %3572 = vmatpush1.msra.mxu0 %v3030
        %3573 = vmatprep.subr.mxu0 %v3036
        %3574 = vmatpush1.msra.mxu0 %v3034
        %3575 = vmatprep.subr.mxu0 %v3040
        %3576 = vmatpush1.msra.mxu0 %v3038
        %3577 = vmatprep.subr.mxu0 %v3044
        %3578 = vmatpush1.msra.mxu0 %v3042
        %3579 = vmatprep.subr.mxu0 %v3048
        %3580 = vmatpush1.msra.mxu0 %v3046
        %3581 = vmatprep.subr.mxu0 %v3052
        %3582 = vmatpush1.msra.mxu0 %v3050
        %3583 = vmatprep.subr.mxu0 %v3056
        %3584 = vmatpush1.msra.mxu0 %v3054
        %3585 = vmatprep.subr.mxu0 %v3060
        %3586 = vmatpush1.msra.mxu0 %v3058
        %3587 = vmatprep.subr.mxu0 %v3064
        %3588 = vmatpush1.msra.mxu0 %v3062
        %3589 = vmatprep.subr.mxu0 %v3068
        %3590 = vmatpush1.msra.mxu0 %v3066
        %3591 = vmatprep.mubr.f32.mxu0 %v1463
        %3592 = vmatmul.mubr.f32.gmra.mrb[0].mxu0 %v1461
        %v3593 = vpop.f32.mrb[0].mxu0
        %v3594 = vadd.f32 0.0, %v3593
        %v3595 = vpop.f32.mrb[0].mxu0
        %v3596 = vadd.f32 0.0, %v3595
        %3597 = vdwg.mxu0
        %3598 = vmatprep.subr.mxu0 %v3072
        %3599 = vmatpush1.msra.mxu0 %v3070
        %3600 = vmatprep.subr.mxu0 %v3076
        %3601 = vmatpush1.msra.mxu0 %v3074
        %3602 = vmatprep.subr.mxu0 %v3080
        %3603 = vmatpush1.msra.mxu0 %v3078
        %3604 = vmatprep.subr.mxu0 %v3084
        %3605 = vmatpush1.msra.mxu0 %v3082
        %3606 = vmatprep.subr.mxu0 %v3088
        %3607 = vmatpush1.msra.mxu0 %v3086
        %3608 = vmatprep.subr.mxu0 %v3092
        %3609 = vmatpush1.msra.mxu0 %v3090
        %3610 = vmatprep.subr.mxu0 %v3096
        %3611 = vmatpush1.msra.mxu0 %v3094
        %3612 = vmatprep.subr.mxu0 %v3100
        %3613 = vmatpush1.msra.mxu0 %v3098
        %3614 = vmatprep.subr.mxu0 %v3104
        %3615 = vmatpush1.msra.mxu0 %v3102
        %3616 = vmatprep.subr.mxu0 %v3108
        %3617 = vmatpush1.msra.mxu0 %v3106
        %3618 = vmatprep.subr.mxu0 %v3112
        %3619 = vmatpush1.msra.mxu0 %v3110
        %3620 = vmatprep.subr.mxu0 %v3116
        %3621 = vmatpush1.msra.mxu0 %v3114
        %3622 = vmatprep.subr.mxu0 %v3120
        %3623 = vmatpush1.msra.mxu0 %v3118
        %3624 = vmatprep.subr.mxu0 %v3124
        %3625 = vmatpush1.msra.mxu0 %v3122
        %3626 = vmatprep.subr.mxu0 %v3128
        %3627 = vmatpush1.msra.mxu0 %v3126
        %3628 = vmatprep.subr.mxu0 %v3132
        %3629 = vmatpush1.msra.mxu0 %v3130
        %3630 = vmatprep.subr.mxu0 %v3136
        %3631 = vmatpush1.msra.mxu0 %v3134
        %3632 = vmatprep.subr.mxu0 %v3140
        %3633 = vmatpush1.msra.mxu0 %v3138
        %3634 = vmatprep.subr.mxu0 %v3144
        %3635 = vmatpush1.msra.mxu0 %v3142
        %3636 = vmatprep.subr.mxu0 %v3148
        %3637 = vmatpush1.msra.mxu0 %v3146
        %3638 = vmatprep.subr.mxu0 %v3152
        %3639 = vmatpush1.msra.mxu0 %v3150
        %3640 = vmatprep.subr.mxu0 %v3156
        %3641 = vmatpush1.msra.mxu0 %v3154
        %3642 = vmatprep.subr.mxu0 %v3160
        %3643 = vmatpush1.msra.mxu0 %v3158
        %3644 = vmatprep.subr.mxu0 %v3164
        %3645 = vmatpush1.msra.mxu0 %v3162
        %3646 = vmatprep.subr.mxu0 %v3168
        %3647 = vmatpush1.msra.mxu0 %v3166
        %3648 = vmatprep.subr.mxu0 %v3172
        %3649 = vmatpush1.msra.mxu0 %v3170
        %3650 = vmatprep.subr.mxu0 %v3176
        %3651 = vmatpush1.msra.mxu0 %v3174
        %3652 = vmatprep.subr.mxu0 %v3180
        %3653 = vmatpush1.msra.mxu0 %v3178
        %3654 = vmatprep.subr.mxu0 %v3184
        %3655 = vmatpush1.msra.mxu0 %v3182
        %3656 = vmatprep.subr.mxu0 %v3188
        %3657 = vmatpush1.msra.mxu0 %v3186
        %3658 = vmatprep.subr.mxu0 %v3192
        %3659 = vmatpush1.msra.mxu0 %v3190
        %3660 = vmatprep.subr.mxu0 %v3196
        %3661 = vmatpush1.msra.mxu0 %v3194
        %3662 = vmatprep.mubr.f32.mxu0 %v1539
        %3663 = vmatmul.mubr.f32.gmra.mrb[0].mxu0 %v1537
        %v3664 = vpop.f32.mrb[0].mxu0
        %v3665 = vadd.f32 %v3594, %v3664
        %v3666 = vpop.f32.mrb[0].mxu0
        %v3667 = vadd.f32 %v3596, %v3666
        %3668 = vdwg.mxu0
        %3669 = vmatprep.subr.mxu0 %v3200
        %3670 = vmatpush1.msra.mxu0 %v3198
        %3671 = vmatprep.subr.mxu0 %v3204
        %3672 = vmatpush1.msra.mxu0 %v3202
        %3673 = vmatprep.subr.mxu0 %v3208
        %3674 = vmatpush1.msra.mxu0 %v3206
        %3675 = vmatprep.subr.mxu0 %v3212
        %3676 = vmatpush1.msra.mxu0 %v3210
        %3677 = vmatprep.subr.mxu0 %v3216
        %3678 = vmatpush1.msra.mxu0 %v3214
        %3679 = vmatprep.subr.mxu0 %v3220
        %3680 = vmatpush1.msra.mxu0 %v3218
        %3681 = vmatprep.subr.mxu0 %v3224
        %3682 = vmatpush1.msra.mxu0 %v3222
        %3683 = vmatprep.subr.mxu0 %v3228
        %3684 = vmatpush1.msra.mxu0 %v3226
        %3685 = vmatprep.subr.mxu0 %v3232
        %3686 = vmatpush1.msra.mxu0 %v3230
        %3687 = vmatprep.subr.mxu0 %v3236
        %3688 = vmatpush1.msra.mxu0 %v3234
        %3689 = vmatprep.subr.mxu0 %v3240
        %3690 = vmatpush1.msra.mxu0 %v3238
        %3691 = vmatprep.subr.mxu0 %v3244
        %3692 = vmatpush1.msra.mxu0 %v3242
        %3693 = vmatprep.subr.mxu0 %v3248
        %3694 = vmatpush1.msra.mxu0 %v3246
        %3695 = vmatprep.subr.mxu0 %v3252
        %3696 = vmatpush1.msra.mxu0 %v3250
        %3697 = vmatprep.subr.mxu0 %v3256
        %3698 = vmatpush1.msra.mxu0 %v3254
        %3699 = vmatprep.subr.mxu0 %v3260
        %3700 = vmatpush1.msra.mxu0 %v3258
        %3701 = vmatprep.subr.mxu0 %v3264
        %3702 = vmatpush1.msra.mxu0 %v3262
        %3703 = vmatprep.subr.mxu0 %v3268
        %3704 = vmatpush1.msra.mxu0 %v3266
        %3705 = vmatprep.subr.mxu0 %v3272
        %3706 = vmatpush1.msra.mxu0 %v3270
        %3707 = vmatprep.subr.mxu0 %v3276
        %3708 = vmatpush1.msra.mxu0 %v3274
        %3709 = vmatprep.subr.mxu0 %v3280
        %3710 = vmatpush1.msra.mxu0 %v3278
        %3711 = vmatprep.subr.mxu0 %v3284
        %3712 = vmatpush1.msra.mxu0 %v3282
        %3713 = vmatprep.subr.mxu0 %v3288
        %3714 = vmatpush1.msra.mxu0 %v3286
        %3715 = vmatprep.subr.mxu0 %v3292
        %3716 = vmatpush1.msra.mxu0 %v3290
        %3717 = vmatprep.subr.mxu0 %v3296
        %3718 = vmatpush1.msra.mxu0 %v3294
        %3719 = vmatprep.subr.mxu0 %v3300
        %3720 = vmatpush1.msra.mxu0 %v3298
        %3721 = vmatprep.subr.mxu0 %v3304
        %3722 = vmatpush1.msra.mxu0 %v3302
        %3723 = vmatprep.subr.mxu0 %v3308
        %3724 = vmatpush1.msra.mxu0 %v3306
        %3725 = vmatprep.subr.mxu0 %v3312
        %3726 = vmatpush1.msra.mxu0 %v3310
        %3727 = vmatprep.subr.mxu0 %v3316
        %3728 = vmatpush1.msra.mxu0 %v3314
        %3729 = vmatprep.subr.mxu0 %v3320
        %3730 = vmatpush1.msra.mxu0 %v3318
        %3731 = vmatprep.subr.mxu0 %v3324
        %3732 = vmatpush1.msra.mxu0 %v3322
        %3733 = vmatprep.mubr.f32.mxu0 %v1615
        %3734 = vmatmul.mubr.f32.gmra.mrb[0].mxu0 %v1613
        %v3735 = vpop.f32.mrb[0].mxu0
        %v3736 = vadd.f32 %v3665, %v3735
        %v3737 = vpop.f32.mrb[0].mxu0
        %v3738 = vadd.f32 %v3667, %v3737
        %3739 = vdwg.mxu0
        %v3740 = vrcp.pop %v3425
        %v3741 = vrcp.pop %v3526
        %v3742 = vmul.f32 %v3425, %v3740
        %v3743 = vmul.f32 %v3526, %v3741
        %v3744 = vsub.f32 2.0, %v3742
        %v3745 = vsub.f32 2.0, %v3743
        %v3746 = vmul.f32 %v3740, %v3744
        %v3747 = vmul.f32 %v3741, %v3745
        %v3748 = vmul.f32 %v3736, %v3746
        %v3749 = vmul.f32 %v3738, %v3747
        %v3750 = vadd.f32 %v3748, %v591
        %v3751 = vadd.f32 %v3749, %v593
        %v3754 = vcombine.low %v3750, %v3751
        %v3756 = vunpack.c.l.s4 1966171168
        %v3757 = vunpack.c.0.s8 %v3756
        %v3758 = vlaneseq
        %v3759 = vshrl.u32 %v3758, 7
        %v3760 = vsub.s32 %v3757, %v3759
        %v3761 = vrot.slane %v3754, %v3760
        %v3763 = vunpack.c.l.s4 1966171168
        %v3764 = vunpack.c.0.s8 %v3763
        %v3765 = vlaneseq
        %v3766 = vshrl.u32 %v3765, 7
        %v3767 = vsub.s32 %v3764, %v3766
        %v3768 = vrot.slane %v3761, %v3767
        %v3770 = vlaneseq
        %vm3771 = vcmp.ge.s32.totalorder %v3770, 0
        %vm3772 = vcmp.lt.s32.totalorder %v3770, 256
        %vm3773 = vmand %vm3771, %vm3772
        %3774 = vst.msk [vmem:[%s398] sm:$0x3] %vm3773, %v3768
        %v3775 = vld [vmem:[%s394] sm:$0x3]
        %v3777 = vlaneseq
        %v3778 = vshrl.u32 %v3777, 7
        %v3779 = vsub.s32 0, %v3778
        %v3780 = vrot.slane %v3775, %v3779
        %v3781 = vlaneseq
        %v3782 = vshrl.u32 %v3781, 7
        %v3783 = vsub.s32 1, %v3782
        %v3784 = vrot.slane %v3775, %v3783
        %v3787 = vsub.f32 %v3750, %v3780
        %v3788 = vsub.f32 %v3751, %v3784
        %v3789 = vmul.f32 %v3787, %v3787
        %v3790 = vmul.f32 %v3788, %v3788
        %vm3791 = vcmask 1040384
        %v3792 = vsel %vm3791, %v3789, 0.0
        %v3793 = vsel %vm3791, %v3790, 0.0
        %v3794 = vadd.f32 %v3792, %v3793
        %3795 = vadd.xlane.f32.xlu0 %v3794
        %v3796 = vpop.xlane.xlu0 %3795
        %v3797 = vrot.slane %v3796, 4
        %v3798 = vadd.f32 %v3796, %v3797
        %v3799 = vrot.slane %v3798, 2
        %v3800 = vadd.f32 %v3798, %v3799
        %v3801 = vrot.slane %v3800, 1
        %v3802 = vadd.f32 %v3800, %v3801
        %s3803 = vtos %v3802
        %s3804 = scalar_lea.smem %s375, 0 [#allocation2]
        %3805 = sst [smem:[%s3804]] %s3803
        %p3806 = scmp.lt.s32.totalorder %s24, 1
        %s3807 = scalar_select %p3806, %s24, 1
        %s3808 = smul.addr %s3807, 2
        %s3809 = scalar_lea.vmem %s8, %s3808
        %s3810 = sand.u32 %s246, 1
        %s3811 = scalar_lea.sflag [#allocation3], %s3810
        %s3812 = sand.u32 %s246, 1
        %s3813 = smul.addr %s3812, 128
        %s3814 = scalar_lea.smem [#allocation2], %s3813
        // Predicated region
        $region53: #{network_forward.1} parent=51 // pred_check
          %p3815 = pneg %p230
        $region54: #{network_forward.1} parent=51 // pred_check_branch
          %3817 = sbr.rel (%p3815) target = $region56
        $region55: #{network_forward.1} parent=51 // pred_region
          _
        $region56: #{network_forward.1} parent=51 // pred_fallthru
          _
        // Predicated region
        $region57: #{network_forward.1} parent=51 // pred_check
          %p3818 = pneg %p256
        $region58: #{network_forward.1} parent=51 // pred_check_branch
          %3820 = sbr.rel (%p3818) target = $region60
        $region59: #{network_forward.1} parent=51 // pred_region
          %s3822 = ssub.s32 16, 16
          %3823 = vsyncadd %s3811, %s3822
          %s3824 = scalar_lea.vmem %s9, %s24
          %s3826 = sshll.u32 %s3824, 4
          %s3827 = int_to_ptr.vmem [resolvable:$true] %s3826
          %3829 = dma.smem_to_vmem %s3814, 16, %s3827, %s3811
        $region60: #{network_forward.1} parent=51 // pred_fallthru
          _
      $region52: #{network_forward.1} parent=5 // pred_fallthru
        _
      %p3830 = scmp.le.s32.totalorder 2, %s19
      // Predicated region
      $region61: #{network_forward.1} parent=5 // pred_check
        %p3831 = pneg %p3830
      $region62: #{network_forward.1} parent=5 // pred_check_branch
        %3833 = sbr.rel (%p3831) target = $region64
      $region63: #{network_forward.1} parent=5 // pred_region
        %s3834 = ssub.s32 %s19, 2
        // Predicated region
        $region65: #{network_forward.1} parent=63 // pred_check
          %p3835 = pneg %p236
        $region66: #{network_forward.1} parent=63 // pred_check_branch
          %3837 = sbr.rel (%p3835) target = $region68
        $region67: #{network_forward.1} parent=63 // pred_region
          %p3838 = scmp.lt.s32.totalorder %s25, 1
          %s3839 = scalar_select %p3838, %s25, 1
          %s3840 = smul.addr %s3839, 2
          %s3841 = scalar_lea.vmem %s8, %s3840
        $region68: #{network_forward.1} parent=63 // pred_fallthru
          _
        // Predicated region
        $region69: #{network_forward.1} parent=63 // pred_check
          %p3842 = pneg %p262
        $region70: #{network_forward.1} parent=63 // pred_check_branch
          %3844 = sbr.rel (%p3842) target = $region72
        $region71: #{network_forward.1} parent=63 // pred_region
          %s3845 = sand.u32 %s247, 1
          %s3846 = scalar_lea.sflag [#allocation3], %s3845
          %s3847 = sand.u32 %s247, 1
          %s3848 = smul.addr %s3847, 128
          %s3849 = scalar_lea.smem [#allocation2], %s3848
          %3850 = dma.done %s3846, 16
        $region72: #{network_forward.1} parent=63 // pred_fallthru
          _
        %3851 = sfence
      $region64: #{network_forward.1} parent=5 // pred_fallthru
        _
    $region6: #{network_forward.1} parent=1 // loop_footer
      %s23 = sadd.s32 1, %s19
    $region7: #{network_forward.1} parent=1 // loop_footer_branch
      %18 = sbr.rel target = $region3
    $region8: #{network_forward.1} parent=1 // loop_exit
      _
    %3852 = vsyncpa [#allocation3], 1
    %s3853 = scalar_lea.sflag [#allocation3], 1
    %3854 = vsyncpa %s3853, 1

</llo_original>
